<compile_context>
chip_gen: v7x
topology: tpu7x:2x2x1
jax: 0.10.0
libtpu: 0.0.40
codegen_flags: <defaults>
</compile_context>

<pallas_src>
import math

import jax
import jax.numpy as jnp
from jax import lax
from jax.experimental import pallas as pl
from jax.experimental.pallas import tpu as pltpu

# ---- module hyperparameters (from __init__), baked as compile-time constants ----
C = 1.0                    # manifold curvature c (Poincare ball)
ALPHA = 0.1                # params[0]
BETA = 0.5                 # params[1]
LAYER_NUM = 2
THETA = math.log(BETA / LAYER_NUM + 1.0)
EPS = 1e-15
BALL_EPS = 1e-5
SQRT_C = math.sqrt(C)


def _round_up(n, m):
    return ((n + m - 1) // m) * m


# ---------- hyperbolic helpers (norm-threaded; epilogue-only, exact divides) ----------
def _artanh(x):
    x = jnp.clip(x, -1.0 + 1e-7, 1.0 - 1e-7)
    return 0.5 * jnp.log((1.0 + x) / (1.0 - x))


def _clamp_abs(x, eps):
    return jnp.where(x >= 0, jnp.maximum(x, eps), jnp.minimum(x, -eps))


def _norm_from_sq(sq):
    return jnp.maximum(jnp.sqrt(sq), EPS)


def _mobius_half(x, xn):
    """mobius_scalar_mul(0.5, x) given clamped norm xn. Returns (y, ||y||)."""
    yn = jnp.tanh(0.5 * _artanh(SQRT_C * xn)) * (1.0 / SQRT_C)
    y = x * (yn / xn)
    return y, jnp.maximum(yn, EPS)


def _lambda_from_norm(xn):
    return 2.0 / jnp.maximum(1.0 - C * xn * xn, EPS)


def _two_point_midpoint(p1, n1, p2, n2, w1, w2):
    """weighted_midpoint over a stacked axis of size 2 (reducedim=[1]); norms threaded in/out."""
    lam1 = _lambda_from_norm(n1)
    lam2 = _lambda_from_norm(n2)
    den = _clamp_abs(w1 * (lam1 - 1.0) + w2 * (lam2 - 1.0), 1e-10)
    mid = ((w1 * lam1) * p1 + (w2 * lam2) * p2) / den
    mn = _norm_from_sq(jnp.sum(mid * mid, axis=-1, keepdims=True))
    return _mobius_half(mid, mn)


def _logmap0_from_norm(x, xn):
    return x * (_artanh(SQRT_C * xn) / (SQRT_C * xn))


def _expmap0(u):
    un = _norm_from_sq(jnp.sum(u * u, axis=-1, keepdims=True))
    yn = jnp.tanh(SQRT_C * un) * (1.0 / SQRT_C)
    y = u * (yn / un)
    return y, jnp.maximum(yn, EPS)


def _project_from_norm(x, xn):
    maxnorm = (1.0 - BALL_EPS) / SQRT_C
    clip = xn > maxnorm
    scale = jnp.where(clip, maxnorm / xn, 1.0)
    return x * scale, jnp.where(clip, maxnorm, xn)


# ------------------------------- Pallas kernel -------------------------------
def _make_kernel(din, tk, resident):
    """din = true feature width; lane `din` of the fused SpMM RHS carries (lam - 1).

    resident=True  -> rhs_ref holds the FULL [npad_k, dp] RHS in VMEM (constant index
                      map, fetched once); the kernel slices the k-th chunk itself.
    resident=False -> rhs_ref is the per-k [tk, dp] tile delivered by BlockSpec.
    """

    def kernel(rhs_ref, adj_ref, h_ref, wt_ref, b_ref, out_ref, acc_ref):
        k = pl.program_id(1)

        @pl.when(k == 0)
        def _():
            acc_ref[...] = jnp.zeros_like(acc_ref)

        # ---- (1) fused SpMM: one MXU pass yields num (lanes < din) and den (lane din) ----
        if resident:
            start = pl.multiple_of(k * tk, 128)
            rhs = rhs_ref[pl.ds(start, tk), :]
        else:
            rhs = rhs_ref[...]
        acc_ref[...] += jnp.dot(adj_ref[...], rhs, preferred_element_type=jnp.float32)

        # ---- epilogue on the last K step only (hidden under next row tile's adj DMA) ----
        @pl.when(k == pl.num_programs(1) - 1)
        def _():
            acc = acc_ref[...]                               # [TM, DP] f32
            lane = lax.broadcasted_iota(jnp.int32, acc.shape, 1)
            is_den = lane == din
            num = jnp.where(is_den, 0.0, acc)
            den = _clamp_abs(
                jnp.sum(jnp.where(is_den, acc, 0.0), axis=-1, keepdims=True), 1e-10)
            mid = num / den
            support, s_n = _mobius_half(
                mid, _norm_from_sq(jnp.sum(mid * mid, axis=-1, keepdims=True)))

            # ---- (2) residual midpoint with h_init, weights [1-alpha, alpha] ----
            h0 = h_ref[...]
            h0_n = _norm_from_sq(jnp.sum(h0 * h0, axis=-1, keepdims=True))
            support, s_n = _two_point_midpoint(support, s_n, h0, h0_n, 1.0 - ALPHA, ALPHA)
            res, res_n = support, s_n

            # ---- (3) HyperbolicLinearFast -> MobiusLinearFast ----
            # TODO(synk): MobiusLinearFast source unavailable; implemented as the standard
            #             tangent-space linear expmap0(W @ logmap0(x) + b). act_fn=None.
            # TODO(synk): dropout omitted (inference / eval mode identity).
            u = _logmap0_from_norm(support, s_n)
            v = jnp.dot(u, wt_ref[...], preferred_element_type=jnp.float32) + b_ref[...]
            e, e_n = _expmap0(v)
            lin, lin_n = _project_from_norm(e, e_n)

            # ---- (4) final_agg alignment midpoint, weights [theta, 1-theta] ----
            out, out_n = _two_point_midpoint(lin, lin_n, res, res_n, THETA, 1.0 - THETA)
            out, _ = _project_from_norm(out, out_n)
            out_ref[...] = out.astype(out_ref.dtype)

    return kernel


# ------------------------------- wrapper -------------------------------
def _vmem_capacity_bytes():
    try:
        info = pltpu.get_tpu_info()
        cap = getattr(info, "vmem_capacity_bytes", None)
        if cap:
            return int(cap)
    except Exception:
        pass
    return 64 * 1024 * 1024  # conservative (v7x-sized) fallback


def hyperbolic_graph_conv(x, adj, h_init, W, b, *, tm=1024, tk=1024,
                          matmul_dtype=jnp.bfloat16, out_dtype=jnp.float32):
    N, din = x.shape
    dout, din_w = W.shape
    assert din_w == din and dout == din, \
        "residual/alignment midpoints require in_features == out_features"

    # Lane-dense padding: feature dim -> multiple of 128; extra lane `din` carries den.
    dp = _round_up(din + 1, 128)
    adj_b = jnp.dtype(matmul_dtype).itemsize
    rhs_b = adj_b
    out_b = jnp.dtype(out_dtype).itemsize

    n128 = _round_up(N, 128)
    tm = min(tm, n128)
    tk = min(tk, n128)
    # v7x has 2 TensorCores; the "parallel" row axis needs >= 2 tiles to feed both.
    if n128 >= 256 and _round_up(N, tm) // tm < 2:
        tm = ((n128 // 128 + 1) // 2) * 128

    vmem_phys = _vmem_capacity_bytes()
    budget = min(int(vmem_phys * 0.75), 96 * 1024 * 1024)   # 48 MiB on v7x, 96 MiB on v5e/v6e

    def footprint(tm_, tk_):
        npad_k_ = _round_up(N, tk_)
        # Keep the full RHS VMEM-resident when cheap (conservatively counted 2x).
        resident_ = 2 * npad_k_ * dp * rhs_b <= min(budget // 4, 16 * 1024 * 1024)
        f = 2 * tm_ * tk_ * adj_b                                # adj double buffer
        f += 2 * (npad_k_ if resident_ else tk_) * dp * rhs_b    # SpMM RHS
        f += 2 * tm_ * dp * 4                                    # h_init
        f += tm_ * dp * 4                                        # f32 accumulator scratch
        f += 2 * tm_ * dp * out_b                                # output
        f += 2 * (dp * dp + dp) * 4                              # W^T + bias
        return f, resident_

    while True:
        fp, resident = footprint(tm, tk)
        if fp <= budget or (tm <= 256 and tk <= 256):
            break
        if tk >= tm:
            tk = max(256, tk // 2)
        else:
            tm = max(128, tm // 2)

    npad_m = _round_up(N, tm)   # output / adj-row padding
    npad_k = _round_up(N, tk)   # source-node / adj-col padding (independent of npad_m)
    grid = (npad_m // tm, npad_k // tk)

    # Precompute the fused SpMM RHS (lam*x | lam-1 | 0-pad) ONCE, in exact f32:
    # removes the per-(i,k) x^2/lam recompute and the redundant per-row-tile x re-DMA.
    x_f = x.astype(jnp.float32)
    lam = 2.0 / jnp.maximum(1.0 - C * jnp.sum(x_f * x_f, axis=-1, keepdims=True), EPS)
    rhs = jnp.concatenate([lam * x_f, lam - 1.0], axis=-1)          # [N, din+1]
    rhs_p = jnp.pad(rhs, ((0, npad_k - N), (0, dp - (din + 1)))).astype(matmul_dtype)

    # TODO(synk): ideally adj arrives pre-padded / pre-cast (bf16, 128-aligned) upstream;
    #             this pad+cast is an extra O(N^2) HBM pass outside the kernel.
    adj_p = jnp.pad(adj, ((0, npad_m - N), (0, npad_k - N))).astype(matmul_dtype)
    h_p = jnp.pad(h_init.astype(jnp.float32), ((0, npad_m - N), (0, dp - din)))
    # Pre-transposed + zero-padded weight (no in-kernel transpose) and bias.
    wt_p = jnp.pad(W.astype(jnp.float32).T, ((0, dp - din), (0, dp - dout)))
    b_p = jnp.pad(b.astype(jnp.float32).reshape(1, dout), ((0, 0), (0, dp - dout)))

    if resident:
        rhs_spec = pl.BlockSpec((npad_k, dp), lambda i, k: (0, 0))   # fetched once, stays in VMEM
    else:
        rhs_spec = pl.BlockSpec((tk, dp), lambda i, k: (k, 0))

    out = pl.pallas_call(
        _make_kernel(din, tk, resident),
        out_shape=jax.ShapeDtypeStruct((npad_m, dp), out_dtype),
        grid_spec=pltpu.PrefetchScalarGridSpec(
            num_scalar_prefetch=0,
            grid=grid,
            in_specs=[
                rhs_spec,                                       # fused SpMM RHS
                pl.BlockSpec((tm, tk), lambda i, k: (i, k)),    # adj tile (bf16 by default)
                pl.BlockSpec((tm, dp), lambda i, k: (i, 0)),    # h_init (per row tile)
                pl.BlockSpec((dp, dp), lambda i, k: (0, 0)),    # W^T (padded)
                pl.BlockSpec((1, dp), lambda i, k: (0, 0)),     # bias (padded)
            ],
            out_specs=pl.BlockSpec((tm, dp), lambda i, k: (i, 0)),
            scratch_shapes=[pltpu.VMEM((tm, dp), jnp.float32)],
        ),
        compiler_params=pltpu.CompilerParams(
            dimension_semantics=("parallel", "arbitrary"),
            vmem_limit_bytes=int(budget),
        ),
    )(rhs_p, adj_p, h_p, wt_p, b_p)
    return out[:N, :dout]


if __name__ == "__main__":
    N, D = 256, 32
    key = jax.random.PRNGKey(0)
    k1, k2, k3, k4 = jax.random.split(key, 4)

    # Plain-JAX glue to build valid Poincare-ball inputs (||x|| < 1/sqrt(c)).
    def expmap0_host(u):
        un = jnp.maximum(jnp.linalg.norm(u, axis=-1, keepdims=True), EPS)
        return jnp.tanh(SQRT_C * un) * u / (un * SQRT_C)

    x = expmap0_host(0.1 * jax.random.normal(k1, (N, D), jnp.float32))
    h_init = expmap0_host(0.1 * jax.random.normal(k2, (N, D), jnp.float32))

    # Row-normalized symmetric adjacency with self-loops.
    a = (jax.random.uniform(k3, (N, N)) < 0.05).astype(jnp.float32)
    a = jnp.maximum(a, a.T) + jnp.eye(N, dtype=jnp.float32)
    adj = a / jnp.sum(a, axis=1, keepdims=True)

    # Deterministic parameter init (Glorot-uniform-like) for MobiusLinearFast.
    limit = math.sqrt(6.0 / (D + D))
    W = jax.random.uniform(k4, (D, D), jnp.float32, minval=-limit, maxval=limit)
    b = jnp.zeros((1, D), jnp.float32)

    out = hyperbolic_graph_conv(x, adj, h_init, W, b)   # bf16 adj/RHS, f32 accumulate
    jax.block_until_ready(out)

    # --- pure-JAX reference (exact f32 divides) for a sanity check ---
    def reference(x, adj, h0, W, b):
        def norm(t): return jnp.maximum(jnp.linalg.norm(t, axis=-1, keepdims=True), EPS)

        def artanh(t):
            t = jnp.clip(t, -1.0 + 1e-7, 1.0 - 1e-7)
            return 0.5 * jnp.log((1.0 + t) / (1.0 - t))

        def clamp_abs(t, eps):
            return jnp.where(t >= 0, jnp.maximum(t, eps), jnp.minimum(t, -eps))

        def lam(t):
            return 2.0 / jnp.maximum(1.0 - C * jnp.sum(t * t, -1, keepdims=True), EPS)

        def mob_half(t):
            tn = norm(t)
            return jnp.tanh(0.5 * artanh(SQRT_C * tn)) * t / (tn * SQRT_C)

        def midpoint2(p1, p2, w1, w2):
            l1, l2 = lam(p1), lam(p2)
            den = clamp_abs(w1 * (l1 - 1.0) + w2 * (l2 - 1.0), 1e-10)
            return mob_half((w1 * l1 * p1 + w2 * l2 * p2) / den)

        def logmap0(t):
            tn = norm(t)
            return artanh(SQRT_C * tn) * t / (tn * SQRT_C)

        def expmap0(u):
            un = norm(u)
            return jnp.tanh(SQRT_C * un) * u / (un * SQRT_C)

        def project(t):
            mx = (1.0 - BALL_EPS) / SQRT_C
            tn = norm(t)
            return jnp.where(tn > mx, t / tn * mx, t)

        l = lam(x)
        sup = mob_half((adj @ (l * x)) / clamp_abs(adj @ (l - 1.0), 1e-10))
        sup = midpoint2(sup, h0, 1.0 - ALPHA, ALPHA)
        res = sup
        v = logmap0(sup) @ W.T + b
        lin = project(expmap0(v))
        return project(midpoint2(lin, res, THETA, 1.0 - THETA))

    ref = reference(x, adj, h_init, W, b)
    err = float(jnp.max(jnp.abs(out - ref)))

    assert out.shape == (N, D)
    assert bool(jnp.all(jnp.isfinite(out)))
    assert err < 5e-2, f"max |kernel - reference| too large: {err}"
    print("KERNEL_OK")
</pallas_src>

<mosaic_0001>
module attributes {stable_mosaic.version = 11 : i64} {
  func.func @kernel(%arg0: i32, %arg1: i32, %arg2: memref<256x128xbf16, #tpu.memory_space<vmem>>, %arg3: memref<128x256xbf16, #tpu.memory_space<vmem>>, %arg4: memref<128x128xf32, #tpu.memory_space<vmem>>, %arg5: memref<128x128xf32, #tpu.memory_space<vmem>>, %arg6: memref<1x128xf32, #tpu.memory_space<vmem>>, %arg7: memref<128x128xf32, #tpu.memory_space<vmem>>, %arg8: memref<128x128xf32, #tpu.memory_space<vmem>>) attributes {dimension_semantics = [#tpu.dimension_semantics<parallel>, #tpu.dimension_semantics<arbitrary>], iteration_bounds = array<i64: 2, 1>, scalar_prefetch = 0 : i64, scratch_operands = 1 : i64, tpu.core_type = #tpu.core_type<tc>, window_params = [{pipeline_mode = #tpu.pipeline_mode<synchronous>, transform_indices = @transform_0, window_bounds = array<i64: 256, 128>}, {transform_indices = @transform_1, window_bounds = array<i64: 128, 256>}, {transform_indices = @transform_2, window_bounds = array<i64: 128, 128>}, {pipeline_mode = #tpu.pipeline_mode<synchronous>, transform_indices = @transform_3, window_bounds = array<i64: 128, 128>}, {pipeline_mode = #tpu.pipeline_mode<synchronous>, transform_indices = @transform_4, window_bounds = array<i64: 1, 128>}, {transform_indices = @transform_5, window_bounds = array<i64: 128, 128>}]} {
    %c0_i32 = arith.constant 0 : i32
    %0 = arith.cmpi eq, %arg1, %c0_i32 : i32
    %1 = arith.extui %0 : i1 to i32
    %c0_i32_0 = arith.constant 0 : i32
    %2 = arith.cmpi ne, %1, %c0_i32_0 : i32
    scf.if %2 {
      %cst_9 = arith.constant 0.000000e+00 : f32
      %15 = vector.broadcast %cst_9 : f32 to vector<128x128xf32>
      %c0_10 = arith.constant 0 : index
      %c0_11 = arith.constant 0 : index
      %16 = vector.load %arg8[%c0_10, %c0_11] : memref<128x128xf32, #tpu.memory_space<vmem>>, vector<128x128xf32>
      tpu.vector_store %arg8[%c0_10, %c0_11], %15 {strides = array<i32>} : memref<128x128xf32, #tpu.memory_space<vmem>>, vector<128x128xf32>,
    } else {
    }
    %c256_i32 = arith.constant 256 : i32
    %3 = arith.muli %arg1, %c256_i32 : i32
    %4 = tpu.assume_multiple %3, 128 : i32
    %5 = arith.index_cast %4 : i32 to index
    %c0 = arith.constant 0 : index
    %6 = vector.load %arg2[%5, %c0] : memref<256x128xbf16, #tpu.memory_space<vmem>>, vector<256x128xbf16>
    %c0_1 = arith.constant 0 : index
    %c0_2 = arith.constant 0 : index
    %7 = vector.load %arg8[%c0_1, %c0_2] : memref<128x128xf32, #tpu.memory_space<vmem>>, vector<128x128xf32>
    %c0_3 = arith.constant 0 : index
    %c0_4 = arith.constant 0 : index
    %8 = vector.load %arg3[%c0_3, %c0_4] : memref<128x256xbf16, #tpu.memory_space<vmem>>, vector<128x256xbf16>
    %cst = arith.constant dense<0.000000e+00> : vector<128x128xf32>
    %9 = tpu.matmul %8, %6, %cst {dimension_numbers = #tpu.dot_dimension_numbers<[1], [0], [0], [1], [0, 0, 1, 1], [], []>} : vector<128x256xbf16>, vector<256x128xbf16>, vector<128x128xf32> -> vector<128x128xf32>
    %10 = arith.addf %7, %9 : vector<128x128xf32>
    %c0_5 = arith.constant 0 : index
    %c0_6 = arith.constant 0 : index
    %11 = vector.load %arg8[%c0_5, %c0_6] : memref<128x128xf32, #tpu.memory_space<vmem>>, vector<128x128xf32>
    tpu.vector_store %arg8[%c0_5, %c0_6], %10 {strides = array<i32>} : memref<128x128xf32, #tpu.memory_space<vmem>>, vector<128x128xf32>,
    %c0_i32_7 = arith.constant 0 : i32
    %12 = arith.cmpi eq, %arg1, %c0_i32_7 : i32
    %13 = arith.extui %12 : i1 to i32
    %c0_i32_8 = arith.constant 0 : i32
    %14 = arith.cmpi ne, %13, %c0_i32_8 : i32
    scf.if %14 {
      %c0_9 = arith.constant 0 : index
      %c0_10 = arith.constant 0 : index
      %15 = vector.load %arg8[%c0_9, %c0_10] : memref<128x128xf32, #tpu.memory_space<vmem>>, vector<128x128xf32>
      %16 = tpu.iota {dimensions = array<i32: 1>} : vector<128x128xi32>
      %c32_i32 = arith.constant 32 : i32
      %17 = vector.broadcast %c32_i32 : i32 to vector<128x128xi32>
      %18 = arith.cmpi eq, %16, %17 : vector<128x128xi32>
      %cst_11 = arith.constant 0.000000e+00 : f32
      %19 = vector.broadcast %cst_11 : f32 to vector<128x128xf32>
      %20 = arith.select %18, %19, %15 : vector<128x128xi1>, vector<128x128xf32>
      %cst_12 = arith.constant 0.000000e+00 : f32
      %21 = vector.broadcast %cst_12 : f32 to vector<128x128xf32>
      %22 = arith.select %18, %15, %21 : vector<128x128xi1>, vector<128x128xf32>
      %cst_13 = arith.constant dense<0.000000e+00> : vector<128xf32>
      %23 = vector.multi_reduction <add>, %22, %cst_13 [1] : vector<128x128xf32> to vector<128xf32>
      %24 = vector.shape_cast %23 : vector<128xf32> to vector<128x1xf32>
      %cst_14 = arith.constant 0.000000e+00 : f32
      %25 = vector.broadcast %cst_14 : f32 to vector<128x1xf32>
      %26 = arith.cmpf oge, %24, %25 : vector<128x1xf32>
      %cst_15 = arith.constant 1.000000e-10 : f32
      %27 = vector.broadcast %cst_15 : f32 to vector<128x1xf32>
      %28 = arith.maximumf %24, %27 : vector<128x1xf32>
      %cst_16 = arith.constant -1.000000e-10 : f32
      %29 = vector.broadcast %cst_16 : f32 to vector<128x1xf32>
      %30 = arith.minimumf %24, %29 : vector<128x1xf32>
      %31 = arith.select %26, %28, %30 : vector<128x1xi1>, vector<128x1xf32>
      %32 = vector.broadcast %31 : vector<128x1xf32> to vector<128x128xf32>
      %33 = arith.divf %20, %32 : vector<128x128xf32>
      %34 = arith.mulf %33, %33 : vector<128x128xf32>
      %cst_17 = arith.constant dense<0.000000e+00> : vector<128xf32>
      %35 = vector.multi_reduction <add>, %34, %cst_17 [1] : vector<128x128xf32> to vector<128xf32>
      %36 = vector.shape_cast %35 : vector<128xf32> to vector<128x1xf32>
      %37 = math.sqrt %36 : vector<128x1xf32>
      %cst_18 = arith.constant 1.000000e-15 : f32
      %38 = vector.broadcast %cst_18 : f32 to vector<128x1xf32>
      %39 = arith.maximumf %37, %38 : vector<128x1xf32>
      %cst_19 = arith.constant 1.000000e+00 : f32
      %40 = vector.broadcast %cst_19 : f32 to vector<128x1xf32>
      %41 = arith.mulf %40, %39 : vector<128x1xf32>
      %cst_20 = arith.constant -0.99999988 : f32
      %cst_21 = arith.constant 0.99999988 : f32
      %42 = vector.broadcast %cst_20 : f32 to vector<128x1xf32>
      %43 = arith.maximumf %42, %41 : vector<128x1xf32>
      %44 = vector.broadcast %cst_21 : f32 to vector<128x1xf32>
      %45 = arith.minimumf %44, %43 : vector<128x1xf32>
      %cst_22 = arith.constant 1.000000e+00 : f32
      %46 = vector.broadcast %cst_22 : f32 to vector<128x1xf32>
      %47 = arith.addf %46, %45 : vector<128x1xf32>
      %cst_23 = arith.constant 1.000000e+00 : f32
      %48 = vector.broadcast %cst_23 : f32 to vector<128x1xf32>
      %49 = arith.subf %48, %45 : vector<128x1xf32>
      %50 = arith.divf %47, %49 : vector<128x1xf32>
      %51 = math.log %50 : vector<128x1xf32>
      %cst_24 = arith.constant 5.000000e-01 : f32
      %52 = vector.broadcast %cst_24 : f32 to vector<128x1xf32>
      %53 = arith.mulf %52, %51 : vector<128x1xf32>
      %cst_25 = arith.constant 5.000000e-01 : f32
      %54 = vector.broadcast %cst_25 : f32 to vector<128x1xf32>
      %55 = arith.mulf %54, %53 : vector<128x1xf32>
      %56 = math.tanh %55 : vector<128x1xf32>
      %cst_26 = arith.constant 1.000000e+00 : f32
      %57 = vector.broadcast %cst_26 : f32 to vector<128x1xf32>
      %58 = arith.mulf %56, %57 : vector<128x1xf32>
      %59 = arith.divf %58, %39 : vector<128x1xf32>
      %60 = vector.broadcast %59 : vector<128x1xf32> to vector<128x128xf32>
      %61 = arith.mulf %33, %60 : vector<128x128xf32>
      %cst_27 = arith.constant 1.000000e-15 : f32
      %62 = vector.broadcast %cst_27 : f32 to vector<128x1xf32>
      %63 = arith.maximumf %58, %62 : vector<128x1xf32>
      %c0_28 = arith.constant 0 : index
      %c0_29 = arith.constant 0 : index
      %64 = vector.load %arg4[%c0_28, %c0_29] : memref<128x128xf32, #tpu.memory_space<vmem>>, vector<128x128xf32>
      %65 = arith.mulf %64, %64 : vector<128x128xf32>
      %cst_30 = arith.constant dense<0.000000e+00> : vector<128xf32>
      %66 = vector.multi_reduction <add>, %65, %cst_30 [1] : vector<128x128xf32> to vector<128xf32>
      %67 = vector.shape_cast %66 : vector<128xf32> to vector<128x1xf32>
      %68 = math.sqrt %67 : vector<128x1xf32>
      %cst_31 = arith.constant 1.000000e-15 : f32
      %69 = vector.broadcast %cst_31 : f32 to vector<128x1xf32>
      %70 = arith.maximumf %68, %69 : vector<128x1xf32>
      %cst_32 = arith.constant 1.000000e+00 : f32
      %71 = vector.broadcast %cst_32 : f32 to vector<128x1xf32>
      %72 = arith.mulf %71, %63 : vector<128x1xf32>
      %73 = arith.mulf %72, %63 : vector<128x1xf32>
      %cst_33 = arith.constant 1.000000e+00 : f32
      %74 = vector.broadcast %cst_33 : f32 to vector<128x1xf32>
      %75 = arith.subf %74, %73 : vector<128x1xf32>
      %cst_34 = arith.constant 1.000000e-15 : f32
      %76 = vector.broadcast %cst_34 : f32 to vector<128x1xf32>
      %77 = arith.maximumf %75, %76 : vector<128x1xf32>
      %cst_35 = arith.constant 2.000000e+00 : f32
      %78 = vector.broadcast %cst_35 : f32 to vector<128x1xf32>
      %79 = arith.divf %78, %77 : vector<128x1xf32>
      %cst_36 = arith.constant 1.000000e+00 : f32
      %80 = vector.broadcast %cst_36 : f32 to vector<128x1xf32>
      %81 = arith.mulf %80, %70 : vector<128x1xf32>
      %82 = arith.mulf %81, %70 : vector<128x1xf32>
      %cst_37 = arith.constant 1.000000e+00 : f32
      %83 = vector.broadcast %cst_37 : f32 to vector<128x1xf32>
      %84 = arith.subf %83, %82 : vector<128x1xf32>
      %cst_38 = arith.constant 1.000000e-15 : f32
      %85 = vector.broadcast %cst_38 : f32 to vector<128x1xf32>
      %86 = arith.maximumf %84, %85 : vector<128x1xf32>
      %cst_39 = arith.constant 2.000000e+00 : f32
      %87 = vector.broadcast %cst_39 : f32 to vector<128x1xf32>
      %88 = arith.divf %87, %86 : vector<128x1xf32>
      %cst_40 = arith.constant 1.000000e+00 : f32
      %89 = vector.broadcast %cst_40 : f32 to vector<128x1xf32>
      %90 = arith.subf %79, %89 : vector<128x1xf32>
      %cst_41 = arith.constant 0.899999976 : f32
      %91 = vector.broadcast %cst_41 : f32 to vector<128x1xf32>
      %92 = arith.mulf %91, %90 : vector<128x1xf32>
      %cst_42 = arith.constant 1.000000e+00 : f32
      %93 = vector.broadcast %cst_42 : f32 to vector<128x1xf32>
      %94 = arith.subf %88, %93 : vector<128x1xf32>
      %cst_43 = arith.constant 1.000000e-01 : f32
      %95 = vector.broadcast %cst_43 : f32 to vector<128x1xf32>
      %96 = arith.mulf %95, %94 : vector<128x1xf32>
      %97 = arith.addf %92, %96 : vector<128x1xf32>
      %cst_44 = arith.constant 0.000000e+00 : f32
      %98 = vector.broadcast %cst_44 : f32 to vector<128x1xf32>
      %99 = arith.cmpf oge, %97, %98 : vector<128x1xf32>
      %cst_45 = arith.constant 1.000000e-10 : f32
      %100 = vector.broadcast %cst_45 : f32 to vector<128x1xf32>
      %101 = arith.maximumf %97, %100 : vector<128x1xf32>
      %cst_46 = arith.constant -1.000000e-10 : f32
      %102 = vector.broadcast %cst_46 : f32 to vector<128x1xf32>
      %103 = arith.minimumf %97, %102 : vector<128x1xf32>
      %104 = arith.select %99, %101, %103 : vector<128x1xi1>, vector<128x1xf32>
      %cst_47 = arith.constant 0.899999976 : f32
      %105 = vector.broadcast %cst_47 : f32 to vector<128x1xf32>
      %106 = arith.mulf %105, %79 : vector<128x1xf32>
      %107 = vector.broadcast %106 : vector<128x1xf32> to vector<128x128xf32>
      %108 = arith.mulf %107, %61 : vector<128x128xf32>
      %cst_48 = arith.constant 1.000000e-01 : f32
      %109 = vector.broadcast %cst_48 : f32 to vector<128x1xf32>
      %110 = arith.mulf %109, %88 : vector<128x1xf32>
      %111 = vector.broadcast %110 : vector<128x1xf32> to vector<128x128xf32>
      %112 = arith.mulf %111, %64 : vector<128x128xf32>
      %113 = arith.addf %108, %112 : vector<128x128xf32>
      %114 = vector.broadcast %104 : vector<128x1xf32> to vector<128x128xf32>
      %115 = arith.divf %113, %114 : vector<128x128xf32>
      %116 = arith.mulf %115, %115 : vector<128x128xf32>
      %cst_49 = arith.constant dense<0.000000e+00> : vector<128xf32>
      %117 = vector.multi_reduction <add>, %116, %cst_49 [1] : vector<128x128xf32> to vector<128xf32>
      %118 = vector.shape_cast %117 : vector<128xf32> to vector<128x1xf32>
      %119 = math.sqrt %118 : vector<128x1xf32>
      %cst_50 = arith.constant 1.000000e-15 : f32
      %120 = vector.broadcast %cst_50 : f32 to vector<128x1xf32>
      %121 = arith.maximumf %119, %120 : vector<128x1xf32>
      %cst_51 = arith.constant 1.000000e+00 : f32
      %122 = vector.broadcast %cst_51 : f32 to vector<128x1xf32>
      %123 = arith.mulf %122, %121 : vector<128x1xf32>
      %cst_52 = arith.constant -0.99999988 : f32
      %cst_53 = arith.constant 0.99999988 : f32
      %124 = vector.broadcast %cst_52 : f32 to vector<128x1xf32>
      %125 = arith.maximumf %124, %123 : vector<128x1xf32>
      %126 = vector.broadcast %cst_53 : f32 to vector<128x1xf32>
      %127 = arith.minimumf %126, %125 : vector<128x1xf32>
      %cst_54 = arith.constant 1.000000e+00 : f32
      %128 = vector.broadcast %cst_54 : f32 to vector<128x1xf32>
      %129 = arith.addf %128, %127 : vector<128x1xf32>
      %cst_55 = arith.constant 1.000000e+00 : f32
      %130 = vector.broadcast %cst_55 : f32 to vector<128x1xf32>
      %131 = arith.subf %130, %127 : vector<128x1xf32>
      %132 = arith.divf %129, %131 : vector<128x1xf32>
      %133 = math.log %132 : vector<128x1xf32>
      %cst_56 = arith.constant 5.000000e-01 : f32
      %134 = vector.broadcast %cst_56 : f32 to vector<128x1xf32>
      %135 = arith.mulf %134, %133 : vector<128x1xf32>
      %cst_57 = arith.constant 5.000000e-01 : f32
      %136 = vector.broadcast %cst_57 : f32 to vector<128x1xf32>
      %137 = arith.mulf %136, %135 : vector<128x1xf32>
      %138 = math.tanh %137 : vector<128x1xf32>
      %cst_58 = arith.constant 1.000000e+00 : f32
      %139 = vector.broadcast %cst_58 : f32 to vector<128x1xf32>
      %140 = arith.mulf %138, %139 : vector<128x1xf32>
      %141 = arith.divf %140, %121 : vector<128x1xf32>
      %142 = vector.broadcast %141 : vector<128x1xf32> to vector<128x128xf32>
      %143 = arith.mulf %115, %142 : vector<128x128xf32>
      %cst_59 = arith.constant 1.000000e-15 : f32
      %144 = vector.broadcast %cst_59 : f32 to vector<128x1xf32>
      %145 = arith.maximumf %140, %144 : vector<128x1xf32>
      %cst_60 = arith.constant 1.000000e+00 : f32
      %146 = vector.broadcast %cst_60 : f32 to vector<128x1xf32>
      %147 = arith.mulf %146, %145 : vector<128x1xf32>
      %cst_61 = arith.constant -0.99999988 : f32
      %cst_62 = arith.constant 0.99999988 : f32
      %148 = vector.broadcast %cst_61 : f32 to vector<128x1xf32>
      %149 = arith.maximumf %148, %147 : vector<128x1xf32>
      %150 = vector.broadcast %cst_62 : f32 to vector<128x1xf32>
      %151 = arith.minimumf %150, %149 : vector<128x1xf32>
      %cst_63 = arith.constant 1.000000e+00 : f32
      %152 = vector.broadcast %cst_63 : f32 to vector<128x1xf32>
      %153 = arith.addf %152, %151 : vector<128x1xf32>
      %cst_64 = arith.constant 1.000000e+00 : f32
      %154 = vector.broadcast %cst_64 : f32 to vector<128x1xf32>
      %155 = arith.subf %154, %151 : vector<128x1xf32>
      %156 = arith.divf %153, %155 : vector<128x1xf32>
      %157 = math.log %156 : vector<128x1xf32>
      %cst_65 = arith.constant 5.000000e-01 : f32
      %158 = vector.broadcast %cst_65 : f32 to vector<128x1xf32>
      %159 = arith.mulf %158, %157 : vector<128x1xf32>
      %cst_66 = arith.constant 1.000000e+00 : f32
      %160 = vector.broadcast %cst_66 : f32 to vector<128x1xf32>
      %161 = arith.mulf %160, %145 : vector<128x1xf32>
      %162 = arith.divf %159, %161 : vector<128x1xf32>
      %163 = vector.broadcast %162 : vector<128x1xf32> to vector<128x128xf32>
      %164 = arith.mulf %143, %163 : vector<128x128xf32>
      %c0_67 = arith.constant 0 : index
      %c0_68 = arith.constant 0 : index
      %165 = vector.load %arg5[%c0_67, %c0_68] : memref<128x128xf32, #tpu.memory_space<vmem>>, vector<128x128xf32>
      %cst_69 = arith.constant dense<0.000000e+00> : vector<128x128xf32>
      %166 = tpu.matmul %164, %165, %cst_69 {dimension_numbers = #tpu.dot_dimension_numbers<[1], [0], [0], [1], [0, 0, 1, 1], [], []>} : vector<128x128xf32>, vector<128x128xf32>, vector<128x128xf32> -> vector<128x128xf32>
      %c0_70 = arith.constant 0 : index
      %c0_71 = arith.constant 0 : index
      %167 = vector.load %arg6[%c0_70, %c0_71] : memref<1x128xf32, #tpu.memory_space<vmem>>, vector<1x128xf32>
      %168 = vector.broadcast %167 : vector<1x128xf32> to vector<128x128xf32>
      %169 = arith.addf %166, %168 : vector<128x128xf32>
      %170 = arith.mulf %169, %169 : vector<128x128xf32>
      %cst_72 = arith.constant dense<0.000000e+00> : vector<128xf32>
      %171 = vector.multi_reduction <add>, %170, %cst_72 [1] : vector<128x128xf32> to vector<128xf32>
      %172 = vector.shape_cast %171 : vector<128xf32> to vector<128x1xf32>
      %173 = math.sqrt %172 : vector<128x1xf32>
      %cst_73 = arith.constant 1.000000e-15 : f32
      %174 = vector.broadcast %cst_73 : f32 to vector<128x1xf32>
      %175 = arith.maximumf %173, %174 : vector<128x1xf32>
      %cst_74 = arith.constant 1.000000e+00 : f32
      %176 = vector.broadcast %cst_74 : f32 to vector<128x1xf32>
      %177 = arith.mulf %176, %175 : vector<128x1xf32>
      %178 = math.tanh %177 : vector<128x1xf32>
      %cst_75 = arith.constant 1.000000e+00 : f32
      %179 = vector.broadcast %cst_75 : f32 to vector<128x1xf32>
      %180 = arith.mulf %178, %179 : vector<128x1xf32>
      %181 = arith.divf %180, %175 : vector<128x1xf32>
      %182 = vector.broadcast %181 : vector<128x1xf32> to vector<128x128xf32>
      %183 = arith.mulf %169, %182 : vector<128x128xf32>
      %cst_76 = arith.constant 1.000000e-15 : f32
      %184 = vector.broadcast %cst_76 : f32 to vector<128x1xf32>
      %185 = arith.maximumf %180, %184 : vector<128x1xf32>
      %cst_77 = arith.constant 0.999989986 : f32
      %186 = vector.broadcast %cst_77 : f32 to vector<128x1xf32>
      %187 = arith.cmpf ogt, %185, %186 : vector<128x1xf32>
      %cst_78 = arith.constant 0.999989986 : f32
      %188 = vector.broadcast %cst_78 : f32 to vector<128x1xf32>
      %189 = arith.divf %188, %185 : vector<128x1xf32>
      %cst_79 = arith.constant 1.000000e+00 : f32
      %190 = vector.broadcast %cst_79 : f32 to vector<128x1xf32>
      %191 = arith.select %187, %189, %190 : vector<128x1xi1>, vector<128x1xf32>
      %192 = vector.broadcast %191 : vector<128x1xf32> to vector<128x128xf32>
      %193 = arith.mulf %183, %192 : vector<128x128xf32>
      %cst_80 = arith.constant 0.999989986 : f32
      %194 = vector.broadcast %cst_80 : f32 to vector<128x1xf32>
      %195 = arith.select %187, %194, %185 : vector<128x1xi1>, vector<128x1xf32>
      %cst_81 = arith.constant 1.000000e+00 : f32
      %196 = vector.broadcast %cst_81 : f32 to vector<128x1xf32>
      %197 = arith.mulf %196, %195 : vector<128x1xf32>
      %198 = arith.mulf %197, %195 : vector<128x1xf32>
      %cst_82 = arith.constant 1.000000e+00 : f32
      %199 = vector.broadcast %cst_82 : f32 to vector<128x1xf32>
      %200 = arith.subf %199, %198 : vector<128x1xf32>
      %cst_83 = arith.constant 1.000000e-15 : f32
      %201 = vector.broadcast %cst_83 : f32 to vector<128x1xf32>
      %202 = arith.maximumf %200, %201 : vector<128x1xf32>
      %cst_84 = arith.constant 2.000000e+00 : f32
      %203 = vector.broadcast %cst_84 : f32 to vector<128x1xf32>
      %204 = arith.divf %203, %202 : vector<128x1xf32>
      %cst_85 = arith.constant 1.000000e+00 : f32
      %205 = vector.broadcast %cst_85 : f32 to vector<128x1xf32>
      %206 = arith.mulf %205, %145 : vector<128x1xf32>
      %207 = arith.mulf %206, %145 : vector<128x1xf32>
      %cst_86 = arith.constant 1.000000e+00 : f32
      %208 = vector.broadcast %cst_86 : f32 to vector<128x1xf32>
      %209 = arith.subf %208, %207 : vector<128x1xf32>
      %cst_87 = arith.constant 1.000000e-15 : f32
      %210 = vector.broadcast %cst_87 : f32 to vector<128x1xf32>
      %211 = arith.maximumf %209, %210 : vector<128x1xf32>
      %cst_88 = arith.constant 2.000000e+00 : f32
      %212 = vector.broadcast %cst_88 : f32 to vector<128x1xf32>
      %213 = arith.divf %212, %211 : vector<128x1xf32>
      %cst_89 = arith.constant 1.000000e+00 : f32
      %214 = vector.broadcast %cst_89 : f32 to vector<128x1xf32>
      %215 = arith.subf %204, %214 : vector<128x1xf32>
      %cst_90 = arith.constant 0.223143548 : f32
      %216 = vector.broadcast %cst_90 : f32 to vector<128x1xf32>
      %217 = arith.mulf %216, %215 : vector<128x1xf32>
      %cst_91 = arith.constant 1.000000e+00 : f32
      %218 = vector.broadcast %cst_91 : f32 to vector<128x1xf32>
      %219 = arith.subf %213, %218 : vector<128x1xf32>
      %cst_92 = arith.constant 0.776856422 : f32
      %220 = vector.broadcast %cst_92 : f32 to vector<128x1xf32>
      %221 = arith.mulf %220, %219 : vector<128x1xf32>
      %222 = arith.addf %217, %221 : vector<128x1xf32>
      %cst_93 = arith.constant 0.000000e+00 : f32
      %223 = vector.broadcast %cst_93 : f32 to vector<128x1xf32>
      %224 = arith.cmpf oge, %222, %223 : vector<128x1xf32>
      %cst_94 = arith.constant 1.000000e-10 : f32
      %225 = vector.broadcast %cst_94 : f32 to vector<128x1xf32>
      %226 = arith.maximumf %222, %225 : vector<128x1xf32>
      %cst_95 = arith.constant -1.000000e-10 : f32
      %227 = vector.broadcast %cst_95 : f32 to vector<128x1xf32>
      %228 = arith.minimumf %222, %227 : vector<128x1xf32>
      %229 = arith.select %224, %226, %228 : vector<128x1xi1>, vector<128x1xf32>
      %cst_96 = arith.constant 0.223143548 : f32
      %230 = vector.broadcast %cst_96 : f32 to vector<128x1xf32>
      %231 = arith.mulf %230, %204 : vector<128x1xf32>
      %232 = vector.broadcast %231 : vector<128x1xf32> to vector<128x128xf32>
      %233 = arith.mulf %232, %193 : vector<128x128xf32>
      %cst_97 = arith.constant 0.776856422 : f32
      %234 = vector.broadcast %cst_97 : f32 to vector<128x1xf32>
      %235 = arith.mulf %234, %213 : vector<128x1xf32>
      %236 = vector.broadcast %235 : vector<128x1xf32> to vector<128x128xf32>
      %237 = arith.mulf %236, %143 : vector<128x128xf32>
      %238 = arith.addf %233, %237 : vector<128x128xf32>
      %239 = vector.broadcast %229 : vector<128x1xf32> to vector<128x128xf32>
      %240 = arith.divf %238, %239 : vector<128x128xf32>
      %241 = arith.mulf %240, %240 : vector<128x128xf32>
      %cst_98 = arith.constant dense<0.000000e+00> : vector<128xf32>
      %242 = vector.multi_reduction <add>, %241, %cst_98 [1] : vector<128x128xf32> to vector<128xf32>
      %243 = vector.shape_cast %242 : vector<128xf32> to vector<128x1xf32>
      %244 = math.sqrt %243 : vector<128x1xf32>
      %cst_99 = arith.constant 1.000000e-15 : f32
      %245 = vector.broadcast %cst_99 : f32 to vector<128x1xf32>
      %246 = arith.maximumf %244, %245 : vector<128x1xf32>
      %cst_100 = arith.constant 1.000000e+00 : f32
      %247 = vector.broadcast %cst_100 : f32 to vector<128x1xf32>
      %248 = arith.mulf %247, %246 : vector<128x1xf32>
      %cst_101 = arith.constant -0.99999988 : f32
      %cst_102 = arith.constant 0.99999988 : f32
      %249 = vector.broadcast %cst_101 : f32 to vector<128x1xf32>
      %250 = arith.maximumf %249, %248 : vector<128x1xf32>
      %251 = vector.broadcast %cst_102 : f32 to vector<128x1xf32>
      %252 = arith.minimumf %251, %250 : vector<128x1xf32>
      %cst_103 = arith.constant 1.000000e+00 : f32
      %253 = vector.broadcast %cst_103 : f32 to vector<128x1xf32>
      %254 = arith.addf %253, %252 : vector<128x1xf32>
      %cst_104 = arith.constant 1.000000e+00 : f32
      %255 = vector.broadcast %cst_104 : f32 to vector<128x1xf32>
      %256 = arith.subf %255, %252 : vector<128x1xf32>
      %257 = arith.divf %254, %256 : vector<128x1xf32>
      %258 = math.log %257 : vector<128x1xf32>
      %cst_105 = arith.constant 5.000000e-01 : f32
      %259 = vector.broadcast %cst_105 : f32 to vector<128x1xf32>
      %260 = arith.mulf %259, %258 : vector<128x1xf32>
      %cst_106 = arith.constant 5.000000e-01 : f32
      %261 = vector.broadcast %cst_106 : f32 to vector<128x1xf32>
      %262 = arith.mulf %261, %260 : vector<128x1xf32>
      %263 = math.tanh %262 : vector<128x1xf32>
      %cst_107 = arith.constant 1.000000e+00 : f32
      %264 = vector.broadcast %cst_107 : f32 to vector<128x1xf32>
      %265 = arith.mulf %263, %264 : vector<128x1xf32>
      %266 = arith.divf %265, %246 : vector<128x1xf32>
      %267 = vector.broadcast %266 : vector<128x1xf32> to vector<128x128xf32>
      %268 = arith.mulf %240, %267 : vector<128x128xf32>
      %cst_108 = arith.constant 1.000000e-15 : f32
      %269 = vector.broadcast %cst_108 : f32 to vector<128x1xf32>
      %270 = arith.maximumf %265, %269 : vector<128x1xf32>
      %cst_109 = arith.constant 0.999989986 : f32
      %271 = vector.broadcast %cst_109 : f32 to vector<128x1xf32>
      %272 = arith.cmpf ogt, %270, %271 : vector<128x1xf32>
      %cst_110 = arith.constant 0.999989986 : f32
      %273 = vector.broadcast %cst_110 : f32 to vector<128x1xf32>
      %274 = arith.divf %273, %270 : vector<128x1xf32>
      %cst_111 = arith.constant 1.000000e+00 : f32
      %275 = vector.broadcast %cst_111 : f32 to vector<128x1xf32>
      %276 = arith.select %272, %274, %275 : vector<128x1xi1>, vector<128x1xf32>
      %277 = vector.broadcast %276 : vector<128x1xf32> to vector<128x128xf32>
      %278 = arith.mulf %268, %277 : vector<128x128xf32>
      %c0_112 = arith.constant 0 : index
      %c0_113 = arith.constant 0 : index
      %279 = vector.load %arg7[%c0_112, %c0_113] : memref<128x128xf32, #tpu.memory_space<vmem>>, vector<128x128xf32>
      tpu.vector_store %arg7[%c0_112, %c0_113], %278 {strides = array<i32>} : memref<128x128xf32, #tpu.memory_space<vmem>>, vector<128x128xf32>,
    } else {
    }
    return
  }
  func.func @transform_0(%arg0: i32, %arg1: i32) -> (i32, i32) {
    %c0_i32 = arith.constant 0 : i32
    %c0_i32_0 = arith.constant 0 : i32
    %c0_i32_1 = arith.constant 0 : i32
    return %c0_i32, %c0_i32_0 : i32, i32
  }
  func.func @transform_1(%arg0: i32, %arg1: i32) -> (i32, i32) {
    %c0_i32 = arith.constant 0 : i32
    return %arg0, %arg1 : i32, i32
  }
  func.func @transform_2(%arg0: i32, %arg1: i32) -> (i32, i32) {
    %c0_i32 = arith.constant 0 : i32
    %c0_i32_0 = arith.constant 0 : i32
    return %arg0, %c0_i32 : i32, i32
  }
  func.func @transform_3(%arg0: i32, %arg1: i32) -> (i32, i32) {
    %c0_i32 = arith.constant 0 : i32
    %c0_i32_0 = arith.constant 0 : i32
    %c0_i32_1 = arith.constant 0 : i32
    return %c0_i32, %c0_i32_0 : i32, i32
  }
  func.func @transform_4(%arg0: i32, %arg1: i32) -> (i32, i32) {
    %c0_i32 = arith.constant 0 : i32
    %c0_i32_0 = arith.constant 0 : i32
    %c0_i32_1 = arith.constant 0 : i32
    return %c0_i32, %c0_i32_0 : i32, i32
  }
  func.func @transform_5(%arg0: i32, %arg1: i32) -> (i32, i32) {
    %c0_i32 = arith.constant 0 : i32
    %c0_i32_0 = arith.constant 0 : i32
    return %arg0, %c0_i32 : i32, i32
  }
}

</mosaic_0001>

<llo_original>
// kernel: tpu_custom_call.1
$region0: #{tpu_custom_call.1}
  #allocation0 [shape = 'u32[]', space=smem, size = 0x4, offset = 0x4, fixed_abs, tag = 'smem constant byte address 0x4 - core index']
  #allocation1 [shape = 'u32[144,128]{1,0:T(1,128)}', space=vmem, size = 0x12000, scoped, tag = 'internal scratch']
  #allocation2 [shape = 'f32[128,128]{1,0:T(8,128)}', space=vmem, size = 0x10000, scoped, tag = 'scratch operand']
  %s0 = inlined_call_operand.hbm [shape: bf16[256,128], index: 0, kind: input, shape index: {}]
  %s1 = inlined_call_operand.hbm [shape: bf16[256,256], index: 1, kind: input, shape index: {}]
  %s2 = inlined_call_operand.hbm [shape: f32[256,128], index: 2, kind: input, shape index: {}]
  %s3 = inlined_call_operand.hbm [shape: f32[128,128], index: 3, kind: input, shape index: {}]
  %s4 = inlined_call_operand.vmem [shape: f32[1,128], index: 4, kind: input, shape index: {}]
  %s5 = inlined_call_operand.hbm [shape: f32[256,128], index: 5, kind: output, shape index: {}]
  %s6 = sld [smem:[#allocation0]]
  $region77: #{tpu_custom_call.1} parent=0
    _
  %s8 = ssub.s32 1, %s6
  %s9 = scalar_select 0, %s8, %s6
  $region1: #{tpu_custom_call.1} parent=0
    #allocation3 [shape = 'u8[65536]{0}', space=vmem, size = 0x10000, scoped, tag = 'input window, operand 0, single buffered']
    #allocation4 [shape = 's32[2]{0}', space=sflag, size = 0x8, scoped, tag = 'scoped memory for tpu_custom_call.1']
    #allocation5 [shape = 's32[2]{0}', space=sflag, size = 0x8, scoped, tag = 'scoped memory for tpu_custom_call.1']
    #allocation6 [shape = 'u8[131072]{0}', space=vmem, size = 0x20000, scoped, tag = 'input window, operand 1']
    #allocation7 [shape = 's32[2]{0}', space=sflag, size = 0x8, scoped, tag = 'scoped memory for tpu_custom_call.1']
    #allocation8 [shape = 'u8[131072]{0}', space=vmem, size = 0x20000, scoped, tag = 'input window, operand 2']
    #allocation9 [shape = 'u8[65536]{0}', space=vmem, size = 0x10000, scoped, tag = 'input window, operand 3, single buffered']
    #allocation10 [shape = 's32[1]{0}', space=sflag, size = 0x4, scoped, tag = 'scoped memory for tpu_custom_call.1']
    #allocation11 [shape = 'u8[131072]{0}', space=vmem, size = 0x20000, scoped, tag = 'output window, operand 0']
    %10 = vsyncpa [#allocation4], 0
    %11 = vsyncpa [#allocation7], 0
    %s12 = scalar_lea.sflag [#allocation7], 1
    %13 = vsyncpa %s12, 0
    %14 = vsyncpa [#allocation10], 0
    %15 = vsyncpa [#allocation5], 0
    %s16 = scalar_lea.sflag [#allocation5], 1
    %17 = vsyncpa %s16, 0
    loop: start=0, step=1, limit=4
    $region2: #{tpu_custom_call.1} parent=1 // loop_pre_header
      _
    $region3: #{tpu_custom_call.1} parent=1 // loop_header
      %s19 = sphi 0, %s23
      %p20 = scmp.ge.s32.totalorder %s19, 4
      %s26 = sphi 0, %s38
      %s27 = sphi 0, %s34
      %s28 = sphi 0, %s26
      %s29 = sphi 0, %s27
      %s30 = sphi 0, %s28
      %s31 = sphi 0, %s29
      %s39 = sphi 0, %s39
      %s41 = sphi 0, %s39
      %s42 = sphi 0, %s41
      %s56 = sphi 0, %s42
      %s64 = sphi 0, %s66
      %s67 = sphi 0, %s64
      %s68 = sphi 0, %s67
      %s84 = sphi 0, %s68
      %s90 = sphi 0, %s92
      %s93 = sphi 0, %s90
      %s94 = sphi 0, %s93
      %s110 = sphi 0, %s94
      %s114 = sphi 0, %s114
      %s116 = sphi 0, %s114
      %s117 = sphi 0, %s116
      %s131 = sphi 0, %s117
      %s135 = sphi 0, %s135
      %s137 = sphi 0, %s135
      %s138 = sphi 0, %s137
      %s152 = sphi 0, %s138
      %s158 = sphi 0, %s160
      %s161 = sphi 0, %s158
      %s162 = sphi 0, %s161
      %s178 = sphi 0, %s162
    $region4: #{tpu_custom_call.1} parent=1 // loop_header_branch
      %22 = sbr.rel (%p20) target = $region8
    $region5: #{tpu_custom_call.1} parent=1 // loop_body
      %s24 = ssub.s32 %s19, 1
      %s25 = ssub.s32 %s19, 2
      %s32 = sadd.s32 1, %s27
      %p33 = scmp.ge.s32.totalorder %s32, 1
      %s34 = scalar_select %p33, 0, %s32
      %s35 = sadd.s32 1, %s26
      %s36 = scalar_select %p33, %s35, %s26
      %p37 = scmp.ge.s32.totalorder %s36, 2
      %s38 = scalar_select %p37, 0, %s36
      %s40 = sadd.s32 %s39, 1
      %p43 = scmp.eq.s32.totalorder %s19, 1
      %p44 = scmp.ne.s32.totalorder %s39, %s41
      %p45 = scmp.eq.s32.totalorder %s19, 0
      %p46 = por %p44, %p45
      %p47 = scmp.ne.s32.totalorder %s39, %s41
      %p48 = scmp.eq.s32.totalorder %s24, 1
      %p49 = por %p47, %p48
      %p50 = scmp.ne.s32.totalorder %s41, %s42
      %p51 = scmp.eq.s32.totalorder %s24, 0
      %p52 = por %p50, %p51
      %p53 = scmp.ne.s32.totalorder %s41, %s42
      %p54 = scmp.eq.s32.totalorder %s25, 1
      %p55 = por %p53, %p54
      %p57 = scmp.ne.s32.totalorder %s42, %s56
      %p58 = scmp.eq.s32.totalorder %s25, 0
      %p59 = por %p57, %p58
      %s60 = ssub.s32 %s26, %s38
      %s61 = ssub.s32 %s27, %s34
      %s62 = sor.u32 %s60, %s61
      %p63 = scmp.eq.s32.totalorder %s62, 0
      %s65 = sadd.s32 %s64, 1
      %s66 = scalar_select %p63, %s64, %s65
      %p69 = pneg %p63
      %p70 = scmp.eq.s32.totalorder %s19, 1
      %p71 = por %p69, %p70
      %p72 = scmp.ne.s32.totalorder %s64, %s67
      %p73 = scmp.eq.s32.totalorder %s19, 0
      %p74 = por %p72, %p73
      %p75 = scmp.ne.s32.totalorder %s64, %s67
      %p76 = scmp.eq.s32.totalorder %s24, 1
      %p77 = por %p75, %p76
      %p78 = scmp.ne.s32.totalorder %s67, %s68
      %p79 = scmp.eq.s32.totalorder %s24, 0
      %p80 = por %p78, %p79
      %p81 = scmp.ne.s32.totalorder %s67, %s68
      %p82 = scmp.eq.s32.totalorder %s25, 1
      %p83 = por %p81, %p82
      %p85 = scmp.ne.s32.totalorder %s68, %s84
      %p86 = scmp.eq.s32.totalorder %s25, 0
      %p87 = por %p85, %p86
      %s88 = ssub.s32 %s26, %s38
      %p89 = scmp.eq.s32.totalorder %s88, 0
      %s91 = sadd.s32 %s90, 1
      %s92 = scalar_select %p89, %s90, %s91
      %p95 = pneg %p89
      %p96 = scmp.eq.s32.totalorder %s19, 1
      %p97 = por %p95, %p96
      %p98 = scmp.ne.s32.totalorder %s90, %s93
      %p99 = scmp.eq.s32.totalorder %s19, 0
      %p100 = por %p98, %p99
      %p101 = scmp.ne.s32.totalorder %s90, %s93
      %p102 = scmp.eq.s32.totalorder %s24, 1
      %p103 = por %p101, %p102
      %p104 = scmp.ne.s32.totalorder %s93, %s94
      %p105 = scmp.eq.s32.totalorder %s24, 0
      %p106 = por %p104, %p105
      %p107 = scmp.ne.s32.totalorder %s93, %s94
      %p108 = scmp.eq.s32.totalorder %s25, 1
      %p109 = por %p107, %p108
      %p111 = scmp.ne.s32.totalorder %s94, %s110
      %p112 = scmp.eq.s32.totalorder %s25, 0
      %p113 = por %p111, %p112
      %s115 = sadd.s32 %s114, 1
      %p118 = scmp.eq.s32.totalorder %s19, 1
      %p119 = scmp.ne.s32.totalorder %s114, %s116
      %p120 = scmp.eq.s32.totalorder %s19, 0
      %p121 = por %p119, %p120
      %p122 = scmp.ne.s32.totalorder %s114, %s116
      %p123 = scmp.eq.s32.totalorder %s24, 1
      %p124 = por %p122, %p123
      %p125 = scmp.ne.s32.totalorder %s116, %s117
      %p126 = scmp.eq.s32.totalorder %s24, 0
      %p127 = por %p125, %p126
      %p128 = scmp.ne.s32.totalorder %s116, %s117
      %p129 = scmp.eq.s32.totalorder %s25, 1
      %p130 = por %p128, %p129
      %p132 = scmp.ne.s32.totalorder %s117, %s131
      %p133 = scmp.eq.s32.totalorder %s25, 0
      %p134 = por %p132, %p133
      %s136 = sadd.s32 %s135, 1
      %p139 = scmp.eq.s32.totalorder %s19, 1
      %p140 = scmp.ne.s32.totalorder %s135, %s137
      %p141 = scmp.eq.s32.totalorder %s19, 0
      %p142 = por %p140, %p141
      %p143 = scmp.ne.s32.totalorder %s135, %s137
      %p144 = scmp.eq.s32.totalorder %s24, 1
      %p145 = por %p143, %p144
      %p146 = scmp.ne.s32.totalorder %s137, %s138
      %p147 = scmp.eq.s32.totalorder %s24, 0
      %p148 = por %p146, %p147
      %p149 = scmp.ne.s32.totalorder %s137, %s138
      %p150 = scmp.eq.s32.totalorder %s25, 1
      %p151 = por %p149, %p150
      %p153 = scmp.ne.s32.totalorder %s138, %s152
      %p154 = scmp.eq.s32.totalorder %s25, 0
      %p155 = por %p153, %p154
      %s156 = ssub.s32 %s26, %s38
      %p157 = scmp.eq.s32.totalorder %s156, 0
      %s159 = sadd.s32 %s158, 1
      %s160 = scalar_select %p157, %s158, %s159
      %p163 = pneg %p157
      %p164 = scmp.eq.s32.totalorder %s19, 1
      %p165 = por %p163, %p164
      %p166 = scmp.ne.s32.totalorder %s158, %s161
      %p167 = scmp.eq.s32.totalorder %s19, 0
      %p168 = por %p166, %p167
      %p169 = scmp.ne.s32.totalorder %s158, %s161
      %p170 = scmp.eq.s32.totalorder %s24, 1
      %p171 = por %p169, %p170
      %p172 = scmp.ne.s32.totalorder %s161, %s162
      %p173 = scmp.eq.s32.totalorder %s24, 0
      %p174 = por %p172, %p173
      %p175 = scmp.ne.s32.totalorder %s161, %s162
      %p176 = scmp.eq.s32.totalorder %s25, 1
      %p177 = por %p175, %p176
      %p179 = scmp.ne.s32.totalorder %s162, %s178
      %p180 = scmp.eq.s32.totalorder %s25, 0
      %p181 = por %p179, %p180
      %p182 = scmp.le.s32.totalorder 1, %s19
      %p183 = scmp.lt.s32.totalorder %s19, 3
      %p184 = pnand %p182, %p183
      %p185 = pneg %p184
      // Predicated region
      $region9: #{tpu_custom_call.1} parent=5 // pred_check
        _
      $region10: #{tpu_custom_call.1} parent=5 // pred_check_branch
        %187 = sbr.rel (%p184) target = $region12
      $region11: #{tpu_custom_call.1} parent=5 // pred_region
        %s188 = ssub.s32 %s19, 1
        // Predicated region
        $region13: #{tpu_custom_call.1} parent=11 // pred_check
          %p189 = pneg %p52
        $region14: #{tpu_custom_call.1} parent=11 // pred_check_branch
          %191 = sbr.rel (%p189) target = $region16
        $region15: #{tpu_custom_call.1} parent=11 // pred_region
          %s193 = ssub.s32 2048, 2048
          %194 = vsyncadd [#allocation4], %s193
          %s195 = sshll.u32 [#allocation3], 4
          %s196 = int_to_ptr.vmem [resolvable:$true] %s195
          %201 = dma.hbm_to_vmem [thread:$0]  %s0, 2048, %s196, [#allocation4], 64, 64, 4
        $region16: #{tpu_custom_call.1} parent=11 // pred_fallthru
          _
        // Predicated region
        $region17: #{tpu_custom_call.1} parent=11 // pred_check
          %p202 = pneg %p127
        $region18: #{tpu_custom_call.1} parent=11 // pred_check_branch
          %204 = sbr.rel (%p202) target = $region20
        $region19: #{tpu_custom_call.1} parent=11 // pred_region
          %s206 = ssub.s32 2048, 2048
          %207 = vsyncadd [#allocation10], %s206
          %s208 = sshll.u32 [#allocation9], 4
          %s209 = int_to_ptr.vmem [resolvable:$true] %s208
          %214 = dma.hbm_to_vmem [thread:$0]  %s3, 2048, %s209, [#allocation10], 128, 128, 8
        $region20: #{tpu_custom_call.1} parent=11 // pred_fallthru
          _
        // Predicated region
        $region21: #{tpu_custom_call.1} parent=11 // pred_check
          %p215 = pneg %p148
        $region22: #{tpu_custom_call.1} parent=11 // pred_check_branch
          %217 = sbr.rel (%p215) target = $region24
        $region23: #{tpu_custom_call.1} parent=11 // pred_region
          _
        $region24: #{tpu_custom_call.1} parent=11 // pred_fallthru
          _
      $region12: #{tpu_custom_call.1} parent=5 // pred_fallthru
        _
      %p218 = scmp.lt.s32.totalorder %s19, 2
      // Predicated region
      $region25: #{tpu_custom_call.1} parent=5 // pred_check
        %p219 = pneg %p218
      $region26: #{tpu_custom_call.1} parent=5 // pred_check_branch
        %221 = sbr.rel (%p219) target = $region28
      $region27: #{tpu_custom_call.1} parent=5 // pred_region
        // Predicated region
        $region29: #{tpu_custom_call.1} parent=27 // pred_check
          %p222 = pneg %p74
        $region30: #{tpu_custom_call.1} parent=27 // pred_check_branch
          %224 = sbr.rel (%p222) target = $region32
        $region31: #{tpu_custom_call.1} parent=27 // pred_region
          %s225 = sand.u32 %s19, 1
          %s226 = scalar_lea.sflag [#allocation7], %s225
          %s227 = sand.u32 %s64, 1
          %s228 = smul.addr %s227, 128
          %s229 = scalar_lea.vmem [#allocation6], %s228
          %s230 = smul.u32 16, %s26
          %s231 = smul.u32 2, %s27
          %s233 = ssub.s32 2048, 2048
          %234 = vsyncadd %s226, %s233
          %s235 = smul.addr %s230, 2
          %s236 = sadd.s32 %s231, %s235
          %s237 = smul.addr %s236, 64
          %s238 = scalar_lea.hbm %s1, %s237
          %s239 = sshll.u32 %s229, 4
          %s240 = int_to_ptr.vmem [resolvable:$true] %s239
          %245 = dma.hbm_to_vmem [thread:$0]  %s238, 2048, %s240, %s226, 128, 128, 8
        $region32: #{tpu_custom_call.1} parent=27 // pred_fallthru
          _
        // Predicated region
        $region33: #{tpu_custom_call.1} parent=27 // pred_check
          %p246 = pneg %p100
        $region34: #{tpu_custom_call.1} parent=27 // pred_check_branch
          %248 = sbr.rel (%p246) target = $region36
        $region35: #{tpu_custom_call.1} parent=27 // pred_region
          %s249 = sand.u32 %s19, 1
          %s250 = scalar_lea.sflag [#allocation7], %s249
          %s251 = sand.u32 %s90, 1
          %s252 = smul.addr %s251, 128
          %s253 = scalar_lea.vmem [#allocation8], %s252
          %s254 = smul.u32 16, %s26
          %s256 = ssub.s32 2048, 2048
          %257 = vsyncadd %s250, %s256
          %s258 = smul.addr %s254, 128
          %s259 = scalar_lea.hbm %s2, %s258
          %s260 = sshll.u32 %s253, 4
          %s261 = int_to_ptr.vmem [resolvable:$true] %s260
          %266 = dma.hbm_to_vmem [thread:$0]  %s259, 2048, %s261, %s250, 128, 128, 8
        $region36: #{tpu_custom_call.1} parent=27 // pred_fallthru
          _
      $region28: #{tpu_custom_call.1} parent=5 // pred_fallthru
        _
      %p267 = scmp.le.s32.totalorder 1, %s19
      %p268 = scmp.lt.s32.totalorder %s19, 3
      %p269 = pnand %p267, %p268
      %p270 = pneg %p269
      // Predicated region
      $region37: #{tpu_custom_call.1} parent=5 // pred_check
        _
      $region38: #{tpu_custom_call.1} parent=5 // pred_check_branch
        %272 = sbr.rel (%p269) target = $region40
      $region39: #{tpu_custom_call.1} parent=5 // pred_region
        %s273 = ssub.s32 %s19, 1
        // Predicated region
        $region41: #{tpu_custom_call.1} parent=39 // pred_check
          %p274 = pneg %p52
        $region42: #{tpu_custom_call.1} parent=39 // pred_check_branch
          %276 = sbr.rel (%p274) target = $region44
        $region43: #{tpu_custom_call.1} parent=39 // pred_region
          %277 = dma.done [#allocation4], 2048
        $region44: #{tpu_custom_call.1} parent=39 // pred_fallthru
          _
        %s278 = sand.u32 %s24, 1
        %s279 = scalar_lea.sflag [#allocation7], %s278
        %s280 = sand.u32 %s67, 1
        %s281 = smul.addr %s280, 128
        %s282 = scalar_lea.vmem [#allocation6], %s281
        // Predicated region
        $region45: #{tpu_custom_call.1} parent=39 // pred_check
          %p283 = pneg %p80
        $region46: #{tpu_custom_call.1} parent=39 // pred_check_branch
          %285 = sbr.rel (%p283) target = $region48
        $region47: #{tpu_custom_call.1} parent=39 // pred_region
          %286 = dma.done %s279, 2048
        $region48: #{tpu_custom_call.1} parent=39 // pred_fallthru
          _
        %s287 = sand.u32 %s24, 1
        %s288 = scalar_lea.sflag [#allocation7], %s287
        %s289 = sand.u32 %s93, 1
        %s290 = smul.addr %s289, 128
        %s291 = scalar_lea.vmem [#allocation8], %s290
        // Predicated region
        $region49: #{tpu_custom_call.1} parent=39 // pred_check
          %p292 = pneg %p106
        $region50: #{tpu_custom_call.1} parent=39 // pred_check_branch
          %294 = sbr.rel (%p292) target = $region52
        $region51: #{tpu_custom_call.1} parent=39 // pred_region
          %295 = dma.done %s288, 2048
        $region52: #{tpu_custom_call.1} parent=39 // pred_fallthru
          _
        // Predicated region
        $region53: #{tpu_custom_call.1} parent=39 // pred_check
          %p296 = pneg %p127
        $region54: #{tpu_custom_call.1} parent=39 // pred_check_branch
          %298 = sbr.rel (%p296) target = $region56
        $region55: #{tpu_custom_call.1} parent=39 // pred_region
          %299 = dma.done [#allocation10], 2048
        $region56: #{tpu_custom_call.1} parent=39 // pred_fallthru
          _
        %p300 = pneg %p52
        %p301 = pneg %p49
        %s302 = sand.u32 %s24, 1
        %s303 = scalar_lea.sflag [#allocation7], %s302
        %s304 = sand.u32 %s67, 1
        %s305 = smul.addr %s304, 128
        %s306 = scalar_lea.vmem [#allocation6], %s305
        %p307 = pneg %p80
        %p308 = pneg %p77
        %s309 = sand.u32 %s24, 1
        %s310 = scalar_lea.sflag [#allocation7], %s309
        %s311 = sand.u32 %s93, 1
        %s312 = smul.addr %s311, 128
        %s313 = scalar_lea.vmem [#allocation8], %s312
        %p314 = pneg %p106
        %p315 = pneg %p103
        %p316 = pneg %p127
        %p317 = pneg %p124
        %p318 = pneg %p148
        %p319 = pneg %p145
        %p320 = pneg %p174
        %p321 = pneg %p171
        %s322 = sand.u32 %s161, 1
        %s323 = scalar_lea.sflag [#allocation5], %s322
        %s324 = sand.u32 %s161, 1
        %s325 = smul.addr %s324, 128
        %s326 = scalar_lea.vmem [#allocation11], %s325
        %s327 = smul.u32 16, %s28
        %s328 = smul.u32 2, %s29
        %s329 = smul.u32 16, %s28
        %s330 = smul.u32 16, %s28
        %p332 = scmp.eq.s32.totalorder %s29, 0
        // Predicated region
        $region57: #{tpu_custom_call.1} parent=39 // pred_check
          %p333 = pneg %p332
        $region58: #{tpu_custom_call.1} parent=39 // pred_check_branch
          %335 = sbr.rel (%p333) target = $region60
        $region59: #{tpu_custom_call.1} parent=39 // pred_region
          %336 = vst [vmem:[#allocation2] sm:$0xff] 0.0
          %337 = vst [vmem:[#allocation2 + $0x8] sm:$0xff] 0.0
          %338 = vst [vmem:[#allocation2 + $0x10] sm:$0xff] 0.0
          %339 = vst [vmem:[#allocation2 + $0x18] sm:$0xff] 0.0
          %340 = vst [vmem:[#allocation2 + $0x20] sm:$0xff] 0.0
          %341 = vst [vmem:[#allocation2 + $0x28] sm:$0xff] 0.0
          %342 = vst [vmem:[#allocation2 + $0x30] sm:$0xff] 0.0
          %343 = vst [vmem:[#allocation2 + $0x38] sm:$0xff] 0.0
          %344 = vst [vmem:[#allocation2 + $0x40] sm:$0xff] 0.0
          %345 = vst [vmem:[#allocation2 + $0x48] sm:$0xff] 0.0
          %346 = vst [vmem:[#allocation2 + $0x50] sm:$0xff] 0.0
          %347 = vst [vmem:[#allocation2 + $0x58] sm:$0xff] 0.0
          %348 = vst [vmem:[#allocation2 + $0x60] sm:$0xff] 0.0
          %349 = vst [vmem:[#allocation2 + $0x68] sm:$0xff] 0.0
          %350 = vst [vmem:[#allocation2 + $0x70] sm:$0xff] 0.0
          %351 = vst [vmem:[#allocation2 + $0x78] sm:$0xff] 0.0
        $region60: #{tpu_custom_call.1} parent=39 // pred_fallthru
          _
        %s352 = smul.u32 %s29, 256
        %s353 = sshra.s32 %s352, 3
        %s354 = sand.u32 %s352, 7
        %s355 = smul.addr %s353, 4
        %s356 = scalar_lea.vmem [#allocation3], %s355
        %v357 = vld [vmem:[%s356] sm:$0xf]
        %v358 = vld [vmem:[%s356 + $0x4] sm:$0xf]
        %v359 = vld [vmem:[%s356 + $0x8] sm:$0xf]
        %v360 = vld [vmem:[%s356 + $0xc] sm:$0xf]
        %v361 = vld [vmem:[%s356 + $0x10] sm:$0xf]
        %v362 = vld [vmem:[%s356 + $0x14] sm:$0xf]
        %v363 = vld [vmem:[%s356 + $0x18] sm:$0xf]
        %v364 = vld [vmem:[%s356 + $0x1c] sm:$0xf]
        %v365 = vld [vmem:[%s356 + $0x20] sm:$0xf]
        %v366 = vld [vmem:[%s356 + $0x24] sm:$0xf]
        %v367 = vld [vmem:[%s356 + $0x28] sm:$0xf]
        %v368 = vld [vmem:[%s356 + $0x2c] sm:$0xf]
        %v369 = vld [vmem:[%s356 + $0x30] sm:$0xf]
        %v370 = vld [vmem:[%s356 + $0x34] sm:$0xf]
        %v371 = vld [vmem:[%s356 + $0x38] sm:$0xf]
        %v372 = vld [vmem:[%s356 + $0x3c] sm:$0xf]
        %v373 = vld [vmem:[%s356 + $0x40] sm:$0xf]
        %v374 = vld [vmem:[%s356 + $0x44] sm:$0xf]
        %v375 = vld [vmem:[%s356 + $0x48] sm:$0xf]
        %v376 = vld [vmem:[%s356 + $0x4c] sm:$0xf]
        %v377 = vld [vmem:[%s356 + $0x50] sm:$0xf]
        %v378 = vld [vmem:[%s356 + $0x54] sm:$0xf]
        %v379 = vld [vmem:[%s356 + $0x58] sm:$0xf]
        %v380 = vld [vmem:[%s356 + $0x5c] sm:$0xf]
        %v381 = vld [vmem:[%s356 + $0x60] sm:$0xf]
        %v382 = vld [vmem:[%s356 + $0x64] sm:$0xf]
        %v383 = vld [vmem:[%s356 + $0x68] sm:$0xf]
        %v384 = vld [vmem:[%s356 + $0x6c] sm:$0xf]
        %v385 = vld [vmem:[%s356 + $0x70] sm:$0xf]
        %v386 = vld [vmem:[%s356 + $0x74] sm:$0xf]
        %v387 = vld [vmem:[%s356 + $0x78] sm:$0xf]
        %v388 = vld [vmem:[%s356 + $0x7c] sm:$0xf]
        %v389 = vld [vmem:[#allocation2] sm:$0xff]
        %v390 = vld [vmem:[#allocation2 + $0x8] sm:$0xff]
        %v391 = vld [vmem:[#allocation2 + $0x10] sm:$0xff]
        %v392 = vld [vmem:[#allocation2 + $0x18] sm:$0xff]
        %v393 = vld [vmem:[#allocation2 + $0x20] sm:$0xff]
        %v394 = vld [vmem:[#allocation2 + $0x28] sm:$0xff]
        %v395 = vld [vmem:[#allocation2 + $0x30] sm:$0xff]
        %v396 = vld [vmem:[#allocation2 + $0x38] sm:$0xff]
        %v397 = vld [vmem:[#allocation2 + $0x40] sm:$0xff]
        %v398 = vld [vmem:[#allocation2 + $0x48] sm:$0xff]
        %v399 = vld [vmem:[#allocation2 + $0x50] sm:$0xff]
        %v400 = vld [vmem:[#allocation2 + $0x58] sm:$0xff]
        %v401 = vld [vmem:[#allocation2 + $0x60] sm:$0xff]
        %v402 = vld [vmem:[#allocation2 + $0x68] sm:$0xff]
        %v403 = vld [vmem:[#allocation2 + $0x70] sm:$0xff]
        %v404 = vld [vmem:[#allocation2 + $0x78] sm:$0xff]
        %v405 = vld [vmem:[%s282] sm:$0xff]
        %v406 = vld [vmem:[%s282 + $0x8] sm:$0xff]
        %v407 = vld [vmem:[%s282 + $0x10] sm:$0xff]
        %v408 = vld [vmem:[%s282 + $0x18] sm:$0xff]
        %v409 = vld [vmem:[%s282 + $0x20] sm:$0xff]
        %v410 = vld [vmem:[%s282 + $0x28] sm:$0xff]
        %v411 = vld [vmem:[%s282 + $0x30] sm:$0xff]
        %v412 = vld [vmem:[%s282 + $0x38] sm:$0xff]
        %v413 = vld [vmem:[%s282 + $0x40] sm:$0xff]
        %v414 = vld [vmem:[%s282 + $0x48] sm:$0xff]
        %v415 = vld [vmem:[%s282 + $0x50] sm:$0xff]
        %v416 = vld [vmem:[%s282 + $0x58] sm:$0xff]
        %v417 = vld [vmem:[%s282 + $0x60] sm:$0xff]
        %v418 = vld [vmem:[%s282 + $0x68] sm:$0xff]
        %v419 = vld [vmem:[%s282 + $0x70] sm:$0xff]
        %v420 = vld [vmem:[%s282 + $0x78] sm:$0xff]
        %v437 = vunpack.c.l.b16 %v405
        %v438 = vunpack.c.h.b16 %v405
        %v439 = vunpack.c.l.b16 %v406
        %v440 = vunpack.c.h.b16 %v406
        %v441 = vunpack.c.l.b16 %v407
        %v442 = vunpack.c.h.b16 %v407
        %v443 = vunpack.c.l.b16 %v408
        %v444 = vunpack.c.h.b16 %v408
        %v445 = vunpack.c.l.b16 %v409
        %v446 = vunpack.c.h.b16 %v409
        %v447 = vunpack.c.l.b16 %v410
        %v448 = vunpack.c.h.b16 %v410
        %v449 = vunpack.c.l.b16 %v411
        %v450 = vunpack.c.h.b16 %v411
        %v451 = vunpack.c.l.b16 %v412
        %v452 = vunpack.c.h.b16 %v412
        %v453 = vunpack.c.l.b16 %v413
        %v454 = vunpack.c.h.b16 %v413
        %v455 = vunpack.c.l.b16 %v414
        %v456 = vunpack.c.h.b16 %v414
        %v457 = vunpack.c.l.b16 %v415
        %v458 = vunpack.c.h.b16 %v415
        %v459 = vunpack.c.l.b16 %v416
        %v460 = vunpack.c.h.b16 %v416
        %v461 = vunpack.c.l.b16 %v417
        %v462 = vunpack.c.h.b16 %v417
        %v463 = vunpack.c.l.b16 %v418
        %v464 = vunpack.c.h.b16 %v418
        %v465 = vunpack.c.l.b16 %v419
        %v466 = vunpack.c.h.b16 %v419
        %v467 = vunpack.c.l.b16 %v420
        %v468 = vunpack.c.h.b16 %v420
        %v469 = vpack.c.b16 %v439, %v437
        %v470 = vpack.c.b16 %v440, %v438
        %v471 = vpack.c.b16 %v443, %v441
        %v472 = vpack.c.b16 %v444, %v442
        %v473 = vpack.c.b16 %v447, %v445
        %v474 = vpack.c.b16 %v448, %v446
        %v475 = vpack.c.b16 %v451, %v449
        %v476 = vpack.c.b16 %v452, %v450
        %v477 = vpack.c.b16 %v455, %v453
        %v478 = vpack.c.b16 %v456, %v454
        %v479 = vpack.c.b16 %v459, %v457
        %v480 = vpack.c.b16 %v460, %v458
        %v481 = vpack.c.b16 %v463, %v461
        %v482 = vpack.c.b16 %v464, %v462
        %v483 = vpack.c.b16 %v467, %v465
        %v484 = vpack.c.b16 %v468, %v466
        %v533 = vunpack.c.l.b16 %v357
        %v534 = vunpack.c.l.b16 %v358
        %v535 = vunpack.c.l.b16 %v359
        %v536 = vunpack.c.l.b16 %v360
        %v537 = vunpack.c.l.b16 %v361
        %v538 = vunpack.c.l.b16 %v362
        %v539 = vunpack.c.l.b16 %v363
        %v540 = vunpack.c.l.b16 %v364
        %v541 = vunpack.c.l.b16 %v365
        %v542 = vunpack.c.l.b16 %v366
        %v543 = vunpack.c.l.b16 %v367
        %v544 = vunpack.c.l.b16 %v368
        %v545 = vunpack.c.l.b16 %v369
        %v546 = vunpack.c.l.b16 %v370
        %v547 = vunpack.c.l.b16 %v371
        %v548 = vunpack.c.l.b16 %v372
        %v549 = vunpack.c.l.b16 %v373
        %v550 = vunpack.c.l.b16 %v374
        %v551 = vunpack.c.l.b16 %v375
        %v552 = vunpack.c.l.b16 %v376
        %v553 = vunpack.c.l.b16 %v377
        %v554 = vunpack.c.l.b16 %v378
        %v555 = vunpack.c.l.b16 %v379
        %v556 = vunpack.c.l.b16 %v380
        %v557 = vunpack.c.l.b16 %v381
        %v558 = vunpack.c.l.b16 %v382
        %v559 = vunpack.c.l.b16 %v383
        %v560 = vunpack.c.l.b16 %v384
        %v561 = vunpack.c.l.b16 %v385
        %v562 = vunpack.c.l.b16 %v386
        %v563 = vunpack.c.l.b16 %v387
        %v564 = vunpack.c.l.b16 %v388
        %v565 = vpack.c.b16 %v534, %v533
        %v566 = vpack.c.b16 %v536, %v535
        %v567 = vpack.c.b16 %v538, %v537
        %v568 = vpack.c.b16 %v540, %v539
        %v569 = vpack.c.b16 %v542, %v541
        %v570 = vpack.c.b16 %v544, %v543
        %v571 = vpack.c.b16 %v546, %v545
        %v572 = vpack.c.b16 %v548, %v547
        %v573 = vpack.c.b16 %v550, %v549
        %v574 = vpack.c.b16 %v552, %v551
        %v575 = vpack.c.b16 %v554, %v553
        %v576 = vpack.c.b16 %v556, %v555
        %v577 = vpack.c.b16 %v558, %v557
        %v578 = vpack.c.b16 %v560, %v559
        %v579 = vpack.c.b16 %v562, %v561
        %v580 = vpack.c.b16 %v564, %v563
        %597 = vmatprep.subr.bf16.mxu0 0
        %598 = vmatpush1.bf16.msra.mxu0 %v565
        %599 = vmatprep.subr.bf16.mxu0 0
        %600 = vmatpush1.bf16.msra.mxu0 %v566
        %601 = vmatprep.subr.bf16.mxu0 0
        %602 = vmatpush1.bf16.msra.mxu0 %v567
        %603 = vmatprep.subr.bf16.mxu0 0
        %604 = vmatpush1.bf16.msra.mxu0 %v568
        %605 = vmatprep.subr.bf16.mxu0 0
        %606 = vmatpush1.bf16.msra.mxu0 %v569
        %607 = vmatprep.subr.bf16.mxu0 0
        %608 = vmatpush1.bf16.msra.mxu0 %v570
        %609 = vmatprep.subr.bf16.mxu0 0
        %610 = vmatpush1.bf16.msra.mxu0 %v571
        %611 = vmatprep.subr.bf16.mxu0 0
        %612 = vmatpush1.bf16.msra.mxu0 %v572
        %613 = vmatprep.subr.bf16.mxu0 0
        %614 = vmatpush1.bf16.msra.mxu0 %v573
        %615 = vmatprep.subr.bf16.mxu0 0
        %616 = vmatpush1.bf16.msra.mxu0 %v574
        %617 = vmatprep.subr.bf16.mxu0 0
        %618 = vmatpush1.bf16.msra.mxu0 %v575
        %619 = vmatprep.subr.bf16.mxu0 0
        %620 = vmatpush1.bf16.msra.mxu0 %v576
        %621 = vmatprep.subr.bf16.mxu0 0
        %622 = vmatpush1.bf16.msra.mxu0 %v577
        %623 = vmatprep.subr.bf16.mxu0 0
        %624 = vmatpush1.bf16.msra.mxu0 %v578
        %625 = vmatprep.subr.bf16.mxu0 0
        %626 = vmatpush1.bf16.msra.mxu0 %v579
        %627 = vmatprep.subr.bf16.mxu0 0
        %628 = vmatpush1.bf16.msra.mxu0 %v580
        %629 = vmatprep.mubr.bf16.mxu0 %v470
        %630 = vmatmul.mubr.bf16.gmra.mrb[0].mxu0 %v469
        %v631 = vpop.f32.mrb[0].mxu0
        %v632 = vadd.f32 0.0, %v631
        %v633 = vpop.f32.mrb[0].mxu0
        %v634 = vpop.f32.mrb[0].mxu0
        %v635 = vadd.f32 0.0, %v634
        %v636 = vpop.f32.mrb[0].mxu0
        %637 = vmatprep.mubr.bf16.mxu0 %v472
        %638 = vmatmul.mubr.bf16.gmra.mrb[0].mxu0 %v471
        %v639 = vpop.f32.mrb[0].mxu0
        %v640 = vadd.f32 0.0, %v639
        %v641 = vpop.f32.mrb[0].mxu0
        %v642 = vpop.f32.mrb[0].mxu0
        %v643 = vadd.f32 0.0, %v642
        %v644 = vpop.f32.mrb[0].mxu0
        %645 = vmatprep.mubr.bf16.mxu0 %v474
        %646 = vmatmul.mubr.bf16.gmra.mrb[0].mxu0 %v473
        %v647 = vpop.f32.mrb[0].mxu0
        %v648 = vadd.f32 0.0, %v647
        %v649 = vpop.f32.mrb[0].mxu0
        %v650 = vpop.f32.mrb[0].mxu0
        %v651 = vadd.f32 0.0, %v650
        %v652 = vpop.f32.mrb[0].mxu0
        %653 = vmatprep.mubr.bf16.mxu0 %v476
        %654 = vmatmul.mubr.bf16.gmra.mrb[0].mxu0 %v475
        %v655 = vpop.f32.mrb[0].mxu0
        %v656 = vadd.f32 0.0, %v655
        %v657 = vpop.f32.mrb[0].mxu0
        %v658 = vpop.f32.mrb[0].mxu0
        %v659 = vadd.f32 0.0, %v658
        %v660 = vpop.f32.mrb[0].mxu0
        %661 = vmatprep.mubr.bf16.mxu0 %v478
        %662 = vmatmul.mubr.bf16.gmra.mrb[0].mxu0 %v477
        %v663 = vpop.f32.mrb[0].mxu0
        %v664 = vadd.f32 0.0, %v663
        %v665 = vpop.f32.mrb[0].mxu0
        %v666 = vpop.f32.mrb[0].mxu0
        %v667 = vadd.f32 0.0, %v666
        %v668 = vpop.f32.mrb[0].mxu0
        %669 = vmatprep.mubr.bf16.mxu0 %v480
        %670 = vmatmul.mubr.bf16.gmra.mrb[0].mxu0 %v479
        %v671 = vpop.f32.mrb[0].mxu0
        %v672 = vadd.f32 0.0, %v671
        %v673 = vpop.f32.mrb[0].mxu0
        %v674 = vpop.f32.mrb[0].mxu0
        %v675 = vadd.f32 0.0, %v674
        %v676 = vpop.f32.mrb[0].mxu0
        %677 = vmatprep.mubr.bf16.mxu0 %v482
        %678 = vmatmul.mubr.bf16.gmra.mrb[0].mxu0 %v481
        %v679 = vpop.f32.mrb[0].mxu0
        %v680 = vadd.f32 0.0, %v679
        %v681 = vpop.f32.mrb[0].mxu0
        %v682 = vpop.f32.mrb[0].mxu0
        %v683 = vadd.f32 0.0, %v682
        %v684 = vpop.f32.mrb[0].mxu0
        %685 = vmatprep.mubr.bf16.mxu0 %v484
        %686 = vmatmul.mubr.bf16.gmra.mrb[0].mxu0 %v483
        %v687 = vpop.f32.mrb[0].mxu0
        %v688 = vadd.f32 0.0, %v687
        %v689 = vpop.f32.mrb[0].mxu0
        %v690 = vpop.f32.mrb[0].mxu0
        %v691 = vadd.f32 0.0, %v690
        %v692 = vpop.f32.mrb[0].mxu0
        %693 = vdwg.mxu0
        %v694 = vadd.f32 %v389, %v632
        %v695 = vadd.f32 %v390, %v635
        %v696 = vadd.f32 %v391, %v640
        %v697 = vadd.f32 %v392, %v643
        %v698 = vadd.f32 %v393, %v648
        %v699 = vadd.f32 %v394, %v651
        %v700 = vadd.f32 %v395, %v656
        %v701 = vadd.f32 %v396, %v659
        %v702 = vadd.f32 %v397, %v664
        %v703 = vadd.f32 %v398, %v667
        %v704 = vadd.f32 %v399, %v672
        %v705 = vadd.f32 %v400, %v675
        %v706 = vadd.f32 %v401, %v680
        %v707 = vadd.f32 %v402, %v683
        %v708 = vadd.f32 %v403, %v688
        %v709 = vadd.f32 %v404, %v691
        %710 = vst [vmem:[#allocation2] sm:$0xff] %v694
        %711 = vst [vmem:[#allocation2 + $0x8] sm:$0xff] %v695
        %712 = vst [vmem:[#allocation2 + $0x10] sm:$0xff] %v696
        %713 = vst [vmem:[#allocation2 + $0x18] sm:$0xff] %v697
        %714 = vst [vmem:[#allocation2 + $0x20] sm:$0xff] %v698
        %715 = vst [vmem:[#allocation2 + $0x28] sm:$0xff] %v699
        %716 = vst [vmem:[#allocation2 + $0x30] sm:$0xff] %v700
        %717 = vst [vmem:[#allocation2 + $0x38] sm:$0xff] %v701
        %718 = vst [vmem:[#allocation2 + $0x40] sm:$0xff] %v702
        %719 = vst [vmem:[#allocation2 + $0x48] sm:$0xff] %v703
        %720 = vst [vmem:[#allocation2 + $0x50] sm:$0xff] %v704
        %721 = vst [vmem:[#allocation2 + $0x58] sm:$0xff] %v705
        %722 = vst [vmem:[#allocation2 + $0x60] sm:$0xff] %v706
        %723 = vst [vmem:[#allocation2 + $0x68] sm:$0xff] %v707
        %724 = vst [vmem:[#allocation2 + $0x70] sm:$0xff] %v708
        %725 = vst [vmem:[#allocation2 + $0x78] sm:$0xff] %v709
        // Predicated region
        $region61: #{tpu_custom_call.1} parent=39 // pred_check
          %p726 = pneg %p332
        $region62: #{tpu_custom_call.1} parent=39 // pred_check_branch
          %728 = sbr.rel (%p726) target = $region64
        $region63: #{tpu_custom_call.1} parent=39 // pred_region
          %v729 = vld [vmem:[#allocation2] sm:$0xff]
          %v730 = vld [vmem:[#allocation2 + $0x8] sm:$0xff]
          %v731 = vld [vmem:[#allocation2 + $0x10] sm:$0xff]
          %v732 = vld [vmem:[#allocation2 + $0x18] sm:$0xff]
          %v733 = vld [vmem:[#allocation2 + $0x20] sm:$0xff]
          %v734 = vld [vmem:[#allocation2 + $0x28] sm:$0xff]
          %v735 = vld [vmem:[#allocation2 + $0x30] sm:$0xff]
          %v736 = vld [vmem:[#allocation2 + $0x38] sm:$0xff]
          %v737 = vld [vmem:[#allocation2 + $0x40] sm:$0xff]
          %v738 = vld [vmem:[#allocation2 + $0x48] sm:$0xff]
          %v739 = vld [vmem:[#allocation2 + $0x50] sm:$0xff]
          %v740 = vld [vmem:[#allocation2 + $0x58] sm:$0xff]
          %v741 = vld [vmem:[#allocation2 + $0x60] sm:$0xff]
          %v742 = vld [vmem:[#allocation2 + $0x68] sm:$0xff]
          %v743 = vld [vmem:[#allocation2 + $0x70] sm:$0xff]
          %v744 = vld [vmem:[#allocation2 + $0x78] sm:$0xff]
          %v745 = vlaneseq
          %v746 = vand.u32 %v745, 127
          %vm747 = vcmp.eq.s32.totalorder %v746, 32
          %v748 = vsel %vm747, 0.0, %v729
          %v749 = vsel %vm747, 0.0, %v730
          %v750 = vsel %vm747, 0.0, %v731
          %v751 = vsel %vm747, 0.0, %v732
          %v752 = vsel %vm747, 0.0, %v733
          %v753 = vsel %vm747, 0.0, %v734
          %v754 = vsel %vm747, 0.0, %v735
          %v755 = vsel %vm747, 0.0, %v736
          %v756 = vsel %vm747, 0.0, %v737
          %v757 = vsel %vm747, 0.0, %v738
          %v758 = vsel %vm747, 0.0, %v739
          %v759 = vsel %vm747, 0.0, %v740
          %v760 = vsel %vm747, 0.0, %v741
          %v761 = vsel %vm747, 0.0, %v742
          %v762 = vsel %vm747, 0.0, %v743
          %v763 = vsel %vm747, 0.0, %v744
          %v764 = vsel %vm747, %v729, 0.0
          %v765 = vsel %vm747, %v730, 0.0
          %v766 = vsel %vm747, %v731, 0.0
          %v767 = vsel %vm747, %v732, 0.0
          %v768 = vsel %vm747, %v733, 0.0
          %v769 = vsel %vm747, %v734, 0.0
          %v770 = vsel %vm747, %v735, 0.0
          %v771 = vsel %vm747, %v736, 0.0
          %v772 = vsel %vm747, %v737, 0.0
          %v773 = vsel %vm747, %v738, 0.0
          %v774 = vsel %vm747, %v739, 0.0
          %v775 = vsel %vm747, %v740, 0.0
          %v776 = vsel %vm747, %v741, 0.0
          %v777 = vsel %vm747, %v742, 0.0
          %v778 = vsel %vm747, %v743, 0.0
          %v779 = vsel %vm747, %v744, 0.0
          %780 = vadd.xlane.f32.xlu0 %v764
          %v781 = vpop.xlane.xlu0 %780
          %782 = vadd.xlane.f32.xlu0 %v765
          %v783 = vpop.xlane.xlu0 %782
          %784 = vadd.xlane.f32.xlu0 %v766
          %v785 = vpop.xlane.xlu0 %784
          %786 = vadd.xlane.f32.xlu0 %v767
          %v787 = vpop.xlane.xlu0 %786
          %788 = vadd.xlane.f32.xlu0 %v768
          %v789 = vpop.xlane.xlu0 %788
          %790 = vadd.xlane.f32.xlu0 %v769
          %v791 = vpop.xlane.xlu0 %790
          %792 = vadd.xlane.f32.xlu0 %v770
          %v793 = vpop.xlane.xlu0 %792
          %794 = vadd.xlane.f32.xlu0 %v771
          %v795 = vpop.xlane.xlu0 %794
          %796 = vadd.xlane.f32.xlu0 %v772
          %v797 = vpop.xlane.xlu0 %796
          %798 = vadd.xlane.f32.xlu0 %v773
          %v799 = vpop.xlane.xlu0 %798
          %800 = vadd.xlane.f32.xlu0 %v774
          %v801 = vpop.xlane.xlu0 %800
          %802 = vadd.xlane.f32.xlu0 %v775
          %v803 = vpop.xlane.xlu0 %802
          %804 = vadd.xlane.f32.xlu0 %v776
          %v805 = vpop.xlane.xlu0 %804
          %806 = vadd.xlane.f32.xlu0 %v777
          %v807 = vpop.xlane.xlu0 %806
          %808 = vadd.xlane.f32.xlu0 %v778
          %v809 = vpop.xlane.xlu0 %808
          %810 = vadd.xlane.f32.xlu0 %v779
          %v811 = vpop.xlane.xlu0 %810
          %vm812 = vcmp.ge.f32.partialorder %v781, 0.0
          %vm813 = vcmp.ge.f32.partialorder %v783, 0.0
          %vm814 = vcmp.ge.f32.partialorder %v785, 0.0
          %vm815 = vcmp.ge.f32.partialorder %v787, 0.0
          %vm816 = vcmp.ge.f32.partialorder %v789, 0.0
          %vm817 = vcmp.ge.f32.partialorder %v791, 0.0
          %vm818 = vcmp.ge.f32.partialorder %v793, 0.0
          %vm819 = vcmp.ge.f32.partialorder %v795, 0.0
          %vm820 = vcmp.ge.f32.partialorder %v797, 0.0
          %vm821 = vcmp.ge.f32.partialorder %v799, 0.0
          %vm822 = vcmp.ge.f32.partialorder %v801, 0.0
          %vm823 = vcmp.ge.f32.partialorder %v803, 0.0
          %vm824 = vcmp.ge.f32.partialorder %v805, 0.0
          %vm825 = vcmp.ge.f32.partialorder %v807, 0.0
          %vm826 = vcmp.ge.f32.partialorder %v809, 0.0
          %vm827 = vcmp.ge.f32.partialorder %v811, 0.0
          %v828 = vmax.f32 %v781, 1e-10
          %v829 = vmax.f32 %v783, 1e-10
          %v830 = vmax.f32 %v785, 1e-10
          %v831 = vmax.f32 %v787, 1e-10
          %v832 = vmax.f32 %v789, 1e-10
          %v833 = vmax.f32 %v791, 1e-10
          %v834 = vmax.f32 %v793, 1e-10
          %v835 = vmax.f32 %v795, 1e-10
          %v836 = vmax.f32 %v797, 1e-10
          %v837 = vmax.f32 %v799, 1e-10
          %v838 = vmax.f32 %v801, 1e-10
          %v839 = vmax.f32 %v803, 1e-10
          %v840 = vmax.f32 %v805, 1e-10
          %v841 = vmax.f32 %v807, 1e-10
          %v842 = vmax.f32 %v809, 1e-10
          %v843 = vmax.f32 %v811, 1e-10
          %v844 = vmin.f32 %v781, -1e-10
          %v845 = vmin.f32 %v783, -1e-10
          %v846 = vmin.f32 %v785, -1e-10
          %v847 = vmin.f32 %v787, -1e-10
          %v848 = vmin.f32 %v789, -1e-10
          %v849 = vmin.f32 %v791, -1e-10
          %v850 = vmin.f32 %v793, -1e-10
          %v851 = vmin.f32 %v795, -1e-10
          %v852 = vmin.f32 %v797, -1e-10
          %v853 = vmin.f32 %v799, -1e-10
          %v854 = vmin.f32 %v801, -1e-10
          %v855 = vmin.f32 %v803, -1e-10
          %v856 = vmin.f32 %v805, -1e-10
          %v857 = vmin.f32 %v807, -1e-10
          %v858 = vmin.f32 %v809, -1e-10
          %v859 = vmin.f32 %v811, -1e-10
          %v860 = vsel %vm812, %v828, %v844
          %v861 = vsel %vm813, %v829, %v845
          %v862 = vsel %vm814, %v830, %v846
          %v863 = vsel %vm815, %v831, %v847
          %v864 = vsel %vm816, %v832, %v848
          %v865 = vsel %vm817, %v833, %v849
          %v866 = vsel %vm818, %v834, %v850
          %v867 = vsel %vm819, %v835, %v851
          %v868 = vsel %vm820, %v836, %v852
          %v869 = vsel %vm821, %v837, %v853
          %v870 = vsel %vm822, %v838, %v854
          %v871 = vsel %vm823, %v839, %v855
          %v872 = vsel %vm824, %v840, %v856
          %v873 = vsel %vm825, %v841, %v857
          %v874 = vsel %vm826, %v842, %v858
          %v875 = vsel %vm827, %v843, %v859
          %v876 = vrcp.pop %v860
          %v877 = vmul.f32 %v748, %v876
          %v878 = vrcp.pop %v861
          %v879 = vmul.f32 %v749, %v878
          %v880 = vrcp.pop %v862
          %v881 = vmul.f32 %v750, %v880
          %v882 = vrcp.pop %v863
          %v883 = vmul.f32 %v751, %v882
          %v884 = vrcp.pop %v864
          %v885 = vmul.f32 %v752, %v884
          %v886 = vrcp.pop %v865
          %v887 = vmul.f32 %v753, %v886
          %v888 = vrcp.pop %v866
          %v889 = vmul.f32 %v754, %v888
          %v890 = vrcp.pop %v867
          %v891 = vmul.f32 %v755, %v890
          %v892 = vrcp.pop %v868
          %v893 = vmul.f32 %v756, %v892
          %v894 = vrcp.pop %v869
          %v895 = vmul.f32 %v757, %v894
          %v896 = vrcp.pop %v870
          %v897 = vmul.f32 %v758, %v896
          %v898 = vrcp.pop %v871
          %v899 = vmul.f32 %v759, %v898
          %v900 = vrcp.pop %v872
          %v901 = vmul.f32 %v760, %v900
          %v902 = vrcp.pop %v873
          %v903 = vmul.f32 %v761, %v902
          %v904 = vrcp.pop %v874
          %v905 = vmul.f32 %v762, %v904
          %v906 = vrcp.pop %v875
          %v907 = vmul.f32 %v763, %v906
          %v908 = vmul.f32 %v877, %v877
          %v909 = vmul.f32 %v879, %v879
          %v910 = vmul.f32 %v881, %v881
          %v911 = vmul.f32 %v883, %v883
          %v912 = vmul.f32 %v885, %v885
          %v913 = vmul.f32 %v887, %v887
          %v914 = vmul.f32 %v889, %v889
          %v915 = vmul.f32 %v891, %v891
          %v916 = vmul.f32 %v893, %v893
          %v917 = vmul.f32 %v895, %v895
          %v918 = vmul.f32 %v897, %v897
          %v919 = vmul.f32 %v899, %v899
          %v920 = vmul.f32 %v901, %v901
          %v921 = vmul.f32 %v903, %v903
          %v922 = vmul.f32 %v905, %v905
          %v923 = vmul.f32 %v907, %v907
          %924 = vadd.xlane.f32.xlu0 %v908
          %v925 = vpop.xlane.xlu0 %924
          %926 = vadd.xlane.f32.xlu0 %v909
          %v927 = vpop.xlane.xlu0 %926
          %928 = vadd.xlane.f32.xlu0 %v910
          %v929 = vpop.xlane.xlu0 %928
          %930 = vadd.xlane.f32.xlu0 %v911
          %v931 = vpop.xlane.xlu0 %930
          %932 = vadd.xlane.f32.xlu0 %v912
          %v933 = vpop.xlane.xlu0 %932
          %934 = vadd.xlane.f32.xlu0 %v913
          %v935 = vpop.xlane.xlu0 %934
          %936 = vadd.xlane.f32.xlu0 %v914
          %v937 = vpop.xlane.xlu0 %936
          %938 = vadd.xlane.f32.xlu0 %v915
          %v939 = vpop.xlane.xlu0 %938
          %940 = vadd.xlane.f32.xlu0 %v916
          %v941 = vpop.xlane.xlu0 %940
          %942 = vadd.xlane.f32.xlu0 %v917
          %v943 = vpop.xlane.xlu0 %942
          %944 = vadd.xlane.f32.xlu0 %v918
          %v945 = vpop.xlane.xlu0 %944
          %946 = vadd.xlane.f32.xlu0 %v919
          %v947 = vpop.xlane.xlu0 %946
          %948 = vadd.xlane.f32.xlu0 %v920
          %v949 = vpop.xlane.xlu0 %948
          %950 = vadd.xlane.f32.xlu0 %v921
          %v951 = vpop.xlane.xlu0 %950
          %952 = vadd.xlane.f32.xlu0 %v922
          %v953 = vpop.xlane.xlu0 %952
          %954 = vadd.xlane.f32.xlu0 %v923
          %v955 = vpop.xlane.xlu0 %954
          %v956 = vrsqrt.pop %v925
          %v957 = vmul.f32 %v925, %v956
          %vm958 = vcmp.eq.f32.partialorder %v925, inf
          %v959 = vsel %vm958, %v925, %v957
          %vm960 = vcmp.eq.f32.partialorder %v925, 0.0
          %v961 = vand.u32 %v925, 2147483648
          %v962 = vsel %vm960, %v961, %v959
          %v963 = vrsqrt.pop %v927
          %v964 = vmul.f32 %v927, %v963
          %vm965 = vcmp.eq.f32.partialorder %v927, inf
          %v966 = vsel %vm965, %v927, %v964
          %vm967 = vcmp.eq.f32.partialorder %v927, 0.0
          %v968 = vand.u32 %v927, 2147483648
          %v969 = vsel %vm967, %v968, %v966
          %v970 = vrsqrt.pop %v929
          %v971 = vmul.f32 %v929, %v970
          %vm972 = vcmp.eq.f32.partialorder %v929, inf
          %v973 = vsel %vm972, %v929, %v971
          %vm974 = vcmp.eq.f32.partialorder %v929, 0.0
          %v975 = vand.u32 %v929, 2147483648
          %v976 = vsel %vm974, %v975, %v973
          %v977 = vrsqrt.pop %v931
          %v978 = vmul.f32 %v931, %v977
          %vm979 = vcmp.eq.f32.partialorder %v931, inf
          %v980 = vsel %vm979, %v931, %v978
          %vm981 = vcmp.eq.f32.partialorder %v931, 0.0
          %v982 = vand.u32 %v931, 2147483648
          %v983 = vsel %vm981, %v982, %v980
          %v984 = vrsqrt.pop %v933
          %v985 = vmul.f32 %v933, %v984
          %vm986 = vcmp.eq.f32.partialorder %v933, inf
          %v987 = vsel %vm986, %v933, %v985
          %vm988 = vcmp.eq.f32.partialorder %v933, 0.0
          %v989 = vand.u32 %v933, 2147483648
          %v990 = vsel %vm988, %v989, %v987
          %v991 = vrsqrt.pop %v935
          %v992 = vmul.f32 %v935, %v991
          %vm993 = vcmp.eq.f32.partialorder %v935, inf
          %v994 = vsel %vm993, %v935, %v992
          %vm995 = vcmp.eq.f32.partialorder %v935, 0.0
          %v996 = vand.u32 %v935, 2147483648
          %v997 = vsel %vm995, %v996, %v994
          %v998 = vrsqrt.pop %v937
          %v999 = vmul.f32 %v937, %v998
          %vm1000 = vcmp.eq.f32.partialorder %v937, inf
          %v1001 = vsel %vm1000, %v937, %v999
          %vm1002 = vcmp.eq.f32.partialorder %v937, 0.0
          %v1003 = vand.u32 %v937, 2147483648
          %v1004 = vsel %vm1002, %v1003, %v1001
          %v1005 = vrsqrt.pop %v939
          %v1006 = vmul.f32 %v939, %v1005
          %vm1007 = vcmp.eq.f32.partialorder %v939, inf
          %v1008 = vsel %vm1007, %v939, %v1006
          %vm1009 = vcmp.eq.f32.partialorder %v939, 0.0
          %v1010 = vand.u32 %v939, 2147483648
          %v1011 = vsel %vm1009, %v1010, %v1008
          %v1012 = vrsqrt.pop %v941
          %v1013 = vmul.f32 %v941, %v1012
          %vm1014 = vcmp.eq.f32.partialorder %v941, inf
          %v1015 = vsel %vm1014, %v941, %v1013
          %vm1016 = vcmp.eq.f32.partialorder %v941, 0.0
          %v1017 = vand.u32 %v941, 2147483648
          %v1018 = vsel %vm1016, %v1017, %v1015
          %v1019 = vrsqrt.pop %v943
          %v1020 = vmul.f32 %v943, %v1019
          %vm1021 = vcmp.eq.f32.partialorder %v943, inf
          %v1022 = vsel %vm1021, %v943, %v1020
          %vm1023 = vcmp.eq.f32.partialorder %v943, 0.0
          %v1024 = vand.u32 %v943, 2147483648
          %v1025 = vsel %vm1023, %v1024, %v1022
          %v1026 = vrsqrt.pop %v945
          %v1027 = vmul.f32 %v945, %v1026
          %vm1028 = vcmp.eq.f32.partialorder %v945, inf
          %v1029 = vsel %vm1028, %v945, %v1027
          %vm1030 = vcmp.eq.f32.partialorder %v945, 0.0
          %v1031 = vand.u32 %v945, 2147483648
          %v1032 = vsel %vm1030, %v1031, %v1029
          %v1033 = vrsqrt.pop %v947
          %v1034 = vmul.f32 %v947, %v1033
          %vm1035 = vcmp.eq.f32.partialorder %v947, inf
          %v1036 = vsel %vm1035, %v947, %v1034
          %vm1037 = vcmp.eq.f32.partialorder %v947, 0.0
          %v1038 = vand.u32 %v947, 2147483648
          %v1039 = vsel %vm1037, %v1038, %v1036
          %v1040 = vrsqrt.pop %v949
          %v1041 = vmul.f32 %v949, %v1040
          %vm1042 = vcmp.eq.f32.partialorder %v949, inf
          %v1043 = vsel %vm1042, %v949, %v1041
          %vm1044 = vcmp.eq.f32.partialorder %v949, 0.0
          %v1045 = vand.u32 %v949, 2147483648
          %v1046 = vsel %vm1044, %v1045, %v1043
          %v1047 = vrsqrt.pop %v951
          %v1048 = vmul.f32 %v951, %v1047
          %vm1049 = vcmp.eq.f32.partialorder %v951, inf
          %v1050 = vsel %vm1049, %v951, %v1048
          %vm1051 = vcmp.eq.f32.partialorder %v951, 0.0
          %v1052 = vand.u32 %v951, 2147483648
          %v1053 = vsel %vm1051, %v1052, %v1050
          %v1054 = vrsqrt.pop %v953
          %v1055 = vmul.f32 %v953, %v1054
          %vm1056 = vcmp.eq.f32.partialorder %v953, inf
          %v1057 = vsel %vm1056, %v953, %v1055
          %vm1058 = vcmp.eq.f32.partialorder %v953, 0.0
          %v1059 = vand.u32 %v953, 2147483648
          %v1060 = vsel %vm1058, %v1059, %v1057
          %v1061 = vrsqrt.pop %v955
          %v1062 = vmul.f32 %v955, %v1061
          %vm1063 = vcmp.eq.f32.partialorder %v955, inf
          %v1064 = vsel %vm1063, %v955, %v1062
          %vm1065 = vcmp.eq.f32.partialorder %v955, 0.0
          %v1066 = vand.u32 %v955, 2147483648
          %v1067 = vsel %vm1065, %v1066, %v1064
          %v1068 = vmax.f32 %v962, 1e-15
          %v1069 = vmax.f32 %v969, 1e-15
          %v1070 = vmax.f32 %v976, 1e-15
          %v1071 = vmax.f32 %v983, 1e-15
          %v1072 = vmax.f32 %v990, 1e-15
          %v1073 = vmax.f32 %v997, 1e-15
          %v1074 = vmax.f32 %v1004, 1e-15
          %v1075 = vmax.f32 %v1011, 1e-15
          %v1076 = vmax.f32 %v1018, 1e-15
          %v1077 = vmax.f32 %v1025, 1e-15
          %v1078 = vmax.f32 %v1032, 1e-15
          %v1079 = vmax.f32 %v1039, 1e-15
          %v1080 = vmax.f32 %v1046, 1e-15
          %v1081 = vmax.f32 %v1053, 1e-15
          %v1082 = vmax.f32 %v1060, 1e-15
          %v1083 = vmax.f32 %v1067, 1e-15
          %v1084 = vmax.f32 %v1068, -0.9999999
          %v1085 = vmax.f32 %v1069, -0.9999999
          %v1086 = vmax.f32 %v1070, -0.9999999
          %v1087 = vmax.f32 %v1071, -0.9999999
          %v1088 = vmax.f32 %v1072, -0.9999999
          %v1089 = vmax.f32 %v1073, -0.9999999
          %v1090 = vmax.f32 %v1074, -0.9999999
          %v1091 = vmax.f32 %v1075, -0.9999999
          %v1092 = vmax.f32 %v1076, -0.9999999
          %v1093 = vmax.f32 %v1077, -0.9999999
          %v1094 = vmax.f32 %v1078, -0.9999999
          %v1095 = vmax.f32 %v1079, -0.9999999
          %v1096 = vmax.f32 %v1080, -0.9999999
          %v1097 = vmax.f32 %v1081, -0.9999999
          %v1098 = vmax.f32 %v1082, -0.9999999
          %v1099 = vmax.f32 %v1083, -0.9999999
          %v1100 = vmin.f32 %v1084, 0.9999999
          %v1101 = vmin.f32 %v1085, 0.9999999
          %v1102 = vmin.f32 %v1086, 0.9999999
          %v1103 = vmin.f32 %v1087, 0.9999999
          %v1104 = vmin.f32 %v1088, 0.9999999
          %v1105 = vmin.f32 %v1089, 0.9999999
          %v1106 = vmin.f32 %v1090, 0.9999999
          %v1107 = vmin.f32 %v1091, 0.9999999
          %v1108 = vmin.f32 %v1092, 0.9999999
          %v1109 = vmin.f32 %v1093, 0.9999999
          %v1110 = vmin.f32 %v1094, 0.9999999
          %v1111 = vmin.f32 %v1095, 0.9999999
          %v1112 = vmin.f32 %v1096, 0.9999999
          %v1113 = vmin.f32 %v1097, 0.9999999
          %v1114 = vmin.f32 %v1098, 0.9999999
          %v1115 = vmin.f32 %v1099, 0.9999999
          %v1116 = vadd.f32 %v1100, 1.0
          %v1117 = vadd.f32 %v1101, 1.0
          %v1118 = vadd.f32 %v1102, 1.0
          %v1119 = vadd.f32 %v1103, 1.0
          %v1120 = vadd.f32 %v1104, 1.0
          %v1121 = vadd.f32 %v1105, 1.0
          %v1122 = vadd.f32 %v1106, 1.0
          %v1123 = vadd.f32 %v1107, 1.0
          %v1124 = vadd.f32 %v1108, 1.0
          %v1125 = vadd.f32 %v1109, 1.0
          %v1126 = vadd.f32 %v1110, 1.0
          %v1127 = vadd.f32 %v1111, 1.0
          %v1128 = vadd.f32 %v1112, 1.0
          %v1129 = vadd.f32 %v1113, 1.0
          %v1130 = vadd.f32 %v1114, 1.0
          %v1131 = vadd.f32 %v1115, 1.0
          %v1132 = vsub.f32 1.0, %v1100
          %v1133 = vsub.f32 1.0, %v1101
          %v1134 = vsub.f32 1.0, %v1102
          %v1135 = vsub.f32 1.0, %v1103
          %v1136 = vsub.f32 1.0, %v1104
          %v1137 = vsub.f32 1.0, %v1105
          %v1138 = vsub.f32 1.0, %v1106
          %v1139 = vsub.f32 1.0, %v1107
          %v1140 = vsub.f32 1.0, %v1108
          %v1141 = vsub.f32 1.0, %v1109
          %v1142 = vsub.f32 1.0, %v1110
          %v1143 = vsub.f32 1.0, %v1111
          %v1144 = vsub.f32 1.0, %v1112
          %v1145 = vsub.f32 1.0, %v1113
          %v1146 = vsub.f32 1.0, %v1114
          %v1147 = vsub.f32 1.0, %v1115
          %v1148 = vrcp.pop %v1132
          %v1149 = vmul.f32 %v1116, %v1148
          %v1150 = vrcp.pop %v1133
          %v1151 = vmul.f32 %v1117, %v1150
          %v1152 = vrcp.pop %v1134
          %v1153 = vmul.f32 %v1118, %v1152
          %v1154 = vrcp.pop %v1135
          %v1155 = vmul.f32 %v1119, %v1154
          %v1156 = vrcp.pop %v1136
          %v1157 = vmul.f32 %v1120, %v1156
          %v1158 = vrcp.pop %v1137
          %v1159 = vmul.f32 %v1121, %v1158
          %v1160 = vrcp.pop %v1138
          %v1161 = vmul.f32 %v1122, %v1160
          %v1162 = vrcp.pop %v1139
          %v1163 = vmul.f32 %v1123, %v1162
          %v1164 = vrcp.pop %v1140
          %v1165 = vmul.f32 %v1124, %v1164
          %v1166 = vrcp.pop %v1141
          %v1167 = vmul.f32 %v1125, %v1166
          %v1168 = vrcp.pop %v1142
          %v1169 = vmul.f32 %v1126, %v1168
          %v1170 = vrcp.pop %v1143
          %v1171 = vmul.f32 %v1127, %v1170
          %v1172 = vrcp.pop %v1144
          %v1173 = vmul.f32 %v1128, %v1172
          %v1174 = vrcp.pop %v1145
          %v1175 = vmul.f32 %v1129, %v1174
          %v1176 = vrcp.pop %v1146
          %v1177 = vmul.f32 %v1130, %v1176
          %v1178 = vrcp.pop %v1147
          %v1179 = vmul.f32 %v1131, %v1178
          %v1180 = vlog2.pop %v1149
          %v1181 = vmul.f32 %v1180, 0.6931472
          %v1182 = vlog2.pop %v1151
          %v1183 = vmul.f32 %v1182, 0.6931472
          %v1184 = vlog2.pop %v1153
          %v1185 = vmul.f32 %v1184, 0.6931472
          %v1186 = vlog2.pop %v1155
          %v1187 = vmul.f32 %v1186, 0.6931472
          %v1188 = vlog2.pop %v1157
          %v1189 = vmul.f32 %v1188, 0.6931472
          %v1190 = vlog2.pop %v1159
          %v1191 = vmul.f32 %v1190, 0.6931472
          %v1192 = vlog2.pop %v1161
          %v1193 = vmul.f32 %v1192, 0.6931472
          %v1194 = vlog2.pop %v1163
          %v1195 = vmul.f32 %v1194, 0.6931472
          %v1196 = vlog2.pop %v1165
          %v1197 = vmul.f32 %v1196, 0.6931472
          %v1198 = vlog2.pop %v1167
          %v1199 = vmul.f32 %v1198, 0.6931472
          %v1200 = vlog2.pop %v1169
          %v1201 = vmul.f32 %v1200, 0.6931472
          %v1202 = vlog2.pop %v1171
          %v1203 = vmul.f32 %v1202, 0.6931472
          %v1204 = vlog2.pop %v1173
          %v1205 = vmul.f32 %v1204, 0.6931472
          %v1206 = vlog2.pop %v1175
          %v1207 = vmul.f32 %v1206, 0.6931472
          %v1208 = vlog2.pop %v1177
          %v1209 = vmul.f32 %v1208, 0.6931472
          %v1210 = vlog2.pop %v1179
          %v1211 = vmul.f32 %v1210, 0.6931472
          %v1212 = vmul.f32 %v1181, 0.5
          %v1213 = vmul.f32 %v1183, 0.5
          %v1214 = vmul.f32 %v1185, 0.5
          %v1215 = vmul.f32 %v1187, 0.5
          %v1216 = vmul.f32 %v1189, 0.5
          %v1217 = vmul.f32 %v1191, 0.5
          %v1218 = vmul.f32 %v1193, 0.5
          %v1219 = vmul.f32 %v1195, 0.5
          %v1220 = vmul.f32 %v1197, 0.5
          %v1221 = vmul.f32 %v1199, 0.5
          %v1222 = vmul.f32 %v1201, 0.5
          %v1223 = vmul.f32 %v1203, 0.5
          %v1224 = vmul.f32 %v1205, 0.5
          %v1225 = vmul.f32 %v1207, 0.5
          %v1226 = vmul.f32 %v1209, 0.5
          %v1227 = vmul.f32 %v1211, 0.5
          %v1228 = vmul.f32 %v1212, 0.5
          %v1229 = vmul.f32 %v1213, 0.5
          %v1230 = vmul.f32 %v1214, 0.5
          %v1231 = vmul.f32 %v1215, 0.5
          %v1232 = vmul.f32 %v1216, 0.5
          %v1233 = vmul.f32 %v1217, 0.5
          %v1234 = vmul.f32 %v1218, 0.5
          %v1235 = vmul.f32 %v1219, 0.5
          %v1236 = vmul.f32 %v1220, 0.5
          %v1237 = vmul.f32 %v1221, 0.5
          %v1238 = vmul.f32 %v1222, 0.5
          %v1239 = vmul.f32 %v1223, 0.5
          %v1240 = vmul.f32 %v1224, 0.5
          %v1241 = vmul.f32 %v1225, 0.5
          %v1242 = vmul.f32 %v1226, 0.5
          %v1243 = vmul.f32 %v1227, 0.5
          %v1244 = vtanh.pop %v1228
          %v1245 = vtanh.pop %v1229
          %v1246 = vtanh.pop %v1230
          %v1247 = vtanh.pop %v1231
          %v1248 = vtanh.pop %v1232
          %v1249 = vtanh.pop %v1233
          %v1250 = vtanh.pop %v1234
          %v1251 = vtanh.pop %v1235
          %v1252 = vtanh.pop %v1236
          %v1253 = vtanh.pop %v1237
          %v1254 = vtanh.pop %v1238
          %v1255 = vtanh.pop %v1239
          %v1256 = vtanh.pop %v1240
          %v1257 = vtanh.pop %v1241
          %v1258 = vtanh.pop %v1242
          %v1259 = vtanh.pop %v1243
          %v1260 = vrcp.pop %v1068
          %v1261 = vmul.f32 %v1244, %v1260
          %v1262 = vrcp.pop %v1069
          %v1263 = vmul.f32 %v1245, %v1262
          %v1264 = vrcp.pop %v1070
          %v1265 = vmul.f32 %v1246, %v1264
          %v1266 = vrcp.pop %v1071
          %v1267 = vmul.f32 %v1247, %v1266
          %v1268 = vrcp.pop %v1072
          %v1269 = vmul.f32 %v1248, %v1268
          %v1270 = vrcp.pop %v1073
          %v1271 = vmul.f32 %v1249, %v1270
          %v1272 = vrcp.pop %v1074
          %v1273 = vmul.f32 %v1250, %v1272
          %v1274 = vrcp.pop %v1075
          %v1275 = vmul.f32 %v1251, %v1274
          %v1276 = vrcp.pop %v1076
          %v1277 = vmul.f32 %v1252, %v1276
          %v1278 = vrcp.pop %v1077
          %v1279 = vmul.f32 %v1253, %v1278
          %v1280 = vrcp.pop %v1078
          %v1281 = vmul.f32 %v1254, %v1280
          %v1282 = vrcp.pop %v1079
          %v1283 = vmul.f32 %v1255, %v1282
          %v1284 = vrcp.pop %v1080
          %v1285 = vmul.f32 %v1256, %v1284
          %v1286 = vrcp.pop %v1081
          %v1287 = vmul.f32 %v1257, %v1286
          %v1288 = vrcp.pop %v1082
          %v1289 = vmul.f32 %v1258, %v1288
          %v1290 = vrcp.pop %v1083
          %v1291 = vmul.f32 %v1259, %v1290
          %v1292 = vmul.f32 %v877, %v1261
          %v1293 = vmul.f32 %v879, %v1263
          %v1294 = vmul.f32 %v881, %v1265
          %v1295 = vmul.f32 %v883, %v1267
          %v1296 = vmul.f32 %v885, %v1269
          %v1297 = vmul.f32 %v887, %v1271
          %v1298 = vmul.f32 %v889, %v1273
          %v1299 = vmul.f32 %v891, %v1275
          %v1300 = vmul.f32 %v893, %v1277
          %v1301 = vmul.f32 %v895, %v1279
          %v1302 = vmul.f32 %v897, %v1281
          %v1303 = vmul.f32 %v899, %v1283
          %v1304 = vmul.f32 %v901, %v1285
          %v1305 = vmul.f32 %v903, %v1287
          %v1306 = vmul.f32 %v905, %v1289
          %v1307 = vmul.f32 %v907, %v1291
          %v1308 = vmax.f32 %v1244, 1e-15
          %v1309 = vmax.f32 %v1245, 1e-15
          %v1310 = vmax.f32 %v1246, 1e-15
          %v1311 = vmax.f32 %v1247, 1e-15
          %v1312 = vmax.f32 %v1248, 1e-15
          %v1313 = vmax.f32 %v1249, 1e-15
          %v1314 = vmax.f32 %v1250, 1e-15
          %v1315 = vmax.f32 %v1251, 1e-15
          %v1316 = vmax.f32 %v1252, 1e-15
          %v1317 = vmax.f32 %v1253, 1e-15
          %v1318 = vmax.f32 %v1254, 1e-15
          %v1319 = vmax.f32 %v1255, 1e-15
          %v1320 = vmax.f32 %v1256, 1e-15
          %v1321 = vmax.f32 %v1257, 1e-15
          %v1322 = vmax.f32 %v1258, 1e-15
          %v1323 = vmax.f32 %v1259, 1e-15
          %v1324 = vld [vmem:[%s291] sm:$0xff]
          %v1325 = vld [vmem:[%s291 + $0x8] sm:$0xff]
          %v1326 = vld [vmem:[%s291 + $0x10] sm:$0xff]
          %v1327 = vld [vmem:[%s291 + $0x18] sm:$0xff]
          %v1328 = vld [vmem:[%s291 + $0x20] sm:$0xff]
          %v1329 = vld [vmem:[%s291 + $0x28] sm:$0xff]
          %v1330 = vld [vmem:[%s291 + $0x30] sm:$0xff]
          %v1331 = vld [vmem:[%s291 + $0x38] sm:$0xff]
          %v1332 = vld [vmem:[%s291 + $0x40] sm:$0xff]
          %v1333 = vld [vmem:[%s291 + $0x48] sm:$0xff]
          %v1334 = vld [vmem:[%s291 + $0x50] sm:$0xff]
          %v1335 = vld [vmem:[%s291 + $0x58] sm:$0xff]
          %v1336 = vld [vmem:[%s291 + $0x60] sm:$0xff]
          %v1337 = vld [vmem:[%s291 + $0x68] sm:$0xff]
          %v1338 = vld [vmem:[%s291 + $0x70] sm:$0xff]
          %v1339 = vld [vmem:[%s291 + $0x78] sm:$0xff]
          %v1340 = vmul.f32 %v1324, %v1324
          %v1341 = vmul.f32 %v1325, %v1325
          %v1342 = vmul.f32 %v1326, %v1326
          %v1343 = vmul.f32 %v1327, %v1327
          %v1344 = vmul.f32 %v1328, %v1328
          %v1345 = vmul.f32 %v1329, %v1329
          %v1346 = vmul.f32 %v1330, %v1330
          %v1347 = vmul.f32 %v1331, %v1331
          %v1348 = vmul.f32 %v1332, %v1332
          %v1349 = vmul.f32 %v1333, %v1333
          %v1350 = vmul.f32 %v1334, %v1334
          %v1351 = vmul.f32 %v1335, %v1335
          %v1352 = vmul.f32 %v1336, %v1336
          %v1353 = vmul.f32 %v1337, %v1337
          %v1354 = vmul.f32 %v1338, %v1338
          %v1355 = vmul.f32 %v1339, %v1339
          %1356 = vadd.xlane.f32.xlu0 %v1340
          %v1357 = vpop.xlane.xlu0 %1356
          %1358 = vadd.xlane.f32.xlu0 %v1341
          %v1359 = vpop.xlane.xlu0 %1358
          %1360 = vadd.xlane.f32.xlu0 %v1342
          %v1361 = vpop.xlane.xlu0 %1360
          %1362 = vadd.xlane.f32.xlu0 %v1343
          %v1363 = vpop.xlane.xlu0 %1362
          %1364 = vadd.xlane.f32.xlu0 %v1344
          %v1365 = vpop.xlane.xlu0 %1364
          %1366 = vadd.xlane.f32.xlu0 %v1345
          %v1367 = vpop.xlane.xlu0 %1366
          %1368 = vadd.xlane.f32.xlu0 %v1346
          %v1369 = vpop.xlane.xlu0 %1368
          %1370 = vadd.xlane.f32.xlu0 %v1347
          %v1371 = vpop.xlane.xlu0 %1370
          %1372 = vadd.xlane.f32.xlu0 %v1348
          %v1373 = vpop.xlane.xlu0 %1372
          %1374 = vadd.xlane.f32.xlu0 %v1349
          %v1375 = vpop.xlane.xlu0 %1374
          %1376 = vadd.xlane.f32.xlu0 %v1350
          %v1377 = vpop.xlane.xlu0 %1376
          %1378 = vadd.xlane.f32.xlu0 %v1351
          %v1379 = vpop.xlane.xlu0 %1378
          %1380 = vadd.xlane.f32.xlu0 %v1352
          %v1381 = vpop.xlane.xlu0 %1380
          %1382 = vadd.xlane.f32.xlu0 %v1353
          %v1383 = vpop.xlane.xlu0 %1382
          %1384 = vadd.xlane.f32.xlu0 %v1354
          %v1385 = vpop.xlane.xlu0 %1384
          %1386 = vadd.xlane.f32.xlu0 %v1355
          %v1387 = vpop.xlane.xlu0 %1386
          %v1388 = vrsqrt.pop %v1357
          %v1389 = vmul.f32 %v1357, %v1388
          %vm1390 = vcmp.eq.f32.partialorder %v1357, inf
          %v1391 = vsel %vm1390, %v1357, %v1389
          %vm1392 = vcmp.eq.f32.partialorder %v1357, 0.0
          %v1393 = vand.u32 %v1357, 2147483648
          %v1394 = vsel %vm1392, %v1393, %v1391
          %v1395 = vrsqrt.pop %v1359
          %v1396 = vmul.f32 %v1359, %v1395
          %vm1397 = vcmp.eq.f32.partialorder %v1359, inf
          %v1398 = vsel %vm1397, %v1359, %v1396
          %vm1399 = vcmp.eq.f32.partialorder %v1359, 0.0
          %v1400 = vand.u32 %v1359, 2147483648
          %v1401 = vsel %vm1399, %v1400, %v1398
          %v1402 = vrsqrt.pop %v1361
          %v1403 = vmul.f32 %v1361, %v1402
          %vm1404 = vcmp.eq.f32.partialorder %v1361, inf
          %v1405 = vsel %vm1404, %v1361, %v1403
          %vm1406 = vcmp.eq.f32.partialorder %v1361, 0.0
          %v1407 = vand.u32 %v1361, 2147483648
          %v1408 = vsel %vm1406, %v1407, %v1405
          %v1409 = vrsqrt.pop %v1363
          %v1410 = vmul.f32 %v1363, %v1409
          %vm1411 = vcmp.eq.f32.partialorder %v1363, inf
          %v1412 = vsel %vm1411, %v1363, %v1410
          %vm1413 = vcmp.eq.f32.partialorder %v1363, 0.0
          %v1414 = vand.u32 %v1363, 2147483648
          %v1415 = vsel %vm1413, %v1414, %v1412
          %v1416 = vrsqrt.pop %v1365
          %v1417 = vmul.f32 %v1365, %v1416
          %vm1418 = vcmp.eq.f32.partialorder %v1365, inf
          %v1419 = vsel %vm1418, %v1365, %v1417
          %vm1420 = vcmp.eq.f32.partialorder %v1365, 0.0
          %v1421 = vand.u32 %v1365, 2147483648
          %v1422 = vsel %vm1420, %v1421, %v1419
          %v1423 = vrsqrt.pop %v1367
          %v1424 = vmul.f32 %v1367, %v1423
          %vm1425 = vcmp.eq.f32.partialorder %v1367, inf
          %v1426 = vsel %vm1425, %v1367, %v1424
          %vm1427 = vcmp.eq.f32.partialorder %v1367, 0.0
          %v1428 = vand.u32 %v1367, 2147483648
          %v1429 = vsel %vm1427, %v1428, %v1426
          %v1430 = vrsqrt.pop %v1369
          %v1431 = vmul.f32 %v1369, %v1430
          %vm1432 = vcmp.eq.f32.partialorder %v1369, inf
          %v1433 = vsel %vm1432, %v1369, %v1431
          %vm1434 = vcmp.eq.f32.partialorder %v1369, 0.0
          %v1435 = vand.u32 %v1369, 2147483648
          %v1436 = vsel %vm1434, %v1435, %v1433
          %v1437 = vrsqrt.pop %v1371
          %v1438 = vmul.f32 %v1371, %v1437
          %vm1439 = vcmp.eq.f32.partialorder %v1371, inf
          %v1440 = vsel %vm1439, %v1371, %v1438
          %vm1441 = vcmp.eq.f32.partialorder %v1371, 0.0
          %v1442 = vand.u32 %v1371, 2147483648
          %v1443 = vsel %vm1441, %v1442, %v1440
          %v1444 = vrsqrt.pop %v1373
          %v1445 = vmul.f32 %v1373, %v1444
          %vm1446 = vcmp.eq.f32.partialorder %v1373, inf
          %v1447 = vsel %vm1446, %v1373, %v1445
          %vm1448 = vcmp.eq.f32.partialorder %v1373, 0.0
          %v1449 = vand.u32 %v1373, 2147483648
          %v1450 = vsel %vm1448, %v1449, %v1447
          %v1451 = vrsqrt.pop %v1375
          %v1452 = vmul.f32 %v1375, %v1451
          %vm1453 = vcmp.eq.f32.partialorder %v1375, inf
          %v1454 = vsel %vm1453, %v1375, %v1452
          %vm1455 = vcmp.eq.f32.partialorder %v1375, 0.0
          %v1456 = vand.u32 %v1375, 2147483648
          %v1457 = vsel %vm1455, %v1456, %v1454
          %v1458 = vrsqrt.pop %v1377
          %v1459 = vmul.f32 %v1377, %v1458
          %vm1460 = vcmp.eq.f32.partialorder %v1377, inf
          %v1461 = vsel %vm1460, %v1377, %v1459
          %vm1462 = vcmp.eq.f32.partialorder %v1377, 0.0
          %v1463 = vand.u32 %v1377, 2147483648
          %v1464 = vsel %vm1462, %v1463, %v1461
          %v1465 = vrsqrt.pop %v1379
          %v1466 = vmul.f32 %v1379, %v1465
          %vm1467 = vcmp.eq.f32.partialorder %v1379, inf
          %v1468 = vsel %vm1467, %v1379, %v1466
          %vm1469 = vcmp.eq.f32.partialorder %v1379, 0.0
          %v1470 = vand.u32 %v1379, 2147483648
          %v1471 = vsel %vm1469, %v1470, %v1468
          %v1472 = vrsqrt.pop %v1381
          %v1473 = vmul.f32 %v1381, %v1472
          %vm1474 = vcmp.eq.f32.partialorder %v1381, inf
          %v1475 = vsel %vm1474, %v1381, %v1473
          %vm1476 = vcmp.eq.f32.partialorder %v1381, 0.0
          %v1477 = vand.u32 %v1381, 2147483648
          %v1478 = vsel %vm1476, %v1477, %v1475
          %v1479 = vrsqrt.pop %v1383
          %v1480 = vmul.f32 %v1383, %v1479
          %vm1481 = vcmp.eq.f32.partialorder %v1383, inf
          %v1482 = vsel %vm1481, %v1383, %v1480
          %vm1483 = vcmp.eq.f32.partialorder %v1383, 0.0
          %v1484 = vand.u32 %v1383, 2147483648
          %v1485 = vsel %vm1483, %v1484, %v1482
          %v1486 = vrsqrt.pop %v1385
          %v1487 = vmul.f32 %v1385, %v1486
          %vm1488 = vcmp.eq.f32.partialorder %v1385, inf
          %v1489 = vsel %vm1488, %v1385, %v1487
          %vm1490 = vcmp.eq.f32.partialorder %v1385, 0.0
          %v1491 = vand.u32 %v1385, 2147483648
          %v1492 = vsel %vm1490, %v1491, %v1489
          %v1493 = vrsqrt.pop %v1387
          %v1494 = vmul.f32 %v1387, %v1493
          %vm1495 = vcmp.eq.f32.partialorder %v1387, inf
          %v1496 = vsel %vm1495, %v1387, %v1494
          %vm1497 = vcmp.eq.f32.partialorder %v1387, 0.0
          %v1498 = vand.u32 %v1387, 2147483648
          %v1499 = vsel %vm1497, %v1498, %v1496
          %v1500 = vmax.f32 %v1394, 1e-15
          %v1501 = vmax.f32 %v1401, 1e-15
          %v1502 = vmax.f32 %v1408, 1e-15
          %v1503 = vmax.f32 %v1415, 1e-15
          %v1504 = vmax.f32 %v1422, 1e-15
          %v1505 = vmax.f32 %v1429, 1e-15
          %v1506 = vmax.f32 %v1436, 1e-15
          %v1507 = vmax.f32 %v1443, 1e-15
          %v1508 = vmax.f32 %v1450, 1e-15
          %v1509 = vmax.f32 %v1457, 1e-15
          %v1510 = vmax.f32 %v1464, 1e-15
          %v1511 = vmax.f32 %v1471, 1e-15
          %v1512 = vmax.f32 %v1478, 1e-15
          %v1513 = vmax.f32 %v1485, 1e-15
          %v1514 = vmax.f32 %v1492, 1e-15
          %v1515 = vmax.f32 %v1499, 1e-15
          %v1516 = vmul.f32 %v1308, %v1308
          %v1517 = vmul.f32 %v1309, %v1309
          %v1518 = vmul.f32 %v1310, %v1310
          %v1519 = vmul.f32 %v1311, %v1311
          %v1520 = vmul.f32 %v1312, %v1312
          %v1521 = vmul.f32 %v1313, %v1313
          %v1522 = vmul.f32 %v1314, %v1314
          %v1523 = vmul.f32 %v1315, %v1315
          %v1524 = vmul.f32 %v1316, %v1316
          %v1525 = vmul.f32 %v1317, %v1317
          %v1526 = vmul.f32 %v1318, %v1318
          %v1527 = vmul.f32 %v1319, %v1319
          %v1528 = vmul.f32 %v1320, %v1320
          %v1529 = vmul.f32 %v1321, %v1321
          %v1530 = vmul.f32 %v1322, %v1322
          %v1531 = vmul.f32 %v1323, %v1323
          %v1532 = vsub.f32 1.0, %v1516
          %v1533 = vsub.f32 1.0, %v1517
          %v1534 = vsub.f32 1.0, %v1518
          %v1535 = vsub.f32 1.0, %v1519
          %v1536 = vsub.f32 1.0, %v1520
          %v1537 = vsub.f32 1.0, %v1521
          %v1538 = vsub.f32 1.0, %v1522
          %v1539 = vsub.f32 1.0, %v1523
          %v1540 = vsub.f32 1.0, %v1524
          %v1541 = vsub.f32 1.0, %v1525
          %v1542 = vsub.f32 1.0, %v1526
          %v1543 = vsub.f32 1.0, %v1527
          %v1544 = vsub.f32 1.0, %v1528
          %v1545 = vsub.f32 1.0, %v1529
          %v1546 = vsub.f32 1.0, %v1530
          %v1547 = vsub.f32 1.0, %v1531
          %v1548 = vmax.f32 %v1532, 1e-15
          %v1549 = vmax.f32 %v1533, 1e-15
          %v1550 = vmax.f32 %v1534, 1e-15
          %v1551 = vmax.f32 %v1535, 1e-15
          %v1552 = vmax.f32 %v1536, 1e-15
          %v1553 = vmax.f32 %v1537, 1e-15
          %v1554 = vmax.f32 %v1538, 1e-15
          %v1555 = vmax.f32 %v1539, 1e-15
          %v1556 = vmax.f32 %v1540, 1e-15
          %v1557 = vmax.f32 %v1541, 1e-15
          %v1558 = vmax.f32 %v1542, 1e-15
          %v1559 = vmax.f32 %v1543, 1e-15
          %v1560 = vmax.f32 %v1544, 1e-15
          %v1561 = vmax.f32 %v1545, 1e-15
          %v1562 = vmax.f32 %v1546, 1e-15
          %v1563 = vmax.f32 %v1547, 1e-15
          %v1564 = vrcp.pop %v1548
          %v1565 = vmul.f32 2.0, %v1564
          %v1566 = vrcp.pop %v1549
          %v1567 = vmul.f32 2.0, %v1566
          %v1568 = vrcp.pop %v1550
          %v1569 = vmul.f32 2.0, %v1568
          %v1570 = vrcp.pop %v1551
          %v1571 = vmul.f32 2.0, %v1570
          %v1572 = vrcp.pop %v1552
          %v1573 = vmul.f32 2.0, %v1572
          %v1574 = vrcp.pop %v1553
          %v1575 = vmul.f32 2.0, %v1574
          %v1576 = vrcp.pop %v1554
          %v1577 = vmul.f32 2.0, %v1576
          %v1578 = vrcp.pop %v1555
          %v1579 = vmul.f32 2.0, %v1578
          %v1580 = vrcp.pop %v1556
          %v1581 = vmul.f32 2.0, %v1580
          %v1582 = vrcp.pop %v1557
          %v1583 = vmul.f32 2.0, %v1582
          %v1584 = vrcp.pop %v1558
          %v1585 = vmul.f32 2.0, %v1584
          %v1586 = vrcp.pop %v1559
          %v1587 = vmul.f32 2.0, %v1586
          %v1588 = vrcp.pop %v1560
          %v1589 = vmul.f32 2.0, %v1588
          %v1590 = vrcp.pop %v1561
          %v1591 = vmul.f32 2.0, %v1590
          %v1592 = vrcp.pop %v1562
          %v1593 = vmul.f32 2.0, %v1592
          %v1594 = vrcp.pop %v1563
          %v1595 = vmul.f32 2.0, %v1594
          %v1596 = vmul.f32 %v1500, %v1500
          %v1597 = vmul.f32 %v1501, %v1501
          %v1598 = vmul.f32 %v1502, %v1502
          %v1599 = vmul.f32 %v1503, %v1503
          %v1600 = vmul.f32 %v1504, %v1504
          %v1601 = vmul.f32 %v1505, %v1505
          %v1602 = vmul.f32 %v1506, %v1506
          %v1603 = vmul.f32 %v1507, %v1507
          %v1604 = vmul.f32 %v1508, %v1508
          %v1605 = vmul.f32 %v1509, %v1509
          %v1606 = vmul.f32 %v1510, %v1510
          %v1607 = vmul.f32 %v1511, %v1511
          %v1608 = vmul.f32 %v1512, %v1512
          %v1609 = vmul.f32 %v1513, %v1513
          %v1610 = vmul.f32 %v1514, %v1514
          %v1611 = vmul.f32 %v1515, %v1515
          %v1612 = vsub.f32 1.0, %v1596
          %v1613 = vsub.f32 1.0, %v1597
          %v1614 = vsub.f32 1.0, %v1598
          %v1615 = vsub.f32 1.0, %v1599
          %v1616 = vsub.f32 1.0, %v1600
          %v1617 = vsub.f32 1.0, %v1601
          %v1618 = vsub.f32 1.0, %v1602
          %v1619 = vsub.f32 1.0, %v1603
          %v1620 = vsub.f32 1.0, %v1604
          %v1621 = vsub.f32 1.0, %v1605
          %v1622 = vsub.f32 1.0, %v1606
          %v1623 = vsub.f32 1.0, %v1607
          %v1624 = vsub.f32 1.0, %v1608
          %v1625 = vsub.f32 1.0, %v1609
          %v1626 = vsub.f32 1.0, %v1610
          %v1627 = vsub.f32 1.0, %v1611
          %v1628 = vmax.f32 %v1612, 1e-15
          %v1629 = vmax.f32 %v1613, 1e-15
          %v1630 = vmax.f32 %v1614, 1e-15
          %v1631 = vmax.f32 %v1615, 1e-15
          %v1632 = vmax.f32 %v1616, 1e-15
          %v1633 = vmax.f32 %v1617, 1e-15
          %v1634 = vmax.f32 %v1618, 1e-15
          %v1635 = vmax.f32 %v1619, 1e-15
          %v1636 = vmax.f32 %v1620, 1e-15
          %v1637 = vmax.f32 %v1621, 1e-15
          %v1638 = vmax.f32 %v1622, 1e-15
          %v1639 = vmax.f32 %v1623, 1e-15
          %v1640 = vmax.f32 %v1624, 1e-15
          %v1641 = vmax.f32 %v1625, 1e-15
          %v1642 = vmax.f32 %v1626, 1e-15
          %v1643 = vmax.f32 %v1627, 1e-15
          %v1644 = vrcp.pop %v1628
          %v1645 = vmul.f32 2.0, %v1644
          %v1646 = vrcp.pop %v1629
          %v1647 = vmul.f32 2.0, %v1646
          %v1648 = vrcp.pop %v1630
          %v1649 = vmul.f32 2.0, %v1648
          %v1650 = vrcp.pop %v1631
          %v1651 = vmul.f32 2.0, %v1650
          %v1652 = vrcp.pop %v1632
          %v1653 = vmul.f32 2.0, %v1652
          %v1654 = vrcp.pop %v1633
          %v1655 = vmul.f32 2.0, %v1654
          %v1656 = vrcp.pop %v1634
          %v1657 = vmul.f32 2.0, %v1656
          %v1658 = vrcp.pop %v1635
          %v1659 = vmul.f32 2.0, %v1658
          %v1660 = vrcp.pop %v1636
          %v1661 = vmul.f32 2.0, %v1660
          %v1662 = vrcp.pop %v1637
          %v1663 = vmul.f32 2.0, %v1662
          %v1664 = vrcp.pop %v1638
          %v1665 = vmul.f32 2.0, %v1664
          %v1666 = vrcp.pop %v1639
          %v1667 = vmul.f32 2.0, %v1666
          %v1668 = vrcp.pop %v1640
          %v1669 = vmul.f32 2.0, %v1668
          %v1670 = vrcp.pop %v1641
          %v1671 = vmul.f32 2.0, %v1670
          %v1672 = vrcp.pop %v1642
          %v1673 = vmul.f32 2.0, %v1672
          %v1674 = vrcp.pop %v1643
          %v1675 = vmul.f32 2.0, %v1674
          %v1676 = vsub.f32 %v1565, 1.0
          %v1677 = vsub.f32 %v1567, 1.0
          %v1678 = vsub.f32 %v1569, 1.0
          %v1679 = vsub.f32 %v1571, 1.0
          %v1680 = vsub.f32 %v1573, 1.0
          %v1681 = vsub.f32 %v1575, 1.0
          %v1682 = vsub.f32 %v1577, 1.0
          %v1683 = vsub.f32 %v1579, 1.0
          %v1684 = vsub.f32 %v1581, 1.0
          %v1685 = vsub.f32 %v1583, 1.0
          %v1686 = vsub.f32 %v1585, 1.0
          %v1687 = vsub.f32 %v1587, 1.0
          %v1688 = vsub.f32 %v1589, 1.0
          %v1689 = vsub.f32 %v1591, 1.0
          %v1690 = vsub.f32 %v1593, 1.0
          %v1691 = vsub.f32 %v1595, 1.0
          %v1692 = vmul.f32 %v1676, 0.9
          %v1693 = vmul.f32 %v1677, 0.9
          %v1694 = vmul.f32 %v1678, 0.9
          %v1695 = vmul.f32 %v1679, 0.9
          %v1696 = vmul.f32 %v1680, 0.9
          %v1697 = vmul.f32 %v1681, 0.9
          %v1698 = vmul.f32 %v1682, 0.9
          %v1699 = vmul.f32 %v1683, 0.9
          %v1700 = vmul.f32 %v1684, 0.9
          %v1701 = vmul.f32 %v1685, 0.9
          %v1702 = vmul.f32 %v1686, 0.9
          %v1703 = vmul.f32 %v1687, 0.9
          %v1704 = vmul.f32 %v1688, 0.9
          %v1705 = vmul.f32 %v1689, 0.9
          %v1706 = vmul.f32 %v1690, 0.9
          %v1707 = vmul.f32 %v1691, 0.9
          %v1708 = vsub.f32 %v1645, 1.0
          %v1709 = vsub.f32 %v1647, 1.0
          %v1710 = vsub.f32 %v1649, 1.0
          %v1711 = vsub.f32 %v1651, 1.0
          %v1712 = vsub.f32 %v1653, 1.0
          %v1713 = vsub.f32 %v1655, 1.0
          %v1714 = vsub.f32 %v1657, 1.0
          %v1715 = vsub.f32 %v1659, 1.0
          %v1716 = vsub.f32 %v1661, 1.0
          %v1717 = vsub.f32 %v1663, 1.0
          %v1718 = vsub.f32 %v1665, 1.0
          %v1719 = vsub.f32 %v1667, 1.0
          %v1720 = vsub.f32 %v1669, 1.0
          %v1721 = vsub.f32 %v1671, 1.0
          %v1722 = vsub.f32 %v1673, 1.0
          %v1723 = vsub.f32 %v1675, 1.0
          %v1724 = vmul.f32 %v1708, 0.1
          %v1725 = vmul.f32 %v1709, 0.1
          %v1726 = vmul.f32 %v1710, 0.1
          %v1727 = vmul.f32 %v1711, 0.1
          %v1728 = vmul.f32 %v1712, 0.1
          %v1729 = vmul.f32 %v1713, 0.1
          %v1730 = vmul.f32 %v1714, 0.1
          %v1731 = vmul.f32 %v1715, 0.1
          %v1732 = vmul.f32 %v1716, 0.1
          %v1733 = vmul.f32 %v1717, 0.1
          %v1734 = vmul.f32 %v1718, 0.1
          %v1735 = vmul.f32 %v1719, 0.1
          %v1736 = vmul.f32 %v1720, 0.1
          %v1737 = vmul.f32 %v1721, 0.1
          %v1738 = vmul.f32 %v1722, 0.1
          %v1739 = vmul.f32 %v1723, 0.1
          %v1740 = vadd.f32 %v1692, %v1724
          %v1741 = vadd.f32 %v1693, %v1725
          %v1742 = vadd.f32 %v1694, %v1726
          %v1743 = vadd.f32 %v1695, %v1727
          %v1744 = vadd.f32 %v1696, %v1728
          %v1745 = vadd.f32 %v1697, %v1729
          %v1746 = vadd.f32 %v1698, %v1730
          %v1747 = vadd.f32 %v1699, %v1731
          %v1748 = vadd.f32 %v1700, %v1732
          %v1749 = vadd.f32 %v1701, %v1733
          %v1750 = vadd.f32 %v1702, %v1734
          %v1751 = vadd.f32 %v1703, %v1735
          %v1752 = vadd.f32 %v1704, %v1736
          %v1753 = vadd.f32 %v1705, %v1737
          %v1754 = vadd.f32 %v1706, %v1738
          %v1755 = vadd.f32 %v1707, %v1739
          %vm1756 = vcmp.ge.f32.partialorder %v1740, 0.0
          %vm1757 = vcmp.ge.f32.partialorder %v1741, 0.0
          %vm1758 = vcmp.ge.f32.partialorder %v1742, 0.0
          %vm1759 = vcmp.ge.f32.partialorder %v1743, 0.0
          %vm1760 = vcmp.ge.f32.partialorder %v1744, 0.0
          %vm1761 = vcmp.ge.f32.partialorder %v1745, 0.0
          %vm1762 = vcmp.ge.f32.partialorder %v1746, 0.0
          %vm1763 = vcmp.ge.f32.partialorder %v1747, 0.0
          %vm1764 = vcmp.ge.f32.partialorder %v1748, 0.0
          %vm1765 = vcmp.ge.f32.partialorder %v1749, 0.0
          %vm1766 = vcmp.ge.f32.partialorder %v1750, 0.0
          %vm1767 = vcmp.ge.f32.partialorder %v1751, 0.0
          %vm1768 = vcmp.ge.f32.partialorder %v1752, 0.0
          %vm1769 = vcmp.ge.f32.partialorder %v1753, 0.0
          %vm1770 = vcmp.ge.f32.partialorder %v1754, 0.0
          %vm1771 = vcmp.ge.f32.partialorder %v1755, 0.0
          %v1772 = vmax.f32 %v1740, 1e-10
          %v1773 = vmax.f32 %v1741, 1e-10
          %v1774 = vmax.f32 %v1742, 1e-10
          %v1775 = vmax.f32 %v1743, 1e-10
          %v1776 = vmax.f32 %v1744, 1e-10
          %v1777 = vmax.f32 %v1745, 1e-10
          %v1778 = vmax.f32 %v1746, 1e-10
          %v1779 = vmax.f32 %v1747, 1e-10
          %v1780 = vmax.f32 %v1748, 1e-10
          %v1781 = vmax.f32 %v1749, 1e-10
          %v1782 = vmax.f32 %v1750, 1e-10
          %v1783 = vmax.f32 %v1751, 1e-10
          %v1784 = vmax.f32 %v1752, 1e-10
          %v1785 = vmax.f32 %v1753, 1e-10
          %v1786 = vmax.f32 %v1754, 1e-10
          %v1787 = vmax.f32 %v1755, 1e-10
          %v1788 = vmin.f32 %v1740, -1e-10
          %v1789 = vmin.f32 %v1741, -1e-10
          %v1790 = vmin.f32 %v1742, -1e-10
          %v1791 = vmin.f32 %v1743, -1e-10
          %v1792 = vmin.f32 %v1744, -1e-10
          %v1793 = vmin.f32 %v1745, -1e-10
          %v1794 = vmin.f32 %v1746, -1e-10
          %v1795 = vmin.f32 %v1747, -1e-10
          %v1796 = vmin.f32 %v1748, -1e-10
          %v1797 = vmin.f32 %v1749, -1e-10
          %v1798 = vmin.f32 %v1750, -1e-10
          %v1799 = vmin.f32 %v1751, -1e-10
          %v1800 = vmin.f32 %v1752, -1e-10
          %v1801 = vmin.f32 %v1753, -1e-10
          %v1802 = vmin.f32 %v1754, -1e-10
          %v1803 = vmin.f32 %v1755, -1e-10
          %v1804 = vsel %vm1756, %v1772, %v1788
          %v1805 = vsel %vm1757, %v1773, %v1789
          %v1806 = vsel %vm1758, %v1774, %v1790
          %v1807 = vsel %vm1759, %v1775, %v1791
          %v1808 = vsel %vm1760, %v1776, %v1792
          %v1809 = vsel %vm1761, %v1777, %v1793
          %v1810 = vsel %vm1762, %v1778, %v1794
          %v1811 = vsel %vm1763, %v1779, %v1795
          %v1812 = vsel %vm1764, %v1780, %v1796
          %v1813 = vsel %vm1765, %v1781, %v1797
          %v1814 = vsel %vm1766, %v1782, %v1798
          %v1815 = vsel %vm1767, %v1783, %v1799
          %v1816 = vsel %vm1768, %v1784, %v1800
          %v1817 = vsel %vm1769, %v1785, %v1801
          %v1818 = vsel %vm1770, %v1786, %v1802
          %v1819 = vsel %vm1771, %v1787, %v1803
          %v1820 = vmul.f32 %v1565, 0.9
          %v1821 = vmul.f32 %v1567, 0.9
          %v1822 = vmul.f32 %v1569, 0.9
          %v1823 = vmul.f32 %v1571, 0.9
          %v1824 = vmul.f32 %v1573, 0.9
          %v1825 = vmul.f32 %v1575, 0.9
          %v1826 = vmul.f32 %v1577, 0.9
          %v1827 = vmul.f32 %v1579, 0.9
          %v1828 = vmul.f32 %v1581, 0.9
          %v1829 = vmul.f32 %v1583, 0.9
          %v1830 = vmul.f32 %v1585, 0.9
          %v1831 = vmul.f32 %v1587, 0.9
          %v1832 = vmul.f32 %v1589, 0.9
          %v1833 = vmul.f32 %v1591, 0.9
          %v1834 = vmul.f32 %v1593, 0.9
          %v1835 = vmul.f32 %v1595, 0.9
          %v1836 = vmul.f32 %v1820, %v1292
          %v1837 = vmul.f32 %v1821, %v1293
          %v1838 = vmul.f32 %v1822, %v1294
          %v1839 = vmul.f32 %v1823, %v1295
          %v1840 = vmul.f32 %v1824, %v1296
          %v1841 = vmul.f32 %v1825, %v1297
          %v1842 = vmul.f32 %v1826, %v1298
          %v1843 = vmul.f32 %v1827, %v1299
          %v1844 = vmul.f32 %v1828, %v1300
          %v1845 = vmul.f32 %v1829, %v1301
          %v1846 = vmul.f32 %v1830, %v1302
          %v1847 = vmul.f32 %v1831, %v1303
          %v1848 = vmul.f32 %v1832, %v1304
          %v1849 = vmul.f32 %v1833, %v1305
          %v1850 = vmul.f32 %v1834, %v1306
          %v1851 = vmul.f32 %v1835, %v1307
          %v1852 = vmul.f32 %v1645, 0.1
          %v1853 = vmul.f32 %v1647, 0.1
          %v1854 = vmul.f32 %v1649, 0.1
          %v1855 = vmul.f32 %v1651, 0.1
          %v1856 = vmul.f32 %v1653, 0.1
          %v1857 = vmul.f32 %v1655, 0.1
          %v1858 = vmul.f32 %v1657, 0.1
          %v1859 = vmul.f32 %v1659, 0.1
          %v1860 = vmul.f32 %v1661, 0.1
          %v1861 = vmul.f32 %v1663, 0.1
          %v1862 = vmul.f32 %v1665, 0.1
          %v1863 = vmul.f32 %v1667, 0.1
          %v1864 = vmul.f32 %v1669, 0.1
          %v1865 = vmul.f32 %v1671, 0.1
          %v1866 = vmul.f32 %v1673, 0.1
          %v1867 = vmul.f32 %v1675, 0.1
          %v1868 = vmul.f32 %v1852, %v1324
          %v1869 = vmul.f32 %v1853, %v1325
          %v1870 = vmul.f32 %v1854, %v1326
          %v1871 = vmul.f32 %v1855, %v1327
          %v1872 = vmul.f32 %v1856, %v1328
          %v1873 = vmul.f32 %v1857, %v1329
          %v1874 = vmul.f32 %v1858, %v1330
          %v1875 = vmul.f32 %v1859, %v1331
          %v1876 = vmul.f32 %v1860, %v1332
          %v1877 = vmul.f32 %v1861, %v1333
          %v1878 = vmul.f32 %v1862, %v1334
          %v1879 = vmul.f32 %v1863, %v1335
          %v1880 = vmul.f32 %v1864, %v1336
          %v1881 = vmul.f32 %v1865, %v1337
          %v1882 = vmul.f32 %v1866, %v1338
          %v1883 = vmul.f32 %v1867, %v1339
          %v1884 = vadd.f32 %v1836, %v1868
          %v1885 = vadd.f32 %v1837, %v1869
          %v1886 = vadd.f32 %v1838, %v1870
          %v1887 = vadd.f32 %v1839, %v1871
          %v1888 = vadd.f32 %v1840, %v1872
          %v1889 = vadd.f32 %v1841, %v1873
          %v1890 = vadd.f32 %v1842, %v1874
          %v1891 = vadd.f32 %v1843, %v1875
          %v1892 = vadd.f32 %v1844, %v1876
          %v1893 = vadd.f32 %v1845, %v1877
          %v1894 = vadd.f32 %v1846, %v1878
          %v1895 = vadd.f32 %v1847, %v1879
          %v1896 = vadd.f32 %v1848, %v1880
          %v1897 = vadd.f32 %v1849, %v1881
          %v1898 = vadd.f32 %v1850, %v1882
          %v1899 = vadd.f32 %v1851, %v1883
          %v1900 = vrcp.pop %v1804
          %v1901 = vmul.f32 %v1884, %v1900
          %v1902 = vrcp.pop %v1805
          %v1903 = vmul.f32 %v1885, %v1902
          %v1904 = vrcp.pop %v1806
          %v1905 = vmul.f32 %v1886, %v1904
          %v1906 = vrcp.pop %v1807
          %v1907 = vmul.f32 %v1887, %v1906
          %v1908 = vrcp.pop %v1808
          %v1909 = vmul.f32 %v1888, %v1908
          %v1910 = vrcp.pop %v1809
          %v1911 = vmul.f32 %v1889, %v1910
          %v1912 = vrcp.pop %v1810
          %v1913 = vmul.f32 %v1890, %v1912
          %v1914 = vrcp.pop %v1811
          %v1915 = vmul.f32 %v1891, %v1914
          %v1916 = vrcp.pop %v1812
          %v1917 = vmul.f32 %v1892, %v1916
          %v1918 = vrcp.pop %v1813
          %v1919 = vmul.f32 %v1893, %v1918
          %v1920 = vrcp.pop %v1814
          %v1921 = vmul.f32 %v1894, %v1920
          %v1922 = vrcp.pop %v1815
          %v1923 = vmul.f32 %v1895, %v1922
          %v1924 = vrcp.pop %v1816
          %v1925 = vmul.f32 %v1896, %v1924
          %v1926 = vrcp.pop %v1817
          %v1927 = vmul.f32 %v1897, %v1926
          %v1928 = vrcp.pop %v1818
          %v1929 = vmul.f32 %v1898, %v1928
          %v1930 = vrcp.pop %v1819
          %v1931 = vmul.f32 %v1899, %v1930
          %v1932 = vmul.f32 %v1901, %v1901
          %v1933 = vmul.f32 %v1903, %v1903
          %v1934 = vmul.f32 %v1905, %v1905
          %v1935 = vmul.f32 %v1907, %v1907
          %v1936 = vmul.f32 %v1909, %v1909
          %v1937 = vmul.f32 %v1911, %v1911
          %v1938 = vmul.f32 %v1913, %v1913
          %v1939 = vmul.f32 %v1915, %v1915
          %v1940 = vmul.f32 %v1917, %v1917
          %v1941 = vmul.f32 %v1919, %v1919
          %v1942 = vmul.f32 %v1921, %v1921
          %v1943 = vmul.f32 %v1923, %v1923
          %v1944 = vmul.f32 %v1925, %v1925
          %v1945 = vmul.f32 %v1927, %v1927
          %v1946 = vmul.f32 %v1929, %v1929
          %v1947 = vmul.f32 %v1931, %v1931
          %1948 = vadd.xlane.f32.xlu0 %v1932
          %v1949 = vpop.xlane.xlu0 %1948
          %1950 = vadd.xlane.f32.xlu0 %v1933
          %v1951 = vpop.xlane.xlu0 %1950
          %1952 = vadd.xlane.f32.xlu0 %v1934
          %v1953 = vpop.xlane.xlu0 %1952
          %1954 = vadd.xlane.f32.xlu0 %v1935
          %v1955 = vpop.xlane.xlu0 %1954
          %1956 = vadd.xlane.f32.xlu0 %v1936
          %v1957 = vpop.xlane.xlu0 %1956
          %1958 = vadd.xlane.f32.xlu0 %v1937
          %v1959 = vpop.xlane.xlu0 %1958
          %1960 = vadd.xlane.f32.xlu0 %v1938
          %v1961 = vpop.xlane.xlu0 %1960
          %1962 = vadd.xlane.f32.xlu0 %v1939
          %v1963 = vpop.xlane.xlu0 %1962
          %1964 = vadd.xlane.f32.xlu0 %v1940
          %v1965 = vpop.xlane.xlu0 %1964
          %1966 = vadd.xlane.f32.xlu0 %v1941
          %v1967 = vpop.xlane.xlu0 %1966
          %1968 = vadd.xlane.f32.xlu0 %v1942
          %v1969 = vpop.xlane.xlu0 %1968
          %1970 = vadd.xlane.f32.xlu0 %v1943
          %v1971 = vpop.xlane.xlu0 %1970
          %1972 = vadd.xlane.f32.xlu0 %v1944
          %v1973 = vpop.xlane.xlu0 %1972
          %1974 = vadd.xlane.f32.xlu0 %v1945
          %v1975 = vpop.xlane.xlu0 %1974
          %1976 = vadd.xlane.f32.xlu0 %v1946
          %v1977 = vpop.xlane.xlu0 %1976
          %1978 = vadd.xlane.f32.xlu0 %v1947
          %v1979 = vpop.xlane.xlu0 %1978
          %v1980 = vrsqrt.pop %v1949
          %v1981 = vmul.f32 %v1949, %v1980
          %vm1982 = vcmp.eq.f32.partialorder %v1949, inf
          %v1983 = vsel %vm1982, %v1949, %v1981
          %vm1984 = vcmp.eq.f32.partialorder %v1949, 0.0
          %v1985 = vand.u32 %v1949, 2147483648
          %v1986 = vsel %vm1984, %v1985, %v1983
          %v1987 = vrsqrt.pop %v1951
          %v1988 = vmul.f32 %v1951, %v1987
          %vm1989 = vcmp.eq.f32.partialorder %v1951, inf
          %v1990 = vsel %vm1989, %v1951, %v1988
          %vm1991 = vcmp.eq.f32.partialorder %v1951, 0.0
          %v1992 = vand.u32 %v1951, 2147483648
          %v1993 = vsel %vm1991, %v1992, %v1990
          %v1994 = vrsqrt.pop %v1953
          %v1995 = vmul.f32 %v1953, %v1994
          %vm1996 = vcmp.eq.f32.partialorder %v1953, inf
          %v1997 = vsel %vm1996, %v1953, %v1995
          %vm1998 = vcmp.eq.f32.partialorder %v1953, 0.0
          %v1999 = vand.u32 %v1953, 2147483648
          %v2000 = vsel %vm1998, %v1999, %v1997
          %v2001 = vrsqrt.pop %v1955
          %v2002 = vmul.f32 %v1955, %v2001
          %vm2003 = vcmp.eq.f32.partialorder %v1955, inf
          %v2004 = vsel %vm2003, %v1955, %v2002
          %vm2005 = vcmp.eq.f32.partialorder %v1955, 0.0
          %v2006 = vand.u32 %v1955, 2147483648
          %v2007 = vsel %vm2005, %v2006, %v2004
          %v2008 = vrsqrt.pop %v1957
          %v2009 = vmul.f32 %v1957, %v2008
          %vm2010 = vcmp.eq.f32.partialorder %v1957, inf
          %v2011 = vsel %vm2010, %v1957, %v2009
          %vm2012 = vcmp.eq.f32.partialorder %v1957, 0.0
          %v2013 = vand.u32 %v1957, 2147483648
          %v2014 = vsel %vm2012, %v2013, %v2011
          %v2015 = vrsqrt.pop %v1959
          %v2016 = vmul.f32 %v1959, %v2015
          %vm2017 = vcmp.eq.f32.partialorder %v1959, inf
          %v2018 = vsel %vm2017, %v1959, %v2016
          %vm2019 = vcmp.eq.f32.partialorder %v1959, 0.0
          %v2020 = vand.u32 %v1959, 2147483648
          %v2021 = vsel %vm2019, %v2020, %v2018
          %v2022 = vrsqrt.pop %v1961
          %v2023 = vmul.f32 %v1961, %v2022
          %vm2024 = vcmp.eq.f32.partialorder %v1961, inf
          %v2025 = vsel %vm2024, %v1961, %v2023
          %vm2026 = vcmp.eq.f32.partialorder %v1961, 0.0
          %v2027 = vand.u32 %v1961, 2147483648
          %v2028 = vsel %vm2026, %v2027, %v2025
          %v2029 = vrsqrt.pop %v1963
          %v2030 = vmul.f32 %v1963, %v2029
          %vm2031 = vcmp.eq.f32.partialorder %v1963, inf
          %v2032 = vsel %vm2031, %v1963, %v2030
          %vm2033 = vcmp.eq.f32.partialorder %v1963, 0.0
          %v2034 = vand.u32 %v1963, 2147483648
          %v2035 = vsel %vm2033, %v2034, %v2032
          %v2036 = vrsqrt.pop %v1965
          %v2037 = vmul.f32 %v1965, %v2036
          %vm2038 = vcmp.eq.f32.partialorder %v1965, inf
          %v2039 = vsel %vm2038, %v1965, %v2037
          %vm2040 = vcmp.eq.f32.partialorder %v1965, 0.0
          %v2041 = vand.u32 %v1965, 2147483648
          %v2042 = vsel %vm2040, %v2041, %v2039
          %v2043 = vrsqrt.pop %v1967
          %v2044 = vmul.f32 %v1967, %v2043
          %vm2045 = vcmp.eq.f32.partialorder %v1967, inf
          %v2046 = vsel %vm2045, %v1967, %v2044
          %vm2047 = vcmp.eq.f32.partialorder %v1967, 0.0
          %v2048 = vand.u32 %v1967, 2147483648
          %v2049 = vsel %vm2047, %v2048, %v2046
          %v2050 = vrsqrt.pop %v1969
          %v2051 = vmul.f32 %v1969, %v2050
          %vm2052 = vcmp.eq.f32.partialorder %v1969, inf
          %v2053 = vsel %vm2052, %v1969, %v2051
          %vm2054 = vcmp.eq.f32.partialorder %v1969, 0.0
          %v2055 = vand.u32 %v1969, 2147483648
          %v2056 = vsel %vm2054, %v2055, %v2053
          %v2057 = vrsqrt.pop %v1971
          %v2058 = vmul.f32 %v1971, %v2057
          %vm2059 = vcmp.eq.f32.partialorder %v1971, inf
          %v2060 = vsel %vm2059, %v1971, %v2058
          %vm2061 = vcmp.eq.f32.partialorder %v1971, 0.0
          %v2062 = vand.u32 %v1971, 2147483648
          %v2063 = vsel %vm2061, %v2062, %v2060
          %v2064 = vrsqrt.pop %v1973
          %v2065 = vmul.f32 %v1973, %v2064
          %vm2066 = vcmp.eq.f32.partialorder %v1973, inf
          %v2067 = vsel %vm2066, %v1973, %v2065
          %vm2068 = vcmp.eq.f32.partialorder %v1973, 0.0
          %v2069 = vand.u32 %v1973, 2147483648
          %v2070 = vsel %vm2068, %v2069, %v2067
          %v2071 = vrsqrt.pop %v1975
          %v2072 = vmul.f32 %v1975, %v2071
          %vm2073 = vcmp.eq.f32.partialorder %v1975, inf
          %v2074 = vsel %vm2073, %v1975, %v2072
          %vm2075 = vcmp.eq.f32.partialorder %v1975, 0.0
          %v2076 = vand.u32 %v1975, 2147483648
          %v2077 = vsel %vm2075, %v2076, %v2074
          %v2078 = vrsqrt.pop %v1977
          %v2079 = vmul.f32 %v1977, %v2078
          %vm2080 = vcmp.eq.f32.partialorder %v1977, inf
          %v2081 = vsel %vm2080, %v1977, %v2079
          %vm2082 = vcmp.eq.f32.partialorder %v1977, 0.0
          %v2083 = vand.u32 %v1977, 2147483648
          %v2084 = vsel %vm2082, %v2083, %v2081
          %v2085 = vrsqrt.pop %v1979
          %v2086 = vmul.f32 %v1979, %v2085
          %vm2087 = vcmp.eq.f32.partialorder %v1979, inf
          %v2088 = vsel %vm2087, %v1979, %v2086
          %vm2089 = vcmp.eq.f32.partialorder %v1979, 0.0
          %v2090 = vand.u32 %v1979, 2147483648
          %v2091 = vsel %vm2089, %v2090, %v2088
          %v2092 = vmax.f32 %v1986, 1e-15
          %v2093 = vmax.f32 %v1993, 1e-15
          %v2094 = vmax.f32 %v2000, 1e-15
          %v2095 = vmax.f32 %v2007, 1e-15
          %v2096 = vmax.f32 %v2014, 1e-15
          %v2097 = vmax.f32 %v2021, 1e-15
          %v2098 = vmax.f32 %v2028, 1e-15
          %v2099 = vmax.f32 %v2035, 1e-15
          %v2100 = vmax.f32 %v2042, 1e-15
          %v2101 = vmax.f32 %v2049, 1e-15
          %v2102 = vmax.f32 %v2056, 1e-15
          %v2103 = vmax.f32 %v2063, 1e-15
          %v2104 = vmax.f32 %v2070, 1e-15
          %v2105 = vmax.f32 %v2077, 1e-15
          %v2106 = vmax.f32 %v2084, 1e-15
          %v2107 = vmax.f32 %v2091, 1e-15
          %v2108 = vmax.f32 %v2092, -0.9999999
          %v2109 = vmax.f32 %v2093, -0.9999999
          %v2110 = vmax.f32 %v2094, -0.9999999
          %v2111 = vmax.f32 %v2095, -0.9999999
          %v2112 = vmax.f32 %v2096, -0.9999999
          %v2113 = vmax.f32 %v2097, -0.9999999
          %v2114 = vmax.f32 %v2098, -0.9999999
          %v2115 = vmax.f32 %v2099, -0.9999999
          %v2116 = vmax.f32 %v2100, -0.9999999
          %v2117 = vmax.f32 %v2101, -0.9999999
          %v2118 = vmax.f32 %v2102, -0.9999999
          %v2119 = vmax.f32 %v2103, -0.9999999
          %v2120 = vmax.f32 %v2104, -0.9999999
          %v2121 = vmax.f32 %v2105, -0.9999999
          %v2122 = vmax.f32 %v2106, -0.9999999
          %v2123 = vmax.f32 %v2107, -0.9999999
          %v2124 = vmin.f32 %v2108, 0.9999999
          %v2125 = vmin.f32 %v2109, 0.9999999
          %v2126 = vmin.f32 %v2110, 0.9999999
          %v2127 = vmin.f32 %v2111, 0.9999999
          %v2128 = vmin.f32 %v2112, 0.9999999
          %v2129 = vmin.f32 %v2113, 0.9999999
          %v2130 = vmin.f32 %v2114, 0.9999999
          %v2131 = vmin.f32 %v2115, 0.9999999
          %v2132 = vmin.f32 %v2116, 0.9999999
          %v2133 = vmin.f32 %v2117, 0.9999999
          %v2134 = vmin.f32 %v2118, 0.9999999
          %v2135 = vmin.f32 %v2119, 0.9999999
          %v2136 = vmin.f32 %v2120, 0.9999999
          %v2137 = vmin.f32 %v2121, 0.9999999
          %v2138 = vmin.f32 %v2122, 0.9999999
          %v2139 = vmin.f32 %v2123, 0.9999999
          %v2140 = vadd.f32 %v2124, 1.0
          %v2141 = vadd.f32 %v2125, 1.0
          %v2142 = vadd.f32 %v2126, 1.0
          %v2143 = vadd.f32 %v2127, 1.0
          %v2144 = vadd.f32 %v2128, 1.0
          %v2145 = vadd.f32 %v2129, 1.0
          %v2146 = vadd.f32 %v2130, 1.0
          %v2147 = vadd.f32 %v2131, 1.0
          %v2148 = vadd.f32 %v2132, 1.0
          %v2149 = vadd.f32 %v2133, 1.0
          %v2150 = vadd.f32 %v2134, 1.0
          %v2151 = vadd.f32 %v2135, 1.0
          %v2152 = vadd.f32 %v2136, 1.0
          %v2153 = vadd.f32 %v2137, 1.0
          %v2154 = vadd.f32 %v2138, 1.0
          %v2155 = vadd.f32 %v2139, 1.0
          %v2156 = vsub.f32 1.0, %v2124
          %v2157 = vsub.f32 1.0, %v2125
          %v2158 = vsub.f32 1.0, %v2126
          %v2159 = vsub.f32 1.0, %v2127
          %v2160 = vsub.f32 1.0, %v2128
          %v2161 = vsub.f32 1.0, %v2129
          %v2162 = vsub.f32 1.0, %v2130
          %v2163 = vsub.f32 1.0, %v2131
          %v2164 = vsub.f32 1.0, %v2132
          %v2165 = vsub.f32 1.0, %v2133
          %v2166 = vsub.f32 1.0, %v2134
          %v2167 = vsub.f32 1.0, %v2135
          %v2168 = vsub.f32 1.0, %v2136
          %v2169 = vsub.f32 1.0, %v2137
          %v2170 = vsub.f32 1.0, %v2138
          %v2171 = vsub.f32 1.0, %v2139
          %v2172 = vrcp.pop %v2156
          %v2173 = vmul.f32 %v2140, %v2172
          %v2174 = vrcp.pop %v2157
          %v2175 = vmul.f32 %v2141, %v2174
          %v2176 = vrcp.pop %v2158
          %v2177 = vmul.f32 %v2142, %v2176
          %v2178 = vrcp.pop %v2159
          %v2179 = vmul.f32 %v2143, %v2178
          %v2180 = vrcp.pop %v2160
          %v2181 = vmul.f32 %v2144, %v2180
          %v2182 = vrcp.pop %v2161
          %v2183 = vmul.f32 %v2145, %v2182
          %v2184 = vrcp.pop %v2162
          %v2185 = vmul.f32 %v2146, %v2184
          %v2186 = vrcp.pop %v2163
          %v2187 = vmul.f32 %v2147, %v2186
          %v2188 = vrcp.pop %v2164
          %v2189 = vmul.f32 %v2148, %v2188
          %v2190 = vrcp.pop %v2165
          %v2191 = vmul.f32 %v2149, %v2190
          %v2192 = vrcp.pop %v2166
          %v2193 = vmul.f32 %v2150, %v2192
          %v2194 = vrcp.pop %v2167
          %v2195 = vmul.f32 %v2151, %v2194
          %v2196 = vrcp.pop %v2168
          %v2197 = vmul.f32 %v2152, %v2196
          %v2198 = vrcp.pop %v2169
          %v2199 = vmul.f32 %v2153, %v2198
          %v2200 = vrcp.pop %v2170
          %v2201 = vmul.f32 %v2154, %v2200
          %v2202 = vrcp.pop %v2171
          %v2203 = vmul.f32 %v2155, %v2202
          %v2204 = vlog2.pop %v2173
          %v2205 = vmul.f32 %v2204, 0.6931472
          %v2206 = vlog2.pop %v2175
          %v2207 = vmul.f32 %v2206, 0.6931472
          %v2208 = vlog2.pop %v2177
          %v2209 = vmul.f32 %v2208, 0.6931472
          %v2210 = vlog2.pop %v2179
          %v2211 = vmul.f32 %v2210, 0.6931472
          %v2212 = vlog2.pop %v2181
          %v2213 = vmul.f32 %v2212, 0.6931472
          %v2214 = vlog2.pop %v2183
          %v2215 = vmul.f32 %v2214, 0.6931472
          %v2216 = vlog2.pop %v2185
          %v2217 = vmul.f32 %v2216, 0.6931472
          %v2218 = vlog2.pop %v2187
          %v2219 = vmul.f32 %v2218, 0.6931472
          %v2220 = vlog2.pop %v2189
          %v2221 = vmul.f32 %v2220, 0.6931472
          %v2222 = vlog2.pop %v2191
          %v2223 = vmul.f32 %v2222, 0.6931472
          %v2224 = vlog2.pop %v2193
          %v2225 = vmul.f32 %v2224, 0.6931472
          %v2226 = vlog2.pop %v2195
          %v2227 = vmul.f32 %v2226, 0.6931472
          %v2228 = vlog2.pop %v2197
          %v2229 = vmul.f32 %v2228, 0.6931472
          %v2230 = vlog2.pop %v2199
          %v2231 = vmul.f32 %v2230, 0.6931472
          %v2232 = vlog2.pop %v2201
          %v2233 = vmul.f32 %v2232, 0.6931472
          %v2234 = vlog2.pop %v2203
          %v2235 = vmul.f32 %v2234, 0.6931472
          %v2236 = vmul.f32 %v2205, 0.5
          %v2237 = vmul.f32 %v2207, 0.5
          %v2238 = vmul.f32 %v2209, 0.5
          %v2239 = vmul.f32 %v2211, 0.5
          %v2240 = vmul.f32 %v2213, 0.5
          %v2241 = vmul.f32 %v2215, 0.5
          %v2242 = vmul.f32 %v2217, 0.5
          %v2243 = vmul.f32 %v2219, 0.5
          %v2244 = vmul.f32 %v2221, 0.5
          %v2245 = vmul.f32 %v2223, 0.5
          %v2246 = vmul.f32 %v2225, 0.5
          %v2247 = vmul.f32 %v2227, 0.5
          %v2248 = vmul.f32 %v2229, 0.5
          %v2249 = vmul.f32 %v2231, 0.5
          %v2250 = vmul.f32 %v2233, 0.5
          %v2251 = vmul.f32 %v2235, 0.5
          %v2252 = vmul.f32 %v2236, 0.5
          %v2253 = vmul.f32 %v2237, 0.5
          %v2254 = vmul.f32 %v2238, 0.5
          %v2255 = vmul.f32 %v2239, 0.5
          %v2256 = vmul.f32 %v2240, 0.5
          %v2257 = vmul.f32 %v2241, 0.5
          %v2258 = vmul.f32 %v2242, 0.5
          %v2259 = vmul.f32 %v2243, 0.5
          %v2260 = vmul.f32 %v2244, 0.5
          %v2261 = vmul.f32 %v2245, 0.5
          %v2262 = vmul.f32 %v2246, 0.5
          %v2263 = vmul.f32 %v2247, 0.5
          %v2264 = vmul.f32 %v2248, 0.5
          %v2265 = vmul.f32 %v2249, 0.5
          %v2266 = vmul.f32 %v2250, 0.5
          %v2267 = vmul.f32 %v2251, 0.5
          %v2268 = vtanh.pop %v2252
          %v2269 = vtanh.pop %v2253
          %v2270 = vtanh.pop %v2254
          %v2271 = vtanh.pop %v2255
          %v2272 = vtanh.pop %v2256
          %v2273 = vtanh.pop %v2257
          %v2274 = vtanh.pop %v2258
          %v2275 = vtanh.pop %v2259
          %v2276 = vtanh.pop %v2260
          %v2277 = vtanh.pop %v2261
          %v2278 = vtanh.pop %v2262
          %v2279 = vtanh.pop %v2263
          %v2280 = vtanh.pop %v2264
          %v2281 = vtanh.pop %v2265
          %v2282 = vtanh.pop %v2266
          %v2283 = vtanh.pop %v2267
          %v2284 = vrcp.pop %v2092
          %v2285 = vmul.f32 %v2268, %v2284
          %v2286 = vrcp.pop %v2093
          %v2287 = vmul.f32 %v2269, %v2286
          %v2288 = vrcp.pop %v2094
          %v2289 = vmul.f32 %v2270, %v2288
          %v2290 = vrcp.pop %v2095
          %v2291 = vmul.f32 %v2271, %v2290
          %v2292 = vrcp.pop %v2096
          %v2293 = vmul.f32 %v2272, %v2292
          %v2294 = vrcp.pop %v2097
          %v2295 = vmul.f32 %v2273, %v2294
          %v2296 = vrcp.pop %v2098
          %v2297 = vmul.f32 %v2274, %v2296
          %v2298 = vrcp.pop %v2099
          %v2299 = vmul.f32 %v2275, %v2298
          %v2300 = vrcp.pop %v2100
          %v2301 = vmul.f32 %v2276, %v2300
          %v2302 = vrcp.pop %v2101
          %v2303 = vmul.f32 %v2277, %v2302
          %v2304 = vrcp.pop %v2102
          %v2305 = vmul.f32 %v2278, %v2304
          %v2306 = vrcp.pop %v2103
          %v2307 = vmul.f32 %v2279, %v2306
          %v2308 = vrcp.pop %v2104
          %v2309 = vmul.f32 %v2280, %v2308
          %v2310 = vrcp.pop %v2105
          %v2311 = vmul.f32 %v2281, %v2310
          %v2312 = vrcp.pop %v2106
          %v2313 = vmul.f32 %v2282, %v2312
          %v2314 = vrcp.pop %v2107
          %v2315 = vmul.f32 %v2283, %v2314
          %v2316 = vmul.f32 %v1901, %v2285
          %v2317 = vmul.f32 %v1903, %v2287
          %v2318 = vmul.f32 %v1905, %v2289
          %v2319 = vmul.f32 %v1907, %v2291
          %v2320 = vmul.f32 %v1909, %v2293
          %v2321 = vmul.f32 %v1911, %v2295
          %v2322 = vmul.f32 %v1913, %v2297
          %v2323 = vmul.f32 %v1915, %v2299
          %v2324 = vmul.f32 %v1917, %v2301
          %v2325 = vmul.f32 %v1919, %v2303
          %v2326 = vmul.f32 %v1921, %v2305
          %v2327 = vmul.f32 %v1923, %v2307
          %v2328 = vmul.f32 %v1925, %v2309
          %v2329 = vmul.f32 %v1927, %v2311
          %v2330 = vmul.f32 %v1929, %v2313
          %v2331 = vmul.f32 %v1931, %v2315
          %v2332 = vmax.f32 %v2268, 1e-15
          %v2333 = vmax.f32 %v2269, 1e-15
          %v2334 = vmax.f32 %v2270, 1e-15
          %v2335 = vmax.f32 %v2271, 1e-15
          %v2336 = vmax.f32 %v2272, 1e-15
          %v2337 = vmax.f32 %v2273, 1e-15
          %v2338 = vmax.f32 %v2274, 1e-15
          %v2339 = vmax.f32 %v2275, 1e-15
          %v2340 = vmax.f32 %v2276, 1e-15
          %v2341 = vmax.f32 %v2277, 1e-15
          %v2342 = vmax.f32 %v2278, 1e-15
          %v2343 = vmax.f32 %v2279, 1e-15
          %v2344 = vmax.f32 %v2280, 1e-15
          %v2345 = vmax.f32 %v2281, 1e-15
          %v2346 = vmax.f32 %v2282, 1e-15
          %v2347 = vmax.f32 %v2283, 1e-15
          %v2348 = vmax.f32 %v2332, -0.9999999
          %v2349 = vmax.f32 %v2333, -0.9999999
          %v2350 = vmax.f32 %v2334, -0.9999999
          %v2351 = vmax.f32 %v2335, -0.9999999
          %v2352 = vmax.f32 %v2336, -0.9999999
          %v2353 = vmax.f32 %v2337, -0.9999999
          %v2354 = vmax.f32 %v2338, -0.9999999
          %v2355 = vmax.f32 %v2339, -0.9999999
          %v2356 = vmax.f32 %v2340, -0.9999999
          %v2357 = vmax.f32 %v2341, -0.9999999
          %v2358 = vmax.f32 %v2342, -0.9999999
          %v2359 = vmax.f32 %v2343, -0.9999999
          %v2360 = vmax.f32 %v2344, -0.9999999
          %v2361 = vmax.f32 %v2345, -0.9999999
          %v2362 = vmax.f32 %v2346, -0.9999999
          %v2363 = vmax.f32 %v2347, -0.9999999
          %v2364 = vmin.f32 %v2348, 0.9999999
          %v2365 = vmin.f32 %v2349, 0.9999999
          %v2366 = vmin.f32 %v2350, 0.9999999
          %v2367 = vmin.f32 %v2351, 0.9999999
          %v2368 = vmin.f32 %v2352, 0.9999999
          %v2369 = vmin.f32 %v2353, 0.9999999
          %v2370 = vmin.f32 %v2354, 0.9999999
          %v2371 = vmin.f32 %v2355, 0.9999999
          %v2372 = vmin.f32 %v2356, 0.9999999
          %v2373 = vmin.f32 %v2357, 0.9999999
          %v2374 = vmin.f32 %v2358, 0.9999999
          %v2375 = vmin.f32 %v2359, 0.9999999
          %v2376 = vmin.f32 %v2360, 0.9999999
          %v2377 = vmin.f32 %v2361, 0.9999999
          %v2378 = vmin.f32 %v2362, 0.9999999
          %v2379 = vmin.f32 %v2363, 0.9999999
          %v2380 = vadd.f32 %v2364, 1.0
          %v2381 = vadd.f32 %v2365, 1.0
          %v2382 = vadd.f32 %v2366, 1.0
          %v2383 = vadd.f32 %v2367, 1.0
          %v2384 = vadd.f32 %v2368, 1.0
          %v2385 = vadd.f32 %v2369, 1.0
          %v2386 = vadd.f32 %v2370, 1.0
          %v2387 = vadd.f32 %v2371, 1.0
          %v2388 = vadd.f32 %v2372, 1.0
          %v2389 = vadd.f32 %v2373, 1.0
          %v2390 = vadd.f32 %v2374, 1.0
          %v2391 = vadd.f32 %v2375, 1.0
          %v2392 = vadd.f32 %v2376, 1.0
          %v2393 = vadd.f32 %v2377, 1.0
          %v2394 = vadd.f32 %v2378, 1.0
          %v2395 = vadd.f32 %v2379, 1.0
          %v2396 = vsub.f32 1.0, %v2364
          %v2397 = vsub.f32 1.0, %v2365
          %v2398 = vsub.f32 1.0, %v2366
          %v2399 = vsub.f32 1.0, %v2367
          %v2400 = vsub.f32 1.0, %v2368
          %v2401 = vsub.f32 1.0, %v2369
          %v2402 = vsub.f32 1.0, %v2370
          %v2403 = vsub.f32 1.0, %v2371
          %v2404 = vsub.f32 1.0, %v2372
          %v2405 = vsub.f32 1.0, %v2373
          %v2406 = vsub.f32 1.0, %v2374
          %v2407 = vsub.f32 1.0, %v2375
          %v2408 = vsub.f32 1.0, %v2376
          %v2409 = vsub.f32 1.0, %v2377
          %v2410 = vsub.f32 1.0, %v2378
          %v2411 = vsub.f32 1.0, %v2379
          %v2412 = vrcp.pop %v2396
          %v2413 = vmul.f32 %v2380, %v2412
          %v2414 = vrcp.pop %v2397
          %v2415 = vmul.f32 %v2381, %v2414
          %v2416 = vrcp.pop %v2398
          %v2417 = vmul.f32 %v2382, %v2416
          %v2418 = vrcp.pop %v2399
          %v2419 = vmul.f32 %v2383, %v2418
          %v2420 = vrcp.pop %v2400
          %v2421 = vmul.f32 %v2384, %v2420
          %v2422 = vrcp.pop %v2401
          %v2423 = vmul.f32 %v2385, %v2422
          %v2424 = vrcp.pop %v2402
          %v2425 = vmul.f32 %v2386, %v2424
          %v2426 = vrcp.pop %v2403
          %v2427 = vmul.f32 %v2387, %v2426
          %v2428 = vrcp.pop %v2404
          %v2429 = vmul.f32 %v2388, %v2428
          %v2430 = vrcp.pop %v2405
          %v2431 = vmul.f32 %v2389, %v2430
          %v2432 = vrcp.pop %v2406
          %v2433 = vmul.f32 %v2390, %v2432
          %v2434 = vrcp.pop %v2407
          %v2435 = vmul.f32 %v2391, %v2434
          %v2436 = vrcp.pop %v2408
          %v2437 = vmul.f32 %v2392, %v2436
          %v2438 = vrcp.pop %v2409
          %v2439 = vmul.f32 %v2393, %v2438
          %v2440 = vrcp.pop %v2410
          %v2441 = vmul.f32 %v2394, %v2440
          %v2442 = vrcp.pop %v2411
          %v2443 = vmul.f32 %v2395, %v2442
          %v2444 = vlog2.pop %v2413
          %v2445 = vmul.f32 %v2444, 0.6931472
          %v2446 = vlog2.pop %v2415
          %v2447 = vmul.f32 %v2446, 0.6931472
          %v2448 = vlog2.pop %v2417
          %v2449 = vmul.f32 %v2448, 0.6931472
          %v2450 = vlog2.pop %v2419
          %v2451 = vmul.f32 %v2450, 0.6931472
          %v2452 = vlog2.pop %v2421
          %v2453 = vmul.f32 %v2452, 0.6931472
          %v2454 = vlog2.pop %v2423
          %v2455 = vmul.f32 %v2454, 0.6931472
          %v2456 = vlog2.pop %v2425
          %v2457 = vmul.f32 %v2456, 0.6931472
          %v2458 = vlog2.pop %v2427
          %v2459 = vmul.f32 %v2458, 0.6931472
          %v2460 = vlog2.pop %v2429
          %v2461 = vmul.f32 %v2460, 0.6931472
          %v2462 = vlog2.pop %v2431
          %v2463 = vmul.f32 %v2462, 0.6931472
          %v2464 = vlog2.pop %v2433
          %v2465 = vmul.f32 %v2464, 0.6931472
          %v2466 = vlog2.pop %v2435
          %v2467 = vmul.f32 %v2466, 0.6931472
          %v2468 = vlog2.pop %v2437
          %v2469 = vmul.f32 %v2468, 0.6931472
          %v2470 = vlog2.pop %v2439
          %v2471 = vmul.f32 %v2470, 0.6931472
          %v2472 = vlog2.pop %v2441
          %v2473 = vmul.f32 %v2472, 0.6931472
          %v2474 = vlog2.pop %v2443
          %v2475 = vmul.f32 %v2474, 0.6931472
          %v2476 = vmul.f32 %v2445, 0.5
          %v2477 = vmul.f32 %v2447, 0.5
          %v2478 = vmul.f32 %v2449, 0.5
          %v2479 = vmul.f32 %v2451, 0.5
          %v2480 = vmul.f32 %v2453, 0.5
          %v2481 = vmul.f32 %v2455, 0.5
          %v2482 = vmul.f32 %v2457, 0.5
          %v2483 = vmul.f32 %v2459, 0.5
          %v2484 = vmul.f32 %v2461, 0.5
          %v2485 = vmul.f32 %v2463, 0.5
          %v2486 = vmul.f32 %v2465, 0.5
          %v2487 = vmul.f32 %v2467, 0.5
          %v2488 = vmul.f32 %v2469, 0.5
          %v2489 = vmul.f32 %v2471, 0.5
          %v2490 = vmul.f32 %v2473, 0.5
          %v2491 = vmul.f32 %v2475, 0.5
          %v2492 = vrcp.pop %v2332
          %v2493 = vmul.f32 %v2476, %v2492
          %v2494 = vrcp.pop %v2333
          %v2495 = vmul.f32 %v2477, %v2494
          %v2496 = vrcp.pop %v2334
          %v2497 = vmul.f32 %v2478, %v2496
          %v2498 = vrcp.pop %v2335
          %v2499 = vmul.f32 %v2479, %v2498
          %v2500 = vrcp.pop %v2336
          %v2501 = vmul.f32 %v2480, %v2500
          %v2502 = vrcp.pop %v2337
          %v2503 = vmul.f32 %v2481, %v2502
          %v2504 = vrcp.pop %v2338
          %v2505 = vmul.f32 %v2482, %v2504
          %v2506 = vrcp.pop %v2339
          %v2507 = vmul.f32 %v2483, %v2506
          %v2508 = vrcp.pop %v2340
          %v2509 = vmul.f32 %v2484, %v2508
          %v2510 = vrcp.pop %v2341
          %v2511 = vmul.f32 %v2485, %v2510
          %v2512 = vrcp.pop %v2342
          %v2513 = vmul.f32 %v2486, %v2512
          %v2514 = vrcp.pop %v2343
          %v2515 = vmul.f32 %v2487, %v2514
          %v2516 = vrcp.pop %v2344
          %v2517 = vmul.f32 %v2488, %v2516
          %v2518 = vrcp.pop %v2345
          %v2519 = vmul.f32 %v2489, %v2518
          %v2520 = vrcp.pop %v2346
          %v2521 = vmul.f32 %v2490, %v2520
          %v2522 = vrcp.pop %v2347
          %v2523 = vmul.f32 %v2491, %v2522
          %v2524 = vmul.f32 %v2316, %v2493
          %v2525 = vmul.f32 %v2317, %v2495
          %v2526 = vmul.f32 %v2318, %v2497
          %v2527 = vmul.f32 %v2319, %v2499
          %v2528 = vmul.f32 %v2320, %v2501
          %v2529 = vmul.f32 %v2321, %v2503
          %v2530 = vmul.f32 %v2322, %v2505
          %v2531 = vmul.f32 %v2323, %v2507
          %v2532 = vmul.f32 %v2324, %v2509
          %v2533 = vmul.f32 %v2325, %v2511
          %v2534 = vmul.f32 %v2326, %v2513
          %v2535 = vmul.f32 %v2327, %v2515
          %v2536 = vmul.f32 %v2328, %v2517
          %v2537 = vmul.f32 %v2329, %v2519
          %v2538 = vmul.f32 %v2330, %v2521
          %v2539 = vmul.f32 %v2331, %v2523
          %v2540 = vld [vmem:[#allocation9] sm:$0xff]
          %v2541 = vld [vmem:[#allocation9 + $0x8] sm:$0xff]
          %v2542 = vld [vmem:[#allocation9 + $0x10] sm:$0xff]
          %v2543 = vld [vmem:[#allocation9 + $0x18] sm:$0xff]
          %v2544 = vld [vmem:[#allocation9 + $0x20] sm:$0xff]
          %v2545 = vld [vmem:[#allocation9 + $0x28] sm:$0xff]
          %v2546 = vld [vmem:[#allocation9 + $0x30] sm:$0xff]
          %v2547 = vld [vmem:[#allocation9 + $0x38] sm:$0xff]
          %v2548 = vld [vmem:[#allocation9 + $0x40] sm:$0xff]
          %v2549 = vld [vmem:[#allocation9 + $0x48] sm:$0xff]
          %v2550 = vld [vmem:[#allocation9 + $0x50] sm:$0xff]
          %v2551 = vld [vmem:[#allocation9 + $0x58] sm:$0xff]
          %v2552 = vld [vmem:[#allocation9 + $0x60] sm:$0xff]
          %v2553 = vld [vmem:[#allocation9 + $0x68] sm:$0xff]
          %v2554 = vld [vmem:[#allocation9 + $0x70] sm:$0xff]
          %v2555 = vld [vmem:[#allocation9 + $0x78] sm:$0xff]
          %v2556 = vld [vmem:[%s4] sm:$0x1]
          %v2558 = vlaneseq
          %v2559 = vshrl.u32 %v2558, 7
          %v2560 = vsub.s32 0, %v2559
          %v2561 = vrot.slane %v2556, %v2560
          %2563 = vmatprep.subr.mxu0 0.0
          %2564 = vmatpush1.msra.mxu0 %v2540
          %2565 = vmatprep.subr.mxu0 0.0
          %2566 = vmatpush1.msra.mxu0 %v2541
          %2567 = vmatprep.subr.mxu0 0.0
          %2568 = vmatpush1.msra.mxu0 %v2542
          %2569 = vmatprep.subr.mxu0 0.0
          %2570 = vmatpush1.msra.mxu0 %v2543
          %2571 = vmatprep.subr.mxu0 0.0
          %2572 = vmatpush1.msra.mxu0 %v2544
          %2573 = vmatprep.subr.mxu0 0.0
          %2574 = vmatpush1.msra.mxu0 %v2545
          %2575 = vmatprep.subr.mxu0 0.0
          %2576 = vmatpush1.msra.mxu0 %v2546
          %2577 = vmatprep.subr.mxu0 0.0
          %2578 = vmatpush1.msra.mxu0 %v2547
          %2579 = vmatprep.subr.mxu0 0.0
          %2580 = vmatpush1.msra.mxu0 %v2548
          %2581 = vmatprep.subr.mxu0 0.0
          %2582 = vmatpush1.msra.mxu0 %v2549
          %2583 = vmatprep.subr.mxu0 0.0
          %2584 = vmatpush1.msra.mxu0 %v2550
          %2585 = vmatprep.subr.mxu0 0.0
          %2586 = vmatpush1.msra.mxu0 %v2551
          %2587 = vmatprep.subr.mxu0 0.0
          %2588 = vmatpush1.msra.mxu0 %v2552
          %2589 = vmatprep.subr.mxu0 0.0
          %2590 = vmatpush1.msra.mxu0 %v2553
          %2591 = vmatprep.subr.mxu0 0.0
          %2592 = vmatpush1.msra.mxu0 %v2554
          %2593 = vmatprep.subr.mxu0 0.0
          %2594 = vmatpush1.msra.mxu0 %v2555
          %2595 = vmatprep.subr.mxu0 0.0
          %2596 = vmatpush1.msra.mxu0 0.0
          %2597 = vmatprep.subr.mxu0 0.0
          %2598 = vmatpush1.msra.mxu0 0.0
          %2599 = vmatprep.subr.mxu0 0.0
          %2600 = vmatpush1.msra.mxu0 0.0
          %2601 = vmatprep.subr.mxu0 0.0
          %2602 = vmatpush1.msra.mxu0 0.0
          %2603 = vmatprep.subr.mxu0 0.0
          %2604 = vmatpush1.msra.mxu0 0.0
          %2605 = vmatprep.subr.mxu0 0.0
          %2606 = vmatpush1.msra.mxu0 0.0
          %2607 = vmatprep.subr.mxu0 0.0
          %2608 = vmatpush1.msra.mxu0 0.0
          %2609 = vmatprep.subr.mxu0 0.0
          %2610 = vmatpush1.msra.mxu0 0.0
          %2611 = vmatprep.subr.mxu0 0.0
          %2612 = vmatpush1.msra.mxu0 0.0
          %2613 = vmatprep.subr.mxu0 0.0
          %2614 = vmatpush1.msra.mxu0 0.0
          %2615 = vmatprep.subr.mxu0 0.0
          %2616 = vmatpush1.msra.mxu0 0.0
          %2617 = vmatprep.subr.mxu0 0.0
          %2618 = vmatpush1.msra.mxu0 0.0
          %2619 = vmatprep.subr.mxu0 0.0
          %2620 = vmatpush1.msra.mxu0 0.0
          %2621 = vmatprep.subr.mxu0 0.0
          %2622 = vmatpush1.msra.mxu0 0.0
          %2623 = vmatprep.subr.mxu0 0.0
          %2624 = vmatpush1.msra.mxu0 0.0
          %2625 = vmatprep.subr.mxu0 0.0
          %2626 = vmatpush1.msra.mxu0 0.0
          %2627 = vmatprep.mubr.f32.mxu0 0.0
          %2628 = vmatmul.mubr.f32.gmra.mrb[0].mxu0 %v2524
          %v2629 = vpop.f32.mrb[0].mxu0
          %v2630 = vadd.f32 %v2561, %v2629
          %v2631 = vpop.f32.mrb[0].mxu0
          %2632 = vmatprep.mubr.f32.mxu0 0.0
          %2633 = vmatmul.mubr.f32.gmra.mrb[0].mxu0 %v2525
          %v2634 = vpop.f32.mrb[0].mxu0
          %v2635 = vadd.f32 %v2561, %v2634
          %v2636 = vpop.f32.mrb[0].mxu0
          %2637 = vmatprep.mubr.f32.mxu0 0.0
          %2638 = vmatmul.mubr.f32.gmra.mrb[0].mxu0 %v2526
          %v2639 = vpop.f32.mrb[0].mxu0
          %v2640 = vadd.f32 %v2561, %v2639
          %v2641 = vpop.f32.mrb[0].mxu0
          %2642 = vmatprep.mubr.f32.mxu0 0.0
          %2643 = vmatmul.mubr.f32.gmra.mrb[0].mxu0 %v2527
          %v2644 = vpop.f32.mrb[0].mxu0
          %v2645 = vadd.f32 %v2561, %v2644
          %v2646 = vpop.f32.mrb[0].mxu0
          %2647 = vmatprep.mubr.f32.mxu0 0.0
          %2648 = vmatmul.mubr.f32.gmra.mrb[0].mxu0 %v2528
          %v2649 = vpop.f32.mrb[0].mxu0
          %v2650 = vadd.f32 %v2561, %v2649
          %v2651 = vpop.f32.mrb[0].mxu0
          %2652 = vmatprep.mubr.f32.mxu0 0.0
          %2653 = vmatmul.mubr.f32.gmra.mrb[0].mxu0 %v2529
          %v2654 = vpop.f32.mrb[0].mxu0
          %v2655 = vadd.f32 %v2561, %v2654
          %v2656 = vpop.f32.mrb[0].mxu0
          %2657 = vmatprep.mubr.f32.mxu0 0.0
          %2658 = vmatmul.mubr.f32.gmra.mrb[0].mxu0 %v2530
          %v2659 = vpop.f32.mrb[0].mxu0
          %v2660 = vadd.f32 %v2561, %v2659
          %v2661 = vpop.f32.mrb[0].mxu0
          %2662 = vmatprep.mubr.f32.mxu0 0.0
          %2663 = vmatmul.mubr.f32.gmra.mrb[0].mxu0 %v2531
          %v2664 = vpop.f32.mrb[0].mxu0
          %v2665 = vadd.f32 %v2561, %v2664
          %v2666 = vpop.f32.mrb[0].mxu0
          %2667 = vmatprep.mubr.f32.mxu0 0.0
          %2668 = vmatmul.mubr.f32.gmra.mrb[0].mxu0 %v2532
          %v2669 = vpop.f32.mrb[0].mxu0
          %v2670 = vadd.f32 %v2561, %v2669
          %v2671 = vpop.f32.mrb[0].mxu0
          %2672 = vmatprep.mubr.f32.mxu0 0.0
          %2673 = vmatmul.mubr.f32.gmra.mrb[0].mxu0 %v2533
          %v2674 = vpop.f32.mrb[0].mxu0
          %v2675 = vadd.f32 %v2561, %v2674
          %v2676 = vpop.f32.mrb[0].mxu0
          %2677 = vmatprep.mubr.f32.mxu0 0.0
          %2678 = vmatmul.mubr.f32.gmra.mrb[0].mxu0 %v2534
          %v2679 = vpop.f32.mrb[0].mxu0
          %v2680 = vadd.f32 %v2561, %v2679
          %v2681 = vpop.f32.mrb[0].mxu0
          %2682 = vmatprep.mubr.f32.mxu0 0.0
          %2683 = vmatmul.mubr.f32.gmra.mrb[0].mxu0 %v2535
          %v2684 = vpop.f32.mrb[0].mxu0
          %v2685 = vadd.f32 %v2561, %v2684
          %v2686 = vpop.f32.mrb[0].mxu0
          %2687 = vmatprep.mubr.f32.mxu0 0.0
          %2688 = vmatmul.mubr.f32.gmra.mrb[0].mxu0 %v2536
          %v2689 = vpop.f32.mrb[0].mxu0
          %v2690 = vadd.f32 %v2561, %v2689
          %v2691 = vpop.f32.mrb[0].mxu0
          %2692 = vmatprep.mubr.f32.mxu0 0.0
          %2693 = vmatmul.mubr.f32.gmra.mrb[0].mxu0 %v2537
          %v2694 = vpop.f32.mrb[0].mxu0
          %v2695 = vadd.f32 %v2561, %v2694
          %v2696 = vpop.f32.mrb[0].mxu0
          %2697 = vmatprep.mubr.f32.mxu0 0.0
          %2698 = vmatmul.mubr.f32.gmra.mrb[0].mxu0 %v2538
          %v2699 = vpop.f32.mrb[0].mxu0
          %v2700 = vadd.f32 %v2561, %v2699
          %v2701 = vpop.f32.mrb[0].mxu0
          %2702 = vmatprep.mubr.f32.mxu0 0.0
          %2703 = vmatmul.mubr.f32.gmra.mrb[0].mxu0 %v2539
          %v2704 = vpop.f32.mrb[0].mxu0
          %v2705 = vadd.f32 %v2561, %v2704
          %v2706 = vpop.f32.mrb[0].mxu0
          %2707 = vdwg.mxu0
          %v2708 = vmul.f32 %v2630, %v2630
          %v2709 = vmul.f32 %v2635, %v2635
          %v2710 = vmul.f32 %v2640, %v2640
          %v2711 = vmul.f32 %v2645, %v2645
          %v2712 = vmul.f32 %v2650, %v2650
          %v2713 = vmul.f32 %v2655, %v2655
          %v2714 = vmul.f32 %v2660, %v2660
          %v2715 = vmul.f32 %v2665, %v2665
          %v2716 = vmul.f32 %v2670, %v2670
          %v2717 = vmul.f32 %v2675, %v2675
          %v2718 = vmul.f32 %v2680, %v2680
          %v2719 = vmul.f32 %v2685, %v2685
          %v2720 = vmul.f32 %v2690, %v2690
          %v2721 = vmul.f32 %v2695, %v2695
          %v2722 = vmul.f32 %v2700, %v2700
          %v2723 = vmul.f32 %v2705, %v2705
          %2724 = vadd.xlane.f32.xlu0 %v2708
          %v2725 = vpop.xlane.xlu0 %2724
          %2726 = vadd.xlane.f32.xlu0 %v2709
          %v2727 = vpop.xlane.xlu0 %2726
          %2728 = vadd.xlane.f32.xlu0 %v2710
          %v2729 = vpop.xlane.xlu0 %2728
          %2730 = vadd.xlane.f32.xlu0 %v2711
          %v2731 = vpop.xlane.xlu0 %2730
          %2732 = vadd.xlane.f32.xlu0 %v2712
          %v2733 = vpop.xlane.xlu0 %2732
          %2734 = vadd.xlane.f32.xlu0 %v2713
          %v2735 = vpop.xlane.xlu0 %2734
          %2736 = vadd.xlane.f32.xlu0 %v2714
          %v2737 = vpop.xlane.xlu0 %2736
          %2738 = vadd.xlane.f32.xlu0 %v2715
          %v2739 = vpop.xlane.xlu0 %2738
          %2740 = vadd.xlane.f32.xlu0 %v2716
          %v2741 = vpop.xlane.xlu0 %2740
          %2742 = vadd.xlane.f32.xlu0 %v2717
          %v2743 = vpop.xlane.xlu0 %2742
          %2744 = vadd.xlane.f32.xlu0 %v2718
          %v2745 = vpop.xlane.xlu0 %2744
          %2746 = vadd.xlane.f32.xlu0 %v2719
          %v2747 = vpop.xlane.xlu0 %2746
          %2748 = vadd.xlane.f32.xlu0 %v2720
          %v2749 = vpop.xlane.xlu0 %2748
          %2750 = vadd.xlane.f32.xlu0 %v2721
          %v2751 = vpop.xlane.xlu0 %2750
          %2752 = vadd.xlane.f32.xlu0 %v2722
          %v2753 = vpop.xlane.xlu0 %2752
          %2754 = vadd.xlane.f32.xlu0 %v2723
          %v2755 = vpop.xlane.xlu0 %2754
          %v2756 = vrsqrt.pop %v2725
          %v2757 = vmul.f32 %v2725, %v2756
          %vm2758 = vcmp.eq.f32.partialorder %v2725, inf
          %v2759 = vsel %vm2758, %v2725, %v2757
          %vm2760 = vcmp.eq.f32.partialorder %v2725, 0.0
          %v2761 = vand.u32 %v2725, 2147483648
          %v2762 = vsel %vm2760, %v2761, %v2759
          %v2763 = vrsqrt.pop %v2727
          %v2764 = vmul.f32 %v2727, %v2763
          %vm2765 = vcmp.eq.f32.partialorder %v2727, inf
          %v2766 = vsel %vm2765, %v2727, %v2764
          %vm2767 = vcmp.eq.f32.partialorder %v2727, 0.0
          %v2768 = vand.u32 %v2727, 2147483648
          %v2769 = vsel %vm2767, %v2768, %v2766
          %v2770 = vrsqrt.pop %v2729
          %v2771 = vmul.f32 %v2729, %v2770
          %vm2772 = vcmp.eq.f32.partialorder %v2729, inf
          %v2773 = vsel %vm2772, %v2729, %v2771
          %vm2774 = vcmp.eq.f32.partialorder %v2729, 0.0
          %v2775 = vand.u32 %v2729, 2147483648
          %v2776 = vsel %vm2774, %v2775, %v2773
          %v2777 = vrsqrt.pop %v2731
          %v2778 = vmul.f32 %v2731, %v2777
          %vm2779 = vcmp.eq.f32.partialorder %v2731, inf
          %v2780 = vsel %vm2779, %v2731, %v2778
          %vm2781 = vcmp.eq.f32.partialorder %v2731, 0.0
          %v2782 = vand.u32 %v2731, 2147483648
          %v2783 = vsel %vm2781, %v2782, %v2780
          %v2784 = vrsqrt.pop %v2733
          %v2785 = vmul.f32 %v2733, %v2784
          %vm2786 = vcmp.eq.f32.partialorder %v2733, inf
          %v2787 = vsel %vm2786, %v2733, %v2785
          %vm2788 = vcmp.eq.f32.partialorder %v2733, 0.0
          %v2789 = vand.u32 %v2733, 2147483648
          %v2790 = vsel %vm2788, %v2789, %v2787
          %v2791 = vrsqrt.pop %v2735
          %v2792 = vmul.f32 %v2735, %v2791
          %vm2793 = vcmp.eq.f32.partialorder %v2735, inf
          %v2794 = vsel %vm2793, %v2735, %v2792
          %vm2795 = vcmp.eq.f32.partialorder %v2735, 0.0
          %v2796 = vand.u32 %v2735, 2147483648
          %v2797 = vsel %vm2795, %v2796, %v2794
          %v2798 = vrsqrt.pop %v2737
          %v2799 = vmul.f32 %v2737, %v2798
          %vm2800 = vcmp.eq.f32.partialorder %v2737, inf
          %v2801 = vsel %vm2800, %v2737, %v2799
          %vm2802 = vcmp.eq.f32.partialorder %v2737, 0.0
          %v2803 = vand.u32 %v2737, 2147483648
          %v2804 = vsel %vm2802, %v2803, %v2801
          %v2805 = vrsqrt.pop %v2739
          %v2806 = vmul.f32 %v2739, %v2805
          %vm2807 = vcmp.eq.f32.partialorder %v2739, inf
          %v2808 = vsel %vm2807, %v2739, %v2806
          %vm2809 = vcmp.eq.f32.partialorder %v2739, 0.0
          %v2810 = vand.u32 %v2739, 2147483648
          %v2811 = vsel %vm2809, %v2810, %v2808
          %v2812 = vrsqrt.pop %v2741
          %v2813 = vmul.f32 %v2741, %v2812
          %vm2814 = vcmp.eq.f32.partialorder %v2741, inf
          %v2815 = vsel %vm2814, %v2741, %v2813
          %vm2816 = vcmp.eq.f32.partialorder %v2741, 0.0
          %v2817 = vand.u32 %v2741, 2147483648
          %v2818 = vsel %vm2816, %v2817, %v2815
          %v2819 = vrsqrt.pop %v2743
          %v2820 = vmul.f32 %v2743, %v2819
          %vm2821 = vcmp.eq.f32.partialorder %v2743, inf
          %v2822 = vsel %vm2821, %v2743, %v2820
          %vm2823 = vcmp.eq.f32.partialorder %v2743, 0.0
          %v2824 = vand.u32 %v2743, 2147483648
          %v2825 = vsel %vm2823, %v2824, %v2822
          %v2826 = vrsqrt.pop %v2745
          %v2827 = vmul.f32 %v2745, %v2826
          %vm2828 = vcmp.eq.f32.partialorder %v2745, inf
          %v2829 = vsel %vm2828, %v2745, %v2827
          %vm2830 = vcmp.eq.f32.partialorder %v2745, 0.0
          %v2831 = vand.u32 %v2745, 2147483648
          %v2832 = vsel %vm2830, %v2831, %v2829
          %v2833 = vrsqrt.pop %v2747
          %v2834 = vmul.f32 %v2747, %v2833
          %vm2835 = vcmp.eq.f32.partialorder %v2747, inf
          %v2836 = vsel %vm2835, %v2747, %v2834
          %vm2837 = vcmp.eq.f32.partialorder %v2747, 0.0
          %v2838 = vand.u32 %v2747, 2147483648
          %v2839 = vsel %vm2837, %v2838, %v2836
          %v2840 = vrsqrt.pop %v2749
          %v2841 = vmul.f32 %v2749, %v2840
          %vm2842 = vcmp.eq.f32.partialorder %v2749, inf
          %v2843 = vsel %vm2842, %v2749, %v2841
          %vm2844 = vcmp.eq.f32.partialorder %v2749, 0.0
          %v2845 = vand.u32 %v2749, 2147483648
          %v2846 = vsel %vm2844, %v2845, %v2843
          %v2847 = vrsqrt.pop %v2751
          %v2848 = vmul.f32 %v2751, %v2847
          %vm2849 = vcmp.eq.f32.partialorder %v2751, inf
          %v2850 = vsel %vm2849, %v2751, %v2848
          %vm2851 = vcmp.eq.f32.partialorder %v2751, 0.0
          %v2852 = vand.u32 %v2751, 2147483648
          %v2853 = vsel %vm2851, %v2852, %v2850
          %v2854 = vrsqrt.pop %v2753
          %v2855 = vmul.f32 %v2753, %v2854
          %vm2856 = vcmp.eq.f32.partialorder %v2753, inf
          %v2857 = vsel %vm2856, %v2753, %v2855
          %vm2858 = vcmp.eq.f32.partialorder %v2753, 0.0
          %v2859 = vand.u32 %v2753, 2147483648
          %v2860 = vsel %vm2858, %v2859, %v2857
          %v2861 = vrsqrt.pop %v2755
          %v2862 = vmul.f32 %v2755, %v2861
          %vm2863 = vcmp.eq.f32.partialorder %v2755, inf
          %v2864 = vsel %vm2863, %v2755, %v2862
          %vm2865 = vcmp.eq.f32.partialorder %v2755, 0.0
          %v2866 = vand.u32 %v2755, 2147483648
          %v2867 = vsel %vm2865, %v2866, %v2864
          %v2868 = vmax.f32 %v2762, 1e-15
          %v2869 = vmax.f32 %v2769, 1e-15
          %v2870 = vmax.f32 %v2776, 1e-15
          %v2871 = vmax.f32 %v2783, 1e-15
          %v2872 = vmax.f32 %v2790, 1e-15
          %v2873 = vmax.f32 %v2797, 1e-15
          %v2874 = vmax.f32 %v2804, 1e-15
          %v2875 = vmax.f32 %v2811, 1e-15
          %v2876 = vmax.f32 %v2818, 1e-15
          %v2877 = vmax.f32 %v2825, 1e-15
          %v2878 = vmax.f32 %v2832, 1e-15
          %v2879 = vmax.f32 %v2839, 1e-15
          %v2880 = vmax.f32 %v2846, 1e-15
          %v2881 = vmax.f32 %v2853, 1e-15
          %v2882 = vmax.f32 %v2860, 1e-15
          %v2883 = vmax.f32 %v2867, 1e-15
          %v2884 = vtanh.pop %v2868
          %v2885 = vtanh.pop %v2869
          %v2886 = vtanh.pop %v2870
          %v2887 = vtanh.pop %v2871
          %v2888 = vtanh.pop %v2872
          %v2889 = vtanh.pop %v2873
          %v2890 = vtanh.pop %v2874
          %v2891 = vtanh.pop %v2875
          %v2892 = vtanh.pop %v2876
          %v2893 = vtanh.pop %v2877
          %v2894 = vtanh.pop %v2878
          %v2895 = vtanh.pop %v2879
          %v2896 = vtanh.pop %v2880
          %v2897 = vtanh.pop %v2881
          %v2898 = vtanh.pop %v2882
          %v2899 = vtanh.pop %v2883
          %v2900 = vrcp.pop %v2868
          %v2901 = vmul.f32 %v2884, %v2900
          %v2902 = vrcp.pop %v2869
          %v2903 = vmul.f32 %v2885, %v2902
          %v2904 = vrcp.pop %v2870
          %v2905 = vmul.f32 %v2886, %v2904
          %v2906 = vrcp.pop %v2871
          %v2907 = vmul.f32 %v2887, %v2906
          %v2908 = vrcp.pop %v2872
          %v2909 = vmul.f32 %v2888, %v2908
          %v2910 = vrcp.pop %v2873
          %v2911 = vmul.f32 %v2889, %v2910
          %v2912 = vrcp.pop %v2874
          %v2913 = vmul.f32 %v2890, %v2912
          %v2914 = vrcp.pop %v2875
          %v2915 = vmul.f32 %v2891, %v2914
          %v2916 = vrcp.pop %v2876
          %v2917 = vmul.f32 %v2892, %v2916
          %v2918 = vrcp.pop %v2877
          %v2919 = vmul.f32 %v2893, %v2918
          %v2920 = vrcp.pop %v2878
          %v2921 = vmul.f32 %v2894, %v2920
          %v2922 = vrcp.pop %v2879
          %v2923 = vmul.f32 %v2895, %v2922
          %v2924 = vrcp.pop %v2880
          %v2925 = vmul.f32 %v2896, %v2924
          %v2926 = vrcp.pop %v2881
          %v2927 = vmul.f32 %v2897, %v2926
          %v2928 = vrcp.pop %v2882
          %v2929 = vmul.f32 %v2898, %v2928
          %v2930 = vrcp.pop %v2883
          %v2931 = vmul.f32 %v2899, %v2930
          %v2932 = vmul.f32 %v2630, %v2901
          %v2933 = vmul.f32 %v2635, %v2903
          %v2934 = vmul.f32 %v2640, %v2905
          %v2935 = vmul.f32 %v2645, %v2907
          %v2936 = vmul.f32 %v2650, %v2909
          %v2937 = vmul.f32 %v2655, %v2911
          %v2938 = vmul.f32 %v2660, %v2913
          %v2939 = vmul.f32 %v2665, %v2915
          %v2940 = vmul.f32 %v2670, %v2917
          %v2941 = vmul.f32 %v2675, %v2919
          %v2942 = vmul.f32 %v2680, %v2921
          %v2943 = vmul.f32 %v2685, %v2923
          %v2944 = vmul.f32 %v2690, %v2925
          %v2945 = vmul.f32 %v2695, %v2927
          %v2946 = vmul.f32 %v2700, %v2929
          %v2947 = vmul.f32 %v2705, %v2931
          %v2948 = vmax.f32 %v2884, 1e-15
          %v2949 = vmax.f32 %v2885, 1e-15
          %v2950 = vmax.f32 %v2886, 1e-15
          %v2951 = vmax.f32 %v2887, 1e-15
          %v2952 = vmax.f32 %v2888, 1e-15
          %v2953 = vmax.f32 %v2889, 1e-15
          %v2954 = vmax.f32 %v2890, 1e-15
          %v2955 = vmax.f32 %v2891, 1e-15
          %v2956 = vmax.f32 %v2892, 1e-15
          %v2957 = vmax.f32 %v2893, 1e-15
          %v2958 = vmax.f32 %v2894, 1e-15
          %v2959 = vmax.f32 %v2895, 1e-15
          %v2960 = vmax.f32 %v2896, 1e-15
          %v2961 = vmax.f32 %v2897, 1e-15
          %v2962 = vmax.f32 %v2898, 1e-15
          %v2963 = vmax.f32 %v2899, 1e-15
          %vm2964 = vcmp.gt.f32.partialorder %v2948, 0.99999
          %vm2965 = vcmp.gt.f32.partialorder %v2949, 0.99999
          %vm2966 = vcmp.gt.f32.partialorder %v2950, 0.99999
          %vm2967 = vcmp.gt.f32.partialorder %v2951, 0.99999
          %vm2968 = vcmp.gt.f32.partialorder %v2952, 0.99999
          %vm2969 = vcmp.gt.f32.partialorder %v2953, 0.99999
          %vm2970 = vcmp.gt.f32.partialorder %v2954, 0.99999
          %vm2971 = vcmp.gt.f32.partialorder %v2955, 0.99999
          %vm2972 = vcmp.gt.f32.partialorder %v2956, 0.99999
          %vm2973 = vcmp.gt.f32.partialorder %v2957, 0.99999
          %vm2974 = vcmp.gt.f32.partialorder %v2958, 0.99999
          %vm2975 = vcmp.gt.f32.partialorder %v2959, 0.99999
          %vm2976 = vcmp.gt.f32.partialorder %v2960, 0.99999
          %vm2977 = vcmp.gt.f32.partialorder %v2961, 0.99999
          %vm2978 = vcmp.gt.f32.partialorder %v2962, 0.99999
          %vm2979 = vcmp.gt.f32.partialorder %v2963, 0.99999
          %v2980 = vrcp.pop %v2948
          %v2981 = vmul.f32 0.99999, %v2980
          %v2982 = vrcp.pop %v2949
          %v2983 = vmul.f32 0.99999, %v2982
          %v2984 = vrcp.pop %v2950
          %v2985 = vmul.f32 0.99999, %v2984
          %v2986 = vrcp.pop %v2951
          %v2987 = vmul.f32 0.99999, %v2986
          %v2988 = vrcp.pop %v2952
          %v2989 = vmul.f32 0.99999, %v2988
          %v2990 = vrcp.pop %v2953
          %v2991 = vmul.f32 0.99999, %v2990
          %v2992 = vrcp.pop %v2954
          %v2993 = vmul.f32 0.99999, %v2992
          %v2994 = vrcp.pop %v2955
          %v2995 = vmul.f32 0.99999, %v2994
          %v2996 = vrcp.pop %v2956
          %v2997 = vmul.f32 0.99999, %v2996
          %v2998 = vrcp.pop %v2957
          %v2999 = vmul.f32 0.99999, %v2998
          %v3000 = vrcp.pop %v2958
          %v3001 = vmul.f32 0.99999, %v3000
          %v3002 = vrcp.pop %v2959
          %v3003 = vmul.f32 0.99999, %v3002
          %v3004 = vrcp.pop %v2960
          %v3005 = vmul.f32 0.99999, %v3004
          %v3006 = vrcp.pop %v2961
          %v3007 = vmul.f32 0.99999, %v3006
          %v3008 = vrcp.pop %v2962
          %v3009 = vmul.f32 0.99999, %v3008
          %v3010 = vrcp.pop %v2963
          %v3011 = vmul.f32 0.99999, %v3010
          %v3012 = vsel %vm2964, %v2981, 1.0
          %v3013 = vsel %vm2965, %v2983, 1.0
          %v3014 = vsel %vm2966, %v2985, 1.0
          %v3015 = vsel %vm2967, %v2987, 1.0
          %v3016 = vsel %vm2968, %v2989, 1.0
          %v3017 = vsel %vm2969, %v2991, 1.0
          %v3018 = vsel %vm2970, %v2993, 1.0
          %v3019 = vsel %vm2971, %v2995, 1.0
          %v3020 = vsel %vm2972, %v2997, 1.0
          %v3021 = vsel %vm2973, %v2999, 1.0
          %v3022 = vsel %vm2974, %v3001, 1.0
          %v3023 = vsel %vm2975, %v3003, 1.0
          %v3024 = vsel %vm2976, %v3005, 1.0
          %v3025 = vsel %vm2977, %v3007, 1.0
          %v3026 = vsel %vm2978, %v3009, 1.0
          %v3027 = vsel %vm2979, %v3011, 1.0
          %v3028 = vmul.f32 %v2932, %v3012
          %v3029 = vmul.f32 %v2933, %v3013
          %v3030 = vmul.f32 %v2934, %v3014
          %v3031 = vmul.f32 %v2935, %v3015
          %v3032 = vmul.f32 %v2936, %v3016
          %v3033 = vmul.f32 %v2937, %v3017
          %v3034 = vmul.f32 %v2938, %v3018
          %v3035 = vmul.f32 %v2939, %v3019
          %v3036 = vmul.f32 %v2940, %v3020
          %v3037 = vmul.f32 %v2941, %v3021
          %v3038 = vmul.f32 %v2942, %v3022
          %v3039 = vmul.f32 %v2943, %v3023
          %v3040 = vmul.f32 %v2944, %v3024
          %v3041 = vmul.f32 %v2945, %v3025
          %v3042 = vmul.f32 %v2946, %v3026
          %v3043 = vmul.f32 %v2947, %v3027
          %v3044 = vsel %vm2964, 0.99999, %v2948
          %v3045 = vsel %vm2965, 0.99999, %v2949
          %v3046 = vsel %vm2966, 0.99999, %v2950
          %v3047 = vsel %vm2967, 0.99999, %v2951
          %v3048 = vsel %vm2968, 0.99999, %v2952
          %v3049 = vsel %vm2969, 0.99999, %v2953
          %v3050 = vsel %vm2970, 0.99999, %v2954
          %v3051 = vsel %vm2971, 0.99999, %v2955
          %v3052 = vsel %vm2972, 0.99999, %v2956
          %v3053 = vsel %vm2973, 0.99999, %v2957
          %v3054 = vsel %vm2974, 0.99999, %v2958
          %v3055 = vsel %vm2975, 0.99999, %v2959
          %v3056 = vsel %vm2976, 0.99999, %v2960
          %v3057 = vsel %vm2977, 0.99999, %v2961
          %v3058 = vsel %vm2978, 0.99999, %v2962
          %v3059 = vsel %vm2979, 0.99999, %v2963
          %v3060 = vmul.f32 %v3044, %v3044
          %v3061 = vmul.f32 %v3045, %v3045
          %v3062 = vmul.f32 %v3046, %v3046
          %v3063 = vmul.f32 %v3047, %v3047
          %v3064 = vmul.f32 %v3048, %v3048
          %v3065 = vmul.f32 %v3049, %v3049
          %v3066 = vmul.f32 %v3050, %v3050
          %v3067 = vmul.f32 %v3051, %v3051
          %v3068 = vmul.f32 %v3052, %v3052
          %v3069 = vmul.f32 %v3053, %v3053
          %v3070 = vmul.f32 %v3054, %v3054
          %v3071 = vmul.f32 %v3055, %v3055
          %v3072 = vmul.f32 %v3056, %v3056
          %v3073 = vmul.f32 %v3057, %v3057
          %v3074 = vmul.f32 %v3058, %v3058
          %v3075 = vmul.f32 %v3059, %v3059
          %v3076 = vsub.f32 1.0, %v3060
          %v3077 = vsub.f32 1.0, %v3061
          %v3078 = vsub.f32 1.0, %v3062
          %v3079 = vsub.f32 1.0, %v3063
          %v3080 = vsub.f32 1.0, %v3064
          %v3081 = vsub.f32 1.0, %v3065
          %v3082 = vsub.f32 1.0, %v3066
          %v3083 = vsub.f32 1.0, %v3067
          %v3084 = vsub.f32 1.0, %v3068
          %v3085 = vsub.f32 1.0, %v3069
          %v3086 = vsub.f32 1.0, %v3070
          %v3087 = vsub.f32 1.0, %v3071
          %v3088 = vsub.f32 1.0, %v3072
          %v3089 = vsub.f32 1.0, %v3073
          %v3090 = vsub.f32 1.0, %v3074
          %v3091 = vsub.f32 1.0, %v3075
          %v3092 = vmax.f32 %v3076, 1e-15
          %v3093 = vmax.f32 %v3077, 1e-15
          %v3094 = vmax.f32 %v3078, 1e-15
          %v3095 = vmax.f32 %v3079, 1e-15
          %v3096 = vmax.f32 %v3080, 1e-15
          %v3097 = vmax.f32 %v3081, 1e-15
          %v3098 = vmax.f32 %v3082, 1e-15
          %v3099 = vmax.f32 %v3083, 1e-15
          %v3100 = vmax.f32 %v3084, 1e-15
          %v3101 = vmax.f32 %v3085, 1e-15
          %v3102 = vmax.f32 %v3086, 1e-15
          %v3103 = vmax.f32 %v3087, 1e-15
          %v3104 = vmax.f32 %v3088, 1e-15
          %v3105 = vmax.f32 %v3089, 1e-15
          %v3106 = vmax.f32 %v3090, 1e-15
          %v3107 = vmax.f32 %v3091, 1e-15
          %v3108 = vrcp.pop %v3092
          %v3109 = vmul.f32 2.0, %v3108
          %v3110 = vrcp.pop %v3093
          %v3111 = vmul.f32 2.0, %v3110
          %v3112 = vrcp.pop %v3094
          %v3113 = vmul.f32 2.0, %v3112
          %v3114 = vrcp.pop %v3095
          %v3115 = vmul.f32 2.0, %v3114
          %v3116 = vrcp.pop %v3096
          %v3117 = vmul.f32 2.0, %v3116
          %v3118 = vrcp.pop %v3097
          %v3119 = vmul.f32 2.0, %v3118
          %v3120 = vrcp.pop %v3098
          %v3121 = vmul.f32 2.0, %v3120
          %v3122 = vrcp.pop %v3099
          %v3123 = vmul.f32 2.0, %v3122
          %v3124 = vrcp.pop %v3100
          %v3125 = vmul.f32 2.0, %v3124
          %v3126 = vrcp.pop %v3101
          %v3127 = vmul.f32 2.0, %v3126
          %v3128 = vrcp.pop %v3102
          %v3129 = vmul.f32 2.0, %v3128
          %v3130 = vrcp.pop %v3103
          %v3131 = vmul.f32 2.0, %v3130
          %v3132 = vrcp.pop %v3104
          %v3133 = vmul.f32 2.0, %v3132
          %v3134 = vrcp.pop %v3105
          %v3135 = vmul.f32 2.0, %v3134
          %v3136 = vrcp.pop %v3106
          %v3137 = vmul.f32 2.0, %v3136
          %v3138 = vrcp.pop %v3107
          %v3139 = vmul.f32 2.0, %v3138
          %v3140 = vmul.f32 %v2332, %v2332
          %v3141 = vmul.f32 %v2333, %v2333
          %v3142 = vmul.f32 %v2334, %v2334
          %v3143 = vmul.f32 %v2335, %v2335
          %v3144 = vmul.f32 %v2336, %v2336
          %v3145 = vmul.f32 %v2337, %v2337
          %v3146 = vmul.f32 %v2338, %v2338
          %v3147 = vmul.f32 %v2339, %v2339
          %v3148 = vmul.f32 %v2340, %v2340
          %v3149 = vmul.f32 %v2341, %v2341
          %v3150 = vmul.f32 %v2342, %v2342
          %v3151 = vmul.f32 %v2343, %v2343
          %v3152 = vmul.f32 %v2344, %v2344
          %v3153 = vmul.f32 %v2345, %v2345
          %v3154 = vmul.f32 %v2346, %v2346
          %v3155 = vmul.f32 %v2347, %v2347
          %v3156 = vsub.f32 1.0, %v3140
          %v3157 = vsub.f32 1.0, %v3141
          %v3158 = vsub.f32 1.0, %v3142
          %v3159 = vsub.f32 1.0, %v3143
          %v3160 = vsub.f32 1.0, %v3144
          %v3161 = vsub.f32 1.0, %v3145
          %v3162 = vsub.f32 1.0, %v3146
          %v3163 = vsub.f32 1.0, %v3147
          %v3164 = vsub.f32 1.0, %v3148
          %v3165 = vsub.f32 1.0, %v3149
          %v3166 = vsub.f32 1.0, %v3150
          %v3167 = vsub.f32 1.0, %v3151
          %v3168 = vsub.f32 1.0, %v3152
          %v3169 = vsub.f32 1.0, %v3153
          %v3170 = vsub.f32 1.0, %v3154
          %v3171 = vsub.f32 1.0, %v3155
          %v3172 = vmax.f32 %v3156, 1e-15
          %v3173 = vmax.f32 %v3157, 1e-15
          %v3174 = vmax.f32 %v3158, 1e-15
          %v3175 = vmax.f32 %v3159, 1e-15
          %v3176 = vmax.f32 %v3160, 1e-15
          %v3177 = vmax.f32 %v3161, 1e-15
          %v3178 = vmax.f32 %v3162, 1e-15
          %v3179 = vmax.f32 %v3163, 1e-15
          %v3180 = vmax.f32 %v3164, 1e-15
          %v3181 = vmax.f32 %v3165, 1e-15
          %v3182 = vmax.f32 %v3166, 1e-15
          %v3183 = vmax.f32 %v3167, 1e-15
          %v3184 = vmax.f32 %v3168, 1e-15
          %v3185 = vmax.f32 %v3169, 1e-15
          %v3186 = vmax.f32 %v3170, 1e-15
          %v3187 = vmax.f32 %v3171, 1e-15
          %v3188 = vrcp.pop %v3172
          %v3189 = vmul.f32 2.0, %v3188
          %v3190 = vrcp.pop %v3173
          %v3191 = vmul.f32 2.0, %v3190
          %v3192 = vrcp.pop %v3174
          %v3193 = vmul.f32 2.0, %v3192
          %v3194 = vrcp.pop %v3175
          %v3195 = vmul.f32 2.0, %v3194
          %v3196 = vrcp.pop %v3176
          %v3197 = vmul.f32 2.0, %v3196
          %v3198 = vrcp.pop %v3177
          %v3199 = vmul.f32 2.0, %v3198
          %v3200 = vrcp.pop %v3178
          %v3201 = vmul.f32 2.0, %v3200
          %v3202 = vrcp.pop %v3179
          %v3203 = vmul.f32 2.0, %v3202
          %v3204 = vrcp.pop %v3180
          %v3205 = vmul.f32 2.0, %v3204
          %v3206 = vrcp.pop %v3181
          %v3207 = vmul.f32 2.0, %v3206
          %v3208 = vrcp.pop %v3182
          %v3209 = vmul.f32 2.0, %v3208
          %v3210 = vrcp.pop %v3183
          %v3211 = vmul.f32 2.0, %v3210
          %v3212 = vrcp.pop %v3184
          %v3213 = vmul.f32 2.0, %v3212
          %v3214 = vrcp.pop %v3185
          %v3215 = vmul.f32 2.0, %v3214
          %v3216 = vrcp.pop %v3186
          %v3217 = vmul.f32 2.0, %v3216
          %v3218 = vrcp.pop %v3187
          %v3219 = vmul.f32 2.0, %v3218
          %v3220 = vsub.f32 %v3109, 1.0
          %v3221 = vsub.f32 %v3111, 1.0
          %v3222 = vsub.f32 %v3113, 1.0
          %v3223 = vsub.f32 %v3115, 1.0
          %v3224 = vsub.f32 %v3117, 1.0
          %v3225 = vsub.f32 %v3119, 1.0
          %v3226 = vsub.f32 %v3121, 1.0
          %v3227 = vsub.f32 %v3123, 1.0
          %v3228 = vsub.f32 %v3125, 1.0
          %v3229 = vsub.f32 %v3127, 1.0
          %v3230 = vsub.f32 %v3129, 1.0
          %v3231 = vsub.f32 %v3131, 1.0
          %v3232 = vsub.f32 %v3133, 1.0
          %v3233 = vsub.f32 %v3135, 1.0
          %v3234 = vsub.f32 %v3137, 1.0
          %v3235 = vsub.f32 %v3139, 1.0
          %v3236 = vmul.f32 %v3220, 0.22314355
          %v3237 = vmul.f32 %v3221, 0.22314355
          %v3238 = vmul.f32 %v3222, 0.22314355
          %v3239 = vmul.f32 %v3223, 0.22314355
          %v3240 = vmul.f32 %v3224, 0.22314355
          %v3241 = vmul.f32 %v3225, 0.22314355
          %v3242 = vmul.f32 %v3226, 0.22314355
          %v3243 = vmul.f32 %v3227, 0.22314355
          %v3244 = vmul.f32 %v3228, 0.22314355
          %v3245 = vmul.f32 %v3229, 0.22314355
          %v3246 = vmul.f32 %v3230, 0.22314355
          %v3247 = vmul.f32 %v3231, 0.22314355
          %v3248 = vmul.f32 %v3232, 0.22314355
          %v3249 = vmul.f32 %v3233, 0.22314355
          %v3250 = vmul.f32 %v3234, 0.22314355
          %v3251 = vmul.f32 %v3235, 0.22314355
          %v3252 = vsub.f32 %v3189, 1.0
          %v3253 = vsub.f32 %v3191, 1.0
          %v3254 = vsub.f32 %v3193, 1.0
          %v3255 = vsub.f32 %v3195, 1.0
          %v3256 = vsub.f32 %v3197, 1.0
          %v3257 = vsub.f32 %v3199, 1.0
          %v3258 = vsub.f32 %v3201, 1.0
          %v3259 = vsub.f32 %v3203, 1.0
          %v3260 = vsub.f32 %v3205, 1.0
          %v3261 = vsub.f32 %v3207, 1.0
          %v3262 = vsub.f32 %v3209, 1.0
          %v3263 = vsub.f32 %v3211, 1.0
          %v3264 = vsub.f32 %v3213, 1.0
          %v3265 = vsub.f32 %v3215, 1.0
          %v3266 = vsub.f32 %v3217, 1.0
          %v3267 = vsub.f32 %v3219, 1.0
          %v3268 = vmul.f32 %v3252, 0.7768564
          %v3269 = vmul.f32 %v3253, 0.7768564
          %v3270 = vmul.f32 %v3254, 0.7768564
          %v3271 = vmul.f32 %v3255, 0.7768564
          %v3272 = vmul.f32 %v3256, 0.7768564
          %v3273 = vmul.f32 %v3257, 0.7768564
          %v3274 = vmul.f32 %v3258, 0.7768564
          %v3275 = vmul.f32 %v3259, 0.7768564
          %v3276 = vmul.f32 %v3260, 0.7768564
          %v3277 = vmul.f32 %v3261, 0.7768564
          %v3278 = vmul.f32 %v3262, 0.7768564
          %v3279 = vmul.f32 %v3263, 0.7768564
          %v3280 = vmul.f32 %v3264, 0.7768564
          %v3281 = vmul.f32 %v3265, 0.7768564
          %v3282 = vmul.f32 %v3266, 0.7768564
          %v3283 = vmul.f32 %v3267, 0.7768564
          %v3284 = vadd.f32 %v3236, %v3268
          %v3285 = vadd.f32 %v3237, %v3269
          %v3286 = vadd.f32 %v3238, %v3270
          %v3287 = vadd.f32 %v3239, %v3271
          %v3288 = vadd.f32 %v3240, %v3272
          %v3289 = vadd.f32 %v3241, %v3273
          %v3290 = vadd.f32 %v3242, %v3274
          %v3291 = vadd.f32 %v3243, %v3275
          %v3292 = vadd.f32 %v3244, %v3276
          %v3293 = vadd.f32 %v3245, %v3277
          %v3294 = vadd.f32 %v3246, %v3278
          %v3295 = vadd.f32 %v3247, %v3279
          %v3296 = vadd.f32 %v3248, %v3280
          %v3297 = vadd.f32 %v3249, %v3281
          %v3298 = vadd.f32 %v3250, %v3282
          %v3299 = vadd.f32 %v3251, %v3283
          %vm3300 = vcmp.ge.f32.partialorder %v3284, 0.0
          %vm3301 = vcmp.ge.f32.partialorder %v3285, 0.0
          %vm3302 = vcmp.ge.f32.partialorder %v3286, 0.0
          %vm3303 = vcmp.ge.f32.partialorder %v3287, 0.0
          %vm3304 = vcmp.ge.f32.partialorder %v3288, 0.0
          %vm3305 = vcmp.ge.f32.partialorder %v3289, 0.0
          %vm3306 = vcmp.ge.f32.partialorder %v3290, 0.0
          %vm3307 = vcmp.ge.f32.partialorder %v3291, 0.0
          %vm3308 = vcmp.ge.f32.partialorder %v3292, 0.0
          %vm3309 = vcmp.ge.f32.partialorder %v3293, 0.0
          %vm3310 = vcmp.ge.f32.partialorder %v3294, 0.0
          %vm3311 = vcmp.ge.f32.partialorder %v3295, 0.0
          %vm3312 = vcmp.ge.f32.partialorder %v3296, 0.0
          %vm3313 = vcmp.ge.f32.partialorder %v3297, 0.0
          %vm3314 = vcmp.ge.f32.partialorder %v3298, 0.0
          %vm3315 = vcmp.ge.f32.partialorder %v3299, 0.0
          %v3316 = vmax.f32 %v3284, 1e-10
          %v3317 = vmax.f32 %v3285, 1e-10
          %v3318 = vmax.f32 %v3286, 1e-10
          %v3319 = vmax.f32 %v3287, 1e-10
          %v3320 = vmax.f32 %v3288, 1e-10
          %v3321 = vmax.f32 %v3289, 1e-10
          %v3322 = vmax.f32 %v3290, 1e-10
          %v3323 = vmax.f32 %v3291, 1e-10
          %v3324 = vmax.f32 %v3292, 1e-10
          %v3325 = vmax.f32 %v3293, 1e-10
          %v3326 = vmax.f32 %v3294, 1e-10
          %v3327 = vmax.f32 %v3295, 1e-10
          %v3328 = vmax.f32 %v3296, 1e-10
          %v3329 = vmax.f32 %v3297, 1e-10
          %v3330 = vmax.f32 %v3298, 1e-10
          %v3331 = vmax.f32 %v3299, 1e-10
          %v3332 = vmin.f32 %v3284, -1e-10
          %v3333 = vmin.f32 %v3285, -1e-10
          %v3334 = vmin.f32 %v3286, -1e-10
          %v3335 = vmin.f32 %v3287, -1e-10
          %v3336 = vmin.f32 %v3288, -1e-10
          %v3337 = vmin.f32 %v3289, -1e-10
          %v3338 = vmin.f32 %v3290, -1e-10
          %v3339 = vmin.f32 %v3291, -1e-10
          %v3340 = vmin.f32 %v3292, -1e-10
          %v3341 = vmin.f32 %v3293, -1e-10
          %v3342 = vmin.f32 %v3294, -1e-10
          %v3343 = vmin.f32 %v3295, -1e-10
          %v3344 = vmin.f32 %v3296, -1e-10
          %v3345 = vmin.f32 %v3297, -1e-10
          %v3346 = vmin.f32 %v3298, -1e-10
          %v3347 = vmin.f32 %v3299, -1e-10
          %v3348 = vsel %vm3300, %v3316, %v3332
          %v3349 = vsel %vm3301, %v3317, %v3333
          %v3350 = vsel %vm3302, %v3318, %v3334
          %v3351 = vsel %vm3303, %v3319, %v3335
          %v3352 = vsel %vm3304, %v3320, %v3336
          %v3353 = vsel %vm3305, %v3321, %v3337
          %v3354 = vsel %vm3306, %v3322, %v3338
          %v3355 = vsel %vm3307, %v3323, %v3339
          %v3356 = vsel %vm3308, %v3324, %v3340
          %v3357 = vsel %vm3309, %v3325, %v3341
          %v3358 = vsel %vm3310, %v3326, %v3342
          %v3359 = vsel %vm3311, %v3327, %v3343
          %v3360 = vsel %vm3312, %v3328, %v3344
          %v3361 = vsel %vm3313, %v3329, %v3345
          %v3362 = vsel %vm3314, %v3330, %v3346
          %v3363 = vsel %vm3315, %v3331, %v3347
          %v3364 = vmul.f32 %v3109, 0.22314355
          %v3365 = vmul.f32 %v3111, 0.22314355
          %v3366 = vmul.f32 %v3113, 0.22314355
          %v3367 = vmul.f32 %v3115, 0.22314355
          %v3368 = vmul.f32 %v3117, 0.22314355
          %v3369 = vmul.f32 %v3119, 0.22314355
          %v3370 = vmul.f32 %v3121, 0.22314355
          %v3371 = vmul.f32 %v3123, 0.22314355
          %v3372 = vmul.f32 %v3125, 0.22314355
          %v3373 = vmul.f32 %v3127, 0.22314355
          %v3374 = vmul.f32 %v3129, 0.22314355
          %v3375 = vmul.f32 %v3131, 0.22314355
          %v3376 = vmul.f32 %v3133, 0.22314355
          %v3377 = vmul.f32 %v3135, 0.22314355
          %v3378 = vmul.f32 %v3137, 0.22314355
          %v3379 = vmul.f32 %v3139, 0.22314355
          %v3380 = vmul.f32 %v3364, %v3028
          %v3381 = vmul.f32 %v3365, %v3029
          %v3382 = vmul.f32 %v3366, %v3030
          %v3383 = vmul.f32 %v3367, %v3031
          %v3384 = vmul.f32 %v3368, %v3032
          %v3385 = vmul.f32 %v3369, %v3033
          %v3386 = vmul.f32 %v3370, %v3034
          %v3387 = vmul.f32 %v3371, %v3035
          %v3388 = vmul.f32 %v3372, %v3036
          %v3389 = vmul.f32 %v3373, %v3037
          %v3390 = vmul.f32 %v3374, %v3038
          %v3391 = vmul.f32 %v3375, %v3039
          %v3392 = vmul.f32 %v3376, %v3040
          %v3393 = vmul.f32 %v3377, %v3041
          %v3394 = vmul.f32 %v3378, %v3042
          %v3395 = vmul.f32 %v3379, %v3043
          %v3396 = vmul.f32 %v3189, 0.7768564
          %v3397 = vmul.f32 %v3191, 0.7768564
          %v3398 = vmul.f32 %v3193, 0.7768564
          %v3399 = vmul.f32 %v3195, 0.7768564
          %v3400 = vmul.f32 %v3197, 0.7768564
          %v3401 = vmul.f32 %v3199, 0.7768564
          %v3402 = vmul.f32 %v3201, 0.7768564
          %v3403 = vmul.f32 %v3203, 0.7768564
          %v3404 = vmul.f32 %v3205, 0.7768564
          %v3405 = vmul.f32 %v3207, 0.7768564
          %v3406 = vmul.f32 %v3209, 0.7768564
          %v3407 = vmul.f32 %v3211, 0.7768564
          %v3408 = vmul.f32 %v3213, 0.7768564
          %v3409 = vmul.f32 %v3215, 0.7768564
          %v3410 = vmul.f32 %v3217, 0.7768564
          %v3411 = vmul.f32 %v3219, 0.7768564
          %v3412 = vmul.f32 %v3396, %v2316
          %v3413 = vmul.f32 %v3397, %v2317
          %v3414 = vmul.f32 %v3398, %v2318
          %v3415 = vmul.f32 %v3399, %v2319
          %v3416 = vmul.f32 %v3400, %v2320
          %v3417 = vmul.f32 %v3401, %v2321
          %v3418 = vmul.f32 %v3402, %v2322
          %v3419 = vmul.f32 %v3403, %v2323
          %v3420 = vmul.f32 %v3404, %v2324
          %v3421 = vmul.f32 %v3405, %v2325
          %v3422 = vmul.f32 %v3406, %v2326
          %v3423 = vmul.f32 %v3407, %v2327
          %v3424 = vmul.f32 %v3408, %v2328
          %v3425 = vmul.f32 %v3409, %v2329
          %v3426 = vmul.f32 %v3410, %v2330
          %v3427 = vmul.f32 %v3411, %v2331
          %v3428 = vadd.f32 %v3380, %v3412
          %v3429 = vadd.f32 %v3381, %v3413
          %v3430 = vadd.f32 %v3382, %v3414
          %v3431 = vadd.f32 %v3383, %v3415
          %v3432 = vadd.f32 %v3384, %v3416
          %v3433 = vadd.f32 %v3385, %v3417
          %v3434 = vadd.f32 %v3386, %v3418
          %v3435 = vadd.f32 %v3387, %v3419
          %v3436 = vadd.f32 %v3388, %v3420
          %v3437 = vadd.f32 %v3389, %v3421
          %v3438 = vadd.f32 %v3390, %v3422
          %v3439 = vadd.f32 %v3391, %v3423
          %v3440 = vadd.f32 %v3392, %v3424
          %v3441 = vadd.f32 %v3393, %v3425
          %v3442 = vadd.f32 %v3394, %v3426
          %v3443 = vadd.f32 %v3395, %v3427
          %v3444 = vrcp.pop %v3348
          %v3445 = vmul.f32 %v3428, %v3444
          %v3446 = vrcp.pop %v3349
          %v3447 = vmul.f32 %v3429, %v3446
          %v3448 = vrcp.pop %v3350
          %v3449 = vmul.f32 %v3430, %v3448
          %v3450 = vrcp.pop %v3351
          %v3451 = vmul.f32 %v3431, %v3450
          %v3452 = vrcp.pop %v3352
          %v3453 = vmul.f32 %v3432, %v3452
          %v3454 = vrcp.pop %v3353
          %v3455 = vmul.f32 %v3433, %v3454
          %v3456 = vrcp.pop %v3354
          %v3457 = vmul.f32 %v3434, %v3456
          %v3458 = vrcp.pop %v3355
          %v3459 = vmul.f32 %v3435, %v3458
          %v3460 = vrcp.pop %v3356
          %v3461 = vmul.f32 %v3436, %v3460
          %v3462 = vrcp.pop %v3357
          %v3463 = vmul.f32 %v3437, %v3462
          %v3464 = vrcp.pop %v3358
          %v3465 = vmul.f32 %v3438, %v3464
          %v3466 = vrcp.pop %v3359
          %v3467 = vmul.f32 %v3439, %v3466
          %v3468 = vrcp.pop %v3360
          %v3469 = vmul.f32 %v3440, %v3468
          %v3470 = vrcp.pop %v3361
          %v3471 = vmul.f32 %v3441, %v3470
          %v3472 = vrcp.pop %v3362
          %v3473 = vmul.f32 %v3442, %v3472
          %v3474 = vrcp.pop %v3363
          %v3475 = vmul.f32 %v3443, %v3474
          %v3476 = vmul.f32 %v3445, %v3445
          %v3477 = vmul.f32 %v3447, %v3447
          %v3478 = vmul.f32 %v3449, %v3449
          %v3479 = vmul.f32 %v3451, %v3451
          %v3480 = vmul.f32 %v3453, %v3453
          %v3481 = vmul.f32 %v3455, %v3455
          %v3482 = vmul.f32 %v3457, %v3457
          %v3483 = vmul.f32 %v3459, %v3459
          %v3484 = vmul.f32 %v3461, %v3461
          %v3485 = vmul.f32 %v3463, %v3463
          %v3486 = vmul.f32 %v3465, %v3465
          %v3487 = vmul.f32 %v3467, %v3467
          %v3488 = vmul.f32 %v3469, %v3469
          %v3489 = vmul.f32 %v3471, %v3471
          %v3490 = vmul.f32 %v3473, %v3473
          %v3491 = vmul.f32 %v3475, %v3475
          %3492 = vadd.xlane.f32.xlu0 %v3476
          %v3493 = vpop.xlane.xlu0 %3492
          %3494 = vadd.xlane.f32.xlu0 %v3477
          %v3495 = vpop.xlane.xlu0 %3494
          %3496 = vadd.xlane.f32.xlu0 %v3478
          %v3497 = vpop.xlane.xlu0 %3496
          %3498 = vadd.xlane.f32.xlu0 %v3479
          %v3499 = vpop.xlane.xlu0 %3498
          %3500 = vadd.xlane.f32.xlu0 %v3480
          %v3501 = vpop.xlane.xlu0 %3500
          %3502 = vadd.xlane.f32.xlu0 %v3481
          %v3503 = vpop.xlane.xlu0 %3502
          %3504 = vadd.xlane.f32.xlu0 %v3482
          %v3505 = vpop.xlane.xlu0 %3504
          %3506 = vadd.xlane.f32.xlu0 %v3483
          %v3507 = vpop.xlane.xlu0 %3506
          %3508 = vadd.xlane.f32.xlu0 %v3484
          %v3509 = vpop.xlane.xlu0 %3508
          %3510 = vadd.xlane.f32.xlu0 %v3485
          %v3511 = vpop.xlane.xlu0 %3510
          %3512 = vadd.xlane.f32.xlu0 %v3486
          %v3513 = vpop.xlane.xlu0 %3512
          %3514 = vadd.xlane.f32.xlu0 %v3487
          %v3515 = vpop.xlane.xlu0 %3514
          %3516 = vadd.xlane.f32.xlu0 %v3488
          %v3517 = vpop.xlane.xlu0 %3516
          %3518 = vadd.xlane.f32.xlu0 %v3489
          %v3519 = vpop.xlane.xlu0 %3518
          %3520 = vadd.xlane.f32.xlu0 %v3490
          %v3521 = vpop.xlane.xlu0 %3520
          %3522 = vadd.xlane.f32.xlu0 %v3491
          %v3523 = vpop.xlane.xlu0 %3522
          %v3524 = vrsqrt.pop %v3493
          %v3525 = vmul.f32 %v3493, %v3524
          %vm3526 = vcmp.eq.f32.partialorder %v3493, inf
          %v3527 = vsel %vm3526, %v3493, %v3525
          %vm3528 = vcmp.eq.f32.partialorder %v3493, 0.0
          %v3529 = vand.u32 %v3493, 2147483648
          %v3530 = vsel %vm3528, %v3529, %v3527
          %v3531 = vrsqrt.pop %v3495
          %v3532 = vmul.f32 %v3495, %v3531
          %vm3533 = vcmp.eq.f32.partialorder %v3495, inf
          %v3534 = vsel %vm3533, %v3495, %v3532
          %vm3535 = vcmp.eq.f32.partialorder %v3495, 0.0
          %v3536 = vand.u32 %v3495, 2147483648
          %v3537 = vsel %vm3535, %v3536, %v3534
          %v3538 = vrsqrt.pop %v3497
          %v3539 = vmul.f32 %v3497, %v3538
          %vm3540 = vcmp.eq.f32.partialorder %v3497, inf
          %v3541 = vsel %vm3540, %v3497, %v3539
          %vm3542 = vcmp.eq.f32.partialorder %v3497, 0.0
          %v3543 = vand.u32 %v3497, 2147483648
          %v3544 = vsel %vm3542, %v3543, %v3541
          %v3545 = vrsqrt.pop %v3499
          %v3546 = vmul.f32 %v3499, %v3545
          %vm3547 = vcmp.eq.f32.partialorder %v3499, inf
          %v3548 = vsel %vm3547, %v3499, %v3546
          %vm3549 = vcmp.eq.f32.partialorder %v3499, 0.0
          %v3550 = vand.u32 %v3499, 2147483648
          %v3551 = vsel %vm3549, %v3550, %v3548
          %v3552 = vrsqrt.pop %v3501
          %v3553 = vmul.f32 %v3501, %v3552
          %vm3554 = vcmp.eq.f32.partialorder %v3501, inf
          %v3555 = vsel %vm3554, %v3501, %v3553
          %vm3556 = vcmp.eq.f32.partialorder %v3501, 0.0
          %v3557 = vand.u32 %v3501, 2147483648
          %v3558 = vsel %vm3556, %v3557, %v3555
          %v3559 = vrsqrt.pop %v3503
          %v3560 = vmul.f32 %v3503, %v3559
          %vm3561 = vcmp.eq.f32.partialorder %v3503, inf
          %v3562 = vsel %vm3561, %v3503, %v3560
          %vm3563 = vcmp.eq.f32.partialorder %v3503, 0.0
          %v3564 = vand.u32 %v3503, 2147483648
          %v3565 = vsel %vm3563, %v3564, %v3562
          %v3566 = vrsqrt.pop %v3505
          %v3567 = vmul.f32 %v3505, %v3566
          %vm3568 = vcmp.eq.f32.partialorder %v3505, inf
          %v3569 = vsel %vm3568, %v3505, %v3567
          %vm3570 = vcmp.eq.f32.partialorder %v3505, 0.0
          %v3571 = vand.u32 %v3505, 2147483648
          %v3572 = vsel %vm3570, %v3571, %v3569
          %v3573 = vrsqrt.pop %v3507
          %v3574 = vmul.f32 %v3507, %v3573
          %vm3575 = vcmp.eq.f32.partialorder %v3507, inf
          %v3576 = vsel %vm3575, %v3507, %v3574
          %vm3577 = vcmp.eq.f32.partialorder %v3507, 0.0
          %v3578 = vand.u32 %v3507, 2147483648
          %v3579 = vsel %vm3577, %v3578, %v3576
          %v3580 = vrsqrt.pop %v3509
          %v3581 = vmul.f32 %v3509, %v3580
          %vm3582 = vcmp.eq.f32.partialorder %v3509, inf
          %v3583 = vsel %vm3582, %v3509, %v3581
          %vm3584 = vcmp.eq.f32.partialorder %v3509, 0.0
          %v3585 = vand.u32 %v3509, 2147483648
          %v3586 = vsel %vm3584, %v3585, %v3583
          %v3587 = vrsqrt.pop %v3511
          %v3588 = vmul.f32 %v3511, %v3587
          %vm3589 = vcmp.eq.f32.partialorder %v3511, inf
          %v3590 = vsel %vm3589, %v3511, %v3588
          %vm3591 = vcmp.eq.f32.partialorder %v3511, 0.0
          %v3592 = vand.u32 %v3511, 2147483648
          %v3593 = vsel %vm3591, %v3592, %v3590
          %v3594 = vrsqrt.pop %v3513
          %v3595 = vmul.f32 %v3513, %v3594
          %vm3596 = vcmp.eq.f32.partialorder %v3513, inf
          %v3597 = vsel %vm3596, %v3513, %v3595
          %vm3598 = vcmp.eq.f32.partialorder %v3513, 0.0
          %v3599 = vand.u32 %v3513, 2147483648
          %v3600 = vsel %vm3598, %v3599, %v3597
          %v3601 = vrsqrt.pop %v3515
          %v3602 = vmul.f32 %v3515, %v3601
          %vm3603 = vcmp.eq.f32.partialorder %v3515, inf
          %v3604 = vsel %vm3603, %v3515, %v3602
          %vm3605 = vcmp.eq.f32.partialorder %v3515, 0.0
          %v3606 = vand.u32 %v3515, 2147483648
          %v3607 = vsel %vm3605, %v3606, %v3604
          %v3608 = vrsqrt.pop %v3517
          %v3609 = vmul.f32 %v3517, %v3608
          %vm3610 = vcmp.eq.f32.partialorder %v3517, inf
          %v3611 = vsel %vm3610, %v3517, %v3609
          %vm3612 = vcmp.eq.f32.partialorder %v3517, 0.0
          %v3613 = vand.u32 %v3517, 2147483648
          %v3614 = vsel %vm3612, %v3613, %v3611
          %v3615 = vrsqrt.pop %v3519
          %v3616 = vmul.f32 %v3519, %v3615
          %vm3617 = vcmp.eq.f32.partialorder %v3519, inf
          %v3618 = vsel %vm3617, %v3519, %v3616
          %vm3619 = vcmp.eq.f32.partialorder %v3519, 0.0
          %v3620 = vand.u32 %v3519, 2147483648
          %v3621 = vsel %vm3619, %v3620, %v3618
          %v3622 = vrsqrt.pop %v3521
          %v3623 = vmul.f32 %v3521, %v3622
          %vm3624 = vcmp.eq.f32.partialorder %v3521, inf
          %v3625 = vsel %vm3624, %v3521, %v3623
          %vm3626 = vcmp.eq.f32.partialorder %v3521, 0.0
          %v3627 = vand.u32 %v3521, 2147483648
          %v3628 = vsel %vm3626, %v3627, %v3625
          %v3629 = vrsqrt.pop %v3523
          %v3630 = vmul.f32 %v3523, %v3629
          %vm3631 = vcmp.eq.f32.partialorder %v3523, inf
          %v3632 = vsel %vm3631, %v3523, %v3630
          %vm3633 = vcmp.eq.f32.partialorder %v3523, 0.0
          %v3634 = vand.u32 %v3523, 2147483648
          %v3635 = vsel %vm3633, %v3634, %v3632
          %v3636 = vmax.f32 %v3530, 1e-15
          %v3637 = vmax.f32 %v3537, 1e-15
          %v3638 = vmax.f32 %v3544, 1e-15
          %v3639 = vmax.f32 %v3551, 1e-15
          %v3640 = vmax.f32 %v3558, 1e-15
          %v3641 = vmax.f32 %v3565, 1e-15
          %v3642 = vmax.f32 %v3572, 1e-15
          %v3643 = vmax.f32 %v3579, 1e-15
          %v3644 = vmax.f32 %v3586, 1e-15
          %v3645 = vmax.f32 %v3593, 1e-15
          %v3646 = vmax.f32 %v3600, 1e-15
          %v3647 = vmax.f32 %v3607, 1e-15
          %v3648 = vmax.f32 %v3614, 1e-15
          %v3649 = vmax.f32 %v3621, 1e-15
          %v3650 = vmax.f32 %v3628, 1e-15
          %v3651 = vmax.f32 %v3635, 1e-15
          %v3652 = vmax.f32 %v3636, -0.9999999
          %v3653 = vmax.f32 %v3637, -0.9999999
          %v3654 = vmax.f32 %v3638, -0.9999999
          %v3655 = vmax.f32 %v3639, -0.9999999
          %v3656 = vmax.f32 %v3640, -0.9999999
          %v3657 = vmax.f32 %v3641, -0.9999999
          %v3658 = vmax.f32 %v3642, -0.9999999
          %v3659 = vmax.f32 %v3643, -0.9999999
          %v3660 = vmax.f32 %v3644, -0.9999999
          %v3661 = vmax.f32 %v3645, -0.9999999
          %v3662 = vmax.f32 %v3646, -0.9999999
          %v3663 = vmax.f32 %v3647, -0.9999999
          %v3664 = vmax.f32 %v3648, -0.9999999
          %v3665 = vmax.f32 %v3649, -0.9999999
          %v3666 = vmax.f32 %v3650, -0.9999999
          %v3667 = vmax.f32 %v3651, -0.9999999
          %v3668 = vmin.f32 %v3652, 0.9999999
          %v3669 = vmin.f32 %v3653, 0.9999999
          %v3670 = vmin.f32 %v3654, 0.9999999
          %v3671 = vmin.f32 %v3655, 0.9999999
          %v3672 = vmin.f32 %v3656, 0.9999999
          %v3673 = vmin.f32 %v3657, 0.9999999
          %v3674 = vmin.f32 %v3658, 0.9999999
          %v3675 = vmin.f32 %v3659, 0.9999999
          %v3676 = vmin.f32 %v3660, 0.9999999
          %v3677 = vmin.f32 %v3661, 0.9999999
          %v3678 = vmin.f32 %v3662, 0.9999999
          %v3679 = vmin.f32 %v3663, 0.9999999
          %v3680 = vmin.f32 %v3664, 0.9999999
          %v3681 = vmin.f32 %v3665, 0.9999999
          %v3682 = vmin.f32 %v3666, 0.9999999
          %v3683 = vmin.f32 %v3667, 0.9999999
          %v3684 = vadd.f32 %v3668, 1.0
          %v3685 = vadd.f32 %v3669, 1.0
          %v3686 = vadd.f32 %v3670, 1.0
          %v3687 = vadd.f32 %v3671, 1.0
          %v3688 = vadd.f32 %v3672, 1.0
          %v3689 = vadd.f32 %v3673, 1.0
          %v3690 = vadd.f32 %v3674, 1.0
          %v3691 = vadd.f32 %v3675, 1.0
          %v3692 = vadd.f32 %v3676, 1.0
          %v3693 = vadd.f32 %v3677, 1.0
          %v3694 = vadd.f32 %v3678, 1.0
          %v3695 = vadd.f32 %v3679, 1.0
          %v3696 = vadd.f32 %v3680, 1.0
          %v3697 = vadd.f32 %v3681, 1.0
          %v3698 = vadd.f32 %v3682, 1.0
          %v3699 = vadd.f32 %v3683, 1.0
          %v3700 = vsub.f32 1.0, %v3668
          %v3701 = vsub.f32 1.0, %v3669
          %v3702 = vsub.f32 1.0, %v3670
          %v3703 = vsub.f32 1.0, %v3671
          %v3704 = vsub.f32 1.0, %v3672
          %v3705 = vsub.f32 1.0, %v3673
          %v3706 = vsub.f32 1.0, %v3674
          %v3707 = vsub.f32 1.0, %v3675
          %v3708 = vsub.f32 1.0, %v3676
          %v3709 = vsub.f32 1.0, %v3677
          %v3710 = vsub.f32 1.0, %v3678
          %v3711 = vsub.f32 1.0, %v3679
          %v3712 = vsub.f32 1.0, %v3680
          %v3713 = vsub.f32 1.0, %v3681
          %v3714 = vsub.f32 1.0, %v3682
          %v3715 = vsub.f32 1.0, %v3683
          %v3716 = vrcp.pop %v3700
          %v3717 = vmul.f32 %v3684, %v3716
          %v3718 = vrcp.pop %v3701
          %v3719 = vmul.f32 %v3685, %v3718
          %v3720 = vrcp.pop %v3702
          %v3721 = vmul.f32 %v3686, %v3720
          %v3722 = vrcp.pop %v3703
          %v3723 = vmul.f32 %v3687, %v3722
          %v3724 = vrcp.pop %v3704
          %v3725 = vmul.f32 %v3688, %v3724
          %v3726 = vrcp.pop %v3705
          %v3727 = vmul.f32 %v3689, %v3726
          %v3728 = vrcp.pop %v3706
          %v3729 = vmul.f32 %v3690, %v3728
          %v3730 = vrcp.pop %v3707
          %v3731 = vmul.f32 %v3691, %v3730
          %v3732 = vrcp.pop %v3708
          %v3733 = vmul.f32 %v3692, %v3732
          %v3734 = vrcp.pop %v3709
          %v3735 = vmul.f32 %v3693, %v3734
          %v3736 = vrcp.pop %v3710
          %v3737 = vmul.f32 %v3694, %v3736
          %v3738 = vrcp.pop %v3711
          %v3739 = vmul.f32 %v3695, %v3738
          %v3740 = vrcp.pop %v3712
          %v3741 = vmul.f32 %v3696, %v3740
          %v3742 = vrcp.pop %v3713
          %v3743 = vmul.f32 %v3697, %v3742
          %v3744 = vrcp.pop %v3714
          %v3745 = vmul.f32 %v3698, %v3744
          %v3746 = vrcp.pop %v3715
          %v3747 = vmul.f32 %v3699, %v3746
          %v3748 = vlog2.pop %v3717
          %v3749 = vmul.f32 %v3748, 0.6931472
          %v3750 = vlog2.pop %v3719
          %v3751 = vmul.f32 %v3750, 0.6931472
          %v3752 = vlog2.pop %v3721
          %v3753 = vmul.f32 %v3752, 0.6931472
          %v3754 = vlog2.pop %v3723
          %v3755 = vmul.f32 %v3754, 0.6931472
          %v3756 = vlog2.pop %v3725
          %v3757 = vmul.f32 %v3756, 0.6931472
          %v3758 = vlog2.pop %v3727
          %v3759 = vmul.f32 %v3758, 0.6931472
          %v3760 = vlog2.pop %v3729
          %v3761 = vmul.f32 %v3760, 0.6931472
          %v3762 = vlog2.pop %v3731
          %v3763 = vmul.f32 %v3762, 0.6931472
          %v3764 = vlog2.pop %v3733
          %v3765 = vmul.f32 %v3764, 0.6931472
          %v3766 = vlog2.pop %v3735
          %v3767 = vmul.f32 %v3766, 0.6931472
          %v3768 = vlog2.pop %v3737
          %v3769 = vmul.f32 %v3768, 0.6931472
          %v3770 = vlog2.pop %v3739
          %v3771 = vmul.f32 %v3770, 0.6931472
          %v3772 = vlog2.pop %v3741
          %v3773 = vmul.f32 %v3772, 0.6931472
          %v3774 = vlog2.pop %v3743
          %v3775 = vmul.f32 %v3774, 0.6931472
          %v3776 = vlog2.pop %v3745
          %v3777 = vmul.f32 %v3776, 0.6931472
          %v3778 = vlog2.pop %v3747
          %v3779 = vmul.f32 %v3778, 0.6931472
          %v3780 = vmul.f32 %v3749, 0.5
          %v3781 = vmul.f32 %v3751, 0.5
          %v3782 = vmul.f32 %v3753, 0.5
          %v3783 = vmul.f32 %v3755, 0.5
          %v3784 = vmul.f32 %v3757, 0.5
          %v3785 = vmul.f32 %v3759, 0.5
          %v3786 = vmul.f32 %v3761, 0.5
          %v3787 = vmul.f32 %v3763, 0.5
          %v3788 = vmul.f32 %v3765, 0.5
          %v3789 = vmul.f32 %v3767, 0.5
          %v3790 = vmul.f32 %v3769, 0.5
          %v3791 = vmul.f32 %v3771, 0.5
          %v3792 = vmul.f32 %v3773, 0.5
          %v3793 = vmul.f32 %v3775, 0.5
          %v3794 = vmul.f32 %v3777, 0.5
          %v3795 = vmul.f32 %v3779, 0.5
          %v3796 = vmul.f32 %v3780, 0.5
          %v3797 = vmul.f32 %v3781, 0.5
          %v3798 = vmul.f32 %v3782, 0.5
          %v3799 = vmul.f32 %v3783, 0.5
          %v3800 = vmul.f32 %v3784, 0.5
          %v3801 = vmul.f32 %v3785, 0.5
          %v3802 = vmul.f32 %v3786, 0.5
          %v3803 = vmul.f32 %v3787, 0.5
          %v3804 = vmul.f32 %v3788, 0.5
          %v3805 = vmul.f32 %v3789, 0.5
          %v3806 = vmul.f32 %v3790, 0.5
          %v3807 = vmul.f32 %v3791, 0.5
          %v3808 = vmul.f32 %v3792, 0.5
          %v3809 = vmul.f32 %v3793, 0.5
          %v3810 = vmul.f32 %v3794, 0.5
          %v3811 = vmul.f32 %v3795, 0.5
          %v3812 = vtanh.pop %v3796
          %v3813 = vtanh.pop %v3797
          %v3814 = vtanh.pop %v3798
          %v3815 = vtanh.pop %v3799
          %v3816 = vtanh.pop %v3800
          %v3817 = vtanh.pop %v3801
          %v3818 = vtanh.pop %v3802
          %v3819 = vtanh.pop %v3803
          %v3820 = vtanh.pop %v3804
          %v3821 = vtanh.pop %v3805
          %v3822 = vtanh.pop %v3806
          %v3823 = vtanh.pop %v3807
          %v3824 = vtanh.pop %v3808
          %v3825 = vtanh.pop %v3809
          %v3826 = vtanh.pop %v3810
          %v3827 = vtanh.pop %v3811
          %v3828 = vrcp.pop %v3636
          %v3829 = vmul.f32 %v3812, %v3828
          %v3830 = vrcp.pop %v3637
          %v3831 = vmul.f32 %v3813, %v3830
          %v3832 = vrcp.pop %v3638
          %v3833 = vmul.f32 %v3814, %v3832
          %v3834 = vrcp.pop %v3639
          %v3835 = vmul.f32 %v3815, %v3834
          %v3836 = vrcp.pop %v3640
          %v3837 = vmul.f32 %v3816, %v3836
          %v3838 = vrcp.pop %v3641
          %v3839 = vmul.f32 %v3817, %v3838
          %v3840 = vrcp.pop %v3642
          %v3841 = vmul.f32 %v3818, %v3840
          %v3842 = vrcp.pop %v3643
          %v3843 = vmul.f32 %v3819, %v3842
          %v3844 = vrcp.pop %v3644
          %v3845 = vmul.f32 %v3820, %v3844
          %v3846 = vrcp.pop %v3645
          %v3847 = vmul.f32 %v3821, %v3846
          %v3848 = vrcp.pop %v3646
          %v3849 = vmul.f32 %v3822, %v3848
          %v3850 = vrcp.pop %v3647
          %v3851 = vmul.f32 %v3823, %v3850
          %v3852 = vrcp.pop %v3648
          %v3853 = vmul.f32 %v3824, %v3852
          %v3854 = vrcp.pop %v3649
          %v3855 = vmul.f32 %v3825, %v3854
          %v3856 = vrcp.pop %v3650
          %v3857 = vmul.f32 %v3826, %v3856
          %v3858 = vrcp.pop %v3651
          %v3859 = vmul.f32 %v3827, %v3858
          %v3860 = vmul.f32 %v3445, %v3829
          %v3861 = vmul.f32 %v3447, %v3831
          %v3862 = vmul.f32 %v3449, %v3833
          %v3863 = vmul.f32 %v3451, %v3835
          %v3864 = vmul.f32 %v3453, %v3837
          %v3865 = vmul.f32 %v3455, %v3839
          %v3866 = vmul.f32 %v3457, %v3841
          %v3867 = vmul.f32 %v3459, %v3843
          %v3868 = vmul.f32 %v3461, %v3845
          %v3869 = vmul.f32 %v3463, %v3847
          %v3870 = vmul.f32 %v3465, %v3849
          %v3871 = vmul.f32 %v3467, %v3851
          %v3872 = vmul.f32 %v3469, %v3853
          %v3873 = vmul.f32 %v3471, %v3855
          %v3874 = vmul.f32 %v3473, %v3857
          %v3875 = vmul.f32 %v3475, %v3859
          %v3876 = vmax.f32 %v3812, 1e-15
          %v3877 = vmax.f32 %v3813, 1e-15
          %v3878 = vmax.f32 %v3814, 1e-15
          %v3879 = vmax.f32 %v3815, 1e-15
          %v3880 = vmax.f32 %v3816, 1e-15
          %v3881 = vmax.f32 %v3817, 1e-15
          %v3882 = vmax.f32 %v3818, 1e-15
          %v3883 = vmax.f32 %v3819, 1e-15
          %v3884 = vmax.f32 %v3820, 1e-15
          %v3885 = vmax.f32 %v3821, 1e-15
          %v3886 = vmax.f32 %v3822, 1e-15
          %v3887 = vmax.f32 %v3823, 1e-15
          %v3888 = vmax.f32 %v3824, 1e-15
          %v3889 = vmax.f32 %v3825, 1e-15
          %v3890 = vmax.f32 %v3826, 1e-15
          %v3891 = vmax.f32 %v3827, 1e-15
          %vm3892 = vcmp.gt.f32.partialorder %v3876, 0.99999
          %vm3893 = vcmp.gt.f32.partialorder %v3877, 0.99999
          %vm3894 = vcmp.gt.f32.partialorder %v3878, 0.99999
          %vm3895 = vcmp.gt.f32.partialorder %v3879, 0.99999
          %vm3896 = vcmp.gt.f32.partialorder %v3880, 0.99999
          %vm3897 = vcmp.gt.f32.partialorder %v3881, 0.99999
          %vm3898 = vcmp.gt.f32.partialorder %v3882, 0.99999
          %vm3899 = vcmp.gt.f32.partialorder %v3883, 0.99999
          %vm3900 = vcmp.gt.f32.partialorder %v3884, 0.99999
          %vm3901 = vcmp.gt.f32.partialorder %v3885, 0.99999
          %vm3902 = vcmp.gt.f32.partialorder %v3886, 0.99999
          %vm3903 = vcmp.gt.f32.partialorder %v3887, 0.99999
          %vm3904 = vcmp.gt.f32.partialorder %v3888, 0.99999
          %vm3905 = vcmp.gt.f32.partialorder %v3889, 0.99999
          %vm3906 = vcmp.gt.f32.partialorder %v3890, 0.99999
          %vm3907 = vcmp.gt.f32.partialorder %v3891, 0.99999
          %v3908 = vrcp.pop %v3876
          %v3909 = vmul.f32 0.99999, %v3908
          %v3910 = vrcp.pop %v3877
          %v3911 = vmul.f32 0.99999, %v3910
          %v3912 = vrcp.pop %v3878
          %v3913 = vmul.f32 0.99999, %v3912
          %v3914 = vrcp.pop %v3879
          %v3915 = vmul.f32 0.99999, %v3914
          %v3916 = vrcp.pop %v3880
          %v3917 = vmul.f32 0.99999, %v3916
          %v3918 = vrcp.pop %v3881
          %v3919 = vmul.f32 0.99999, %v3918
          %v3920 = vrcp.pop %v3882
          %v3921 = vmul.f32 0.99999, %v3920
          %v3922 = vrcp.pop %v3883
          %v3923 = vmul.f32 0.99999, %v3922
          %v3924 = vrcp.pop %v3884
          %v3925 = vmul.f32 0.99999, %v3924
          %v3926 = vrcp.pop %v3885
          %v3927 = vmul.f32 0.99999, %v3926
          %v3928 = vrcp.pop %v3886
          %v3929 = vmul.f32 0.99999, %v3928
          %v3930 = vrcp.pop %v3887
          %v3931 = vmul.f32 0.99999, %v3930
          %v3932 = vrcp.pop %v3888
          %v3933 = vmul.f32 0.99999, %v3932
          %v3934 = vrcp.pop %v3889
          %v3935 = vmul.f32 0.99999, %v3934
          %v3936 = vrcp.pop %v3890
          %v3937 = vmul.f32 0.99999, %v3936
          %v3938 = vrcp.pop %v3891
          %v3939 = vmul.f32 0.99999, %v3938
          %v3940 = vsel %vm3892, %v3909, 1.0
          %v3941 = vsel %vm3893, %v3911, 1.0
          %v3942 = vsel %vm3894, %v3913, 1.0
          %v3943 = vsel %vm3895, %v3915, 1.0
          %v3944 = vsel %vm3896, %v3917, 1.0
          %v3945 = vsel %vm3897, %v3919, 1.0
          %v3946 = vsel %vm3898, %v3921, 1.0
          %v3947 = vsel %vm3899, %v3923, 1.0
          %v3948 = vsel %vm3900, %v3925, 1.0
          %v3949 = vsel %vm3901, %v3927, 1.0
          %v3950 = vsel %vm3902, %v3929, 1.0
          %v3951 = vsel %vm3903, %v3931, 1.0
          %v3952 = vsel %vm3904, %v3933, 1.0
          %v3953 = vsel %vm3905, %v3935, 1.0
          %v3954 = vsel %vm3906, %v3937, 1.0
          %v3955 = vsel %vm3907, %v3939, 1.0
          %v3956 = vmul.f32 %v3860, %v3940
          %v3957 = vmul.f32 %v3861, %v3941
          %v3958 = vmul.f32 %v3862, %v3942
          %v3959 = vmul.f32 %v3863, %v3943
          %v3960 = vmul.f32 %v3864, %v3944
          %v3961 = vmul.f32 %v3865, %v3945
          %v3962 = vmul.f32 %v3866, %v3946
          %v3963 = vmul.f32 %v3867, %v3947
          %v3964 = vmul.f32 %v3868, %v3948
          %v3965 = vmul.f32 %v3869, %v3949
          %v3966 = vmul.f32 %v3870, %v3950
          %v3967 = vmul.f32 %v3871, %v3951
          %v3968 = vmul.f32 %v3872, %v3952
          %v3969 = vmul.f32 %v3873, %v3953
          %v3970 = vmul.f32 %v3874, %v3954
          %v3971 = vmul.f32 %v3875, %v3955
          %3972 = vst [vmem:[%s326] sm:$0xff] %v3956
          %3973 = vst [vmem:[%s326 + $0x8] sm:$0xff] %v3957
          %3974 = vst [vmem:[%s326 + $0x10] sm:$0xff] %v3958
          %3975 = vst [vmem:[%s326 + $0x18] sm:$0xff] %v3959
          %3976 = vst [vmem:[%s326 + $0x20] sm:$0xff] %v3960
          %3977 = vst [vmem:[%s326 + $0x28] sm:$0xff] %v3961
          %3978 = vst [vmem:[%s326 + $0x30] sm:$0xff] %v3962
          %3979 = vst [vmem:[%s326 + $0x38] sm:$0xff] %v3963
          %3980 = vst [vmem:[%s326 + $0x40] sm:$0xff] %v3964
          %3981 = vst [vmem:[%s326 + $0x48] sm:$0xff] %v3965
          %3982 = vst [vmem:[%s326 + $0x50] sm:$0xff] %v3966
          %3983 = vst [vmem:[%s326 + $0x58] sm:$0xff] %v3967
          %3984 = vst [vmem:[%s326 + $0x60] sm:$0xff] %v3968
          %3985 = vst [vmem:[%s326 + $0x68] sm:$0xff] %v3969
          %3986 = vst [vmem:[%s326 + $0x70] sm:$0xff] %v3970
          %3987 = vst [vmem:[%s326 + $0x78] sm:$0xff] %v3971
        $region64: #{tpu_custom_call.1} parent=39 // pred_fallthru
          _
        %s3988 = sand.u32 %s161, 1
        %s3989 = scalar_lea.sflag [#allocation5], %s3988
        %s3990 = sand.u32 %s161, 1
        %s3991 = smul.addr %s3990, 128
        %s3992 = scalar_lea.vmem [#allocation11], %s3991
        // Predicated region
        $region65: #{tpu_custom_call.1} parent=39 // pred_check
          %p3993 = pneg %p171
        $region66: #{tpu_custom_call.1} parent=39 // pred_check_branch
          %3995 = sbr.rel (%p3993) target = $region68
        $region67: #{tpu_custom_call.1} parent=39 // pred_region
          %s3996 = smul.u32 16, %s28
          %s3998 = ssub.s32 2048, 2048
          %3999 = vsyncadd %s3989, %s3998
          %s4000 = smul.addr %s3996, 128
          %s4001 = scalar_lea.hbm %s5, %s4000
          %s4002 = sshll.u32 %s3992, 4
          %s4003 = int_to_ptr.vmem [resolvable:$true] %s4002
          %4008 = dma.vmem_to_hbm [thread:$0]  %s4003, 2048, %s4001, %s3989, 128, 128, 8
        $region68: #{tpu_custom_call.1} parent=39 // pred_fallthru
          _
      $region40: #{tpu_custom_call.1} parent=5 // pred_fallthru
        _
      %p4009 = scmp.le.s32.totalorder 2, %s19
      // Predicated region
      $region69: #{tpu_custom_call.1} parent=5 // pred_check
        %p4010 = pneg %p4009
      $region70: #{tpu_custom_call.1} parent=5 // pred_check_branch
        %4012 = sbr.rel (%p4010) target = $region72
      $region71: #{tpu_custom_call.1} parent=5 // pred_region
        %s4013 = ssub.s32 %s19, 2
        // Predicated region
        $region73: #{tpu_custom_call.1} parent=71 // pred_check
          %p4014 = pneg %p177
        $region74: #{tpu_custom_call.1} parent=71 // pred_check_branch
          %4016 = sbr.rel (%p4014) target = $region76
        $region75: #{tpu_custom_call.1} parent=71 // pred_region
          %s4017 = sand.u32 %s162, 1
          %s4018 = scalar_lea.sflag [#allocation5], %s4017
          %s4019 = sand.u32 %s162, 1
          %s4020 = smul.addr %s4019, 128
          %s4021 = scalar_lea.vmem [#allocation11], %s4020
          %4022 = dma.done %s4018, 2048
        $region76: #{tpu_custom_call.1} parent=71 // pred_fallthru
          _
      $region72: #{tpu_custom_call.1} parent=5 // pred_fallthru
        _
    $region6: #{tpu_custom_call.1} parent=1 // loop_footer
      %s23 = sadd.s32 1, %s19
    $region7: #{tpu_custom_call.1} parent=1 // loop_footer_branch
      %18 = sbr.rel target = $region3
    $region8: #{tpu_custom_call.1} parent=1 // loop_exit
      _
    %4023 = vsyncpa [#allocation4], 1
    %s4024 = scalar_lea.sflag [#allocation4], 1
    %4025 = vsyncpa %s4024, 1
    %4026 = vsyncpa [#allocation7], 1
    %s4027 = scalar_lea.sflag [#allocation7], 1
    %4028 = vsyncpa %s4027, 1
    %4029 = vsyncpa [#allocation10], 1
    %4030 = vsyncpa [#allocation5], 1
    %s4031 = scalar_lea.sflag [#allocation5], 1
    %4032 = vsyncpa %s4031, 1

</llo_original>
